<compile_context>
chip_gen: v6e
topology: v6e:2x2x1
jax: 0.10.0
libtpu: 0.0.40
codegen_flags: <defaults>
</compile_context>

<pallas_src>
import functools
import math

import jax
import jax.numpy as jnp
from jax import lax
from jax.experimental import pallas as pl
from jax.experimental.pallas import tpu as pltpu

LN_EPS = 1e-5


# ----------------------------------------------------------------------------
# Fused encoder-layer Pallas kernel (QKV + MHA + out-proj + LN1 + FFN + LN2)
# ----------------------------------------------------------------------------
@functools.lru_cache(maxsize=None)
def _build_encoder_layer(B, S, E, H, F, TQ):
    assert E % H == 0, (E, H)
    assert S % TQ == 0, (S, TQ)
    hd = E // H
    QT = S // TQ                       # number of query tiles
    inv_scale = 1.0 / math.sqrt(hd)
    bf16 = jnp.bfloat16

    def kernel(x_ref, m_ref,
               wqkv_ref, bqkv_ref, wo_ref, bo_ref,
               g1_ref, b1_ref, w1_ref, c1_ref, w2_ref, c2_ref,
               g2_ref, b2_ref,
               o_ref,
               qkv_scr, y_scr):
        qi = pl.program_id(1)
        row0 = pl.multiple_of(qi * TQ, TQ)

        # --- full-sequence QKV projection, once per batch element ------------
        # qkv_scr persists across the (arbitrary) query-tile axis, so it is
        # computed only at qi == 0 and reused by all query tiles of this batch
        # element.  Stored in f32 (bias already added); operands cast to bf16
        # at each matmul for MXU peak.
        @pl.when(qi == 0)
        def _():
            x_full = x_ref[0].astype(bf16)                       # (S, E)
            qkv_scr[...] = (
                jnp.dot(x_full, wqkv_ref[...],
                        preferred_element_type=jnp.float32)
                + bqkv_ref[...])                                 # (S, 3E) f32

        madd = m_ref[0]                                          # (1, S)

        # --- multi-head attention for this query tile ------------------------
        # TODO(synk): hd (= E/H) is below the 128-lane width; per-head column
        # slices are lane-masked and QK^T contracts over only hd lanes.
        for h in range(H):                                       # static unroll
            q = qkv_scr[pl.ds(row0, TQ), h * hd:(h + 1) * hd] * inv_scale
            k = qkv_scr[:, E + h * hd:E + (h + 1) * hd]          # (S, hd)
            v = qkv_scr[:, 2 * E + h * hd:2 * E + (h + 1) * hd]  # (S, hd)
            s = lax.dot_general(q.astype(bf16), k.astype(bf16),
                                (((1,), (1,)), ((), ())),
                                preferred_element_type=jnp.float32)  # (TQ, S)
            s = s + madd                                          # broadcast key mask
            s = s - jnp.max(s, axis=-1, keepdims=True)
            p = jnp.exp(s)
            p = p * pl.reciprocal(jnp.sum(p, axis=-1, keepdims=True),
                                  approx=True)
            yh = jnp.dot(p.astype(bf16), v.astype(bf16),
                         preferred_element_type=jnp.float32)      # (TQ, hd)
            y_scr[:, h * hd:(h + 1) * hd] = yh                    # place head slice

        # one big (TQ,E)@(E,E) output projection (full-E contraction on MXU)
        attn = jnp.dot(y_scr[...].astype(bf16), wo_ref[...],
                       preferred_element_type=jnp.float32) + bo_ref[...]

        # --- residual + LayerNorm1 (dropout == identity, eval mode) ----------
        x_rows = x_ref[0, pl.ds(row0, TQ), :]                     # (TQ, E) f32
        x1 = attn + x_rows
        mu1 = jnp.mean(x1, axis=-1, keepdims=True)
        d1 = x1 - mu1
        var1 = jnp.mean(d1 * d1, axis=-1, keepdims=True)
        x1 = d1 * lax.rsqrt(var1 + LN_EPS) * g1_ref[...] + b1_ref[...]

        # --- feed-forward: relu(x1 @ W1 + c1) @ W2 + c2 -----------------------
        # TODO(synk): for very large E*F (v7x 64 MiB VMEM) this should be
        # F-tiled; weights here stay fully resident in bf16.
        hid = jnp.maximum(
            jnp.dot(x1.astype(bf16), w1_ref[...],
                    preferred_element_type=jnp.float32) + c1_ref[...], 0.0)
        ffn = jnp.dot(hid.astype(bf16), w2_ref[...],
                      preferred_element_type=jnp.float32) + c2_ref[...]

        # --- residual + LayerNorm2 --------------------------------------------
        x2 = ffn + x1
        mu2 = jnp.mean(x2, axis=-1, keepdims=True)
        d2 = x2 - mu2
        var2 = jnp.mean(d2 * d2, axis=-1, keepdims=True)
        o_ref[0] = d2 * lax.rsqrt(var2 + LN_EPS) * g2_ref[...] + b2_ref[...]

    # Grid-invariant specs: constant index maps -> Pallas skips re-DMA of the
    # block across grid steps (fetched once per core).
    def const2d(shape):
        return pl.BlockSpec(shape, lambda b, q: (0, 0))

    in_specs = [
        pl.BlockSpec((1, S, E), lambda b, q: (b, 0, 0)),   # x  (full seq, per b)
        pl.BlockSpec((1, 1, S), lambda b, q: (b, 0, 0)),   # additive key mask
        const2d((E, 3 * E)), const2d((1, 3 * E)),          # Wqkv (bf16), bqkv
        const2d((E, E)), const2d((1, E)),                  # Wo (bf16), bo
        const2d((1, E)), const2d((1, E)),                  # ln1 gamma, beta
        const2d((E, F)), const2d((1, F)),                  # W1 (bf16), c1
        const2d((F, E)), const2d((1, E)),                  # W2 (bf16), c2
        const2d((1, E)), const2d((1, E)),                  # ln2 gamma, beta
    ]

    # VMEM budget: bf16 weights (double-buffered by the pipeline), f32 qkv
    # scratch, x / mask / out blocks, plus headroom for score & FFN temporaries.
    w_bytes_1x = 2 * (E * 3 * E + E * E + E * F + F * E)           # bf16
    small_1x = 4 * (3 * E + E + F + 5 * E)                         # biases + LN
    resident = (2 * w_bytes_1x + 2 * small_1x
                + 2 * 4 * S * E        # x block (2 buffers)
                + 2 * 4 * S            # mask block
                + 4 * S * 3 * E        # qkv scratch (f32)
                + 4 * TQ * E           # y scratch
                + 2 * 4 * TQ * E       # output block (2 buffers)
                + 4 * TQ * S           # score temporaries
                + 4 * TQ * F)          # FFN hidden temporaries
    vmem_limit = int(min(max(resident + (4 << 20), 32 << 20), 64 << 20))

    flops = B * (6 * S * E * E        # QKV projection
                 + 4 * S * S * E      # QK^T + PV
                 + 2 * S * E * E      # output projection
                 + 4 * S * E * F)     # FFN
    transcendentals = B * H * S * S   # exp
    bytes_accessed = (2 * 4 * B * S * E + 4 * B * S
                      + w_bytes_1x + small_1x)

    return pl.pallas_call(
        kernel,
        out_shape=jax.ShapeDtypeStruct((B, S, E), jnp.float32),
        grid=(B, QT),
        in_specs=in_specs,
        out_specs=pl.BlockSpec((1, TQ, E), lambda b, q: (b, q, 0)),
        scratch_shapes=[
            pltpu.VMEM((S, 3 * E), jnp.float32),   # full-seq QKV (per batch elem)
            pltpu.VMEM((TQ, E), jnp.float32),      # concatenated head outputs
        ],
        compiler_params=pltpu.CompilerParams(
            # batch axis parallel (megacore); query-tile axis must stay
            # sequential because qkv_scr is filled at qi == 0.
            dimension_semantics=("parallel", "arbitrary"),
            vmem_limit_bytes=vmem_limit),
        cost_estimate=pl.CostEstimate(flops=int(flops),
                                      transcendentals=int(transcendentals),
                                      bytes_accessed=int(bytes_accessed)),
    )


# ----------------------------------------------------------------------------
# Stack forward (runs under a single outer jax.jit)
# ----------------------------------------------------------------------------
def transformer_encoder_stack(x, attention_mask, params, *, num_heads):
    """x: (B, S, E) float32; attention_mask: (B, S), >0 means 'keep token'."""
    B, S, E = x.shape
    # torch: where(mask>0, False, True) * -10000, broadcast over query dim.
    madd = jnp.where(attention_mask > 0, 0.0, -10000.0).astype(jnp.float32)
    madd = madd[:, None, :]                                   # (B, 1, S)

    F = params["layers"][0]["w1"].shape[1]
    TQ = 128 if (S > 128 and S % 128 == 0) else S             # query-tile rows
    layer = _build_encoder_layer(B, S, E, num_heads, F, TQ)

    bf16 = jnp.bfloat16
    for p in params["layers"]:
        x = layer(
            x, madd,
            p["wqkv"].astype(bf16), p["bqkv"].reshape(1, 3 * E),
            p["wo"].astype(bf16), p["bo"].reshape(1, E),
            p["ln1_g"].reshape(1, E), p["ln1_b"].reshape(1, E),
            p["w1"].astype(bf16), p["b1"].reshape(1, F),
            p["w2"].astype(bf16), p["b2"].reshape(1, E),
            p["ln2_g"].reshape(1, E), p["ln2_b"].reshape(1, E))
    return x


# ----------------------------------------------------------------------------
# Deterministic synthetic parameters
# ----------------------------------------------------------------------------
def build_params(key, layer_count, d_model, dim_feedforward):
    cnt = [0]

    def nk():
        cnt[0] += 1
        return jax.random.fold_in(key, cnt[0])

    def linear(fan_in, fan_out):
        bound = 1.0 / math.sqrt(fan_in)
        w = jax.random.uniform(nk(), (fan_in, fan_out), jnp.float32, -bound, bound)
        b = jax.random.uniform(nk(), (fan_out,), jnp.float32, -bound, bound)
        return w, b

    layers = []
    for _ in range(layer_count):
        wqkv, bqkv = linear(d_model, 3 * d_model)
        wo, bo = linear(d_model, d_model)
        w1, b1 = linear(d_model, dim_feedforward)
        w2, b2 = linear(dim_feedforward, d_model)
        layers.append(dict(
            wqkv=wqkv, bqkv=bqkv, wo=wo, bo=bo,
            w1=w1, b1=b1, w2=w2, b2=b2,
            ln1_g=jnp.ones((d_model,), jnp.float32),
            ln1_b=jnp.zeros((d_model,), jnp.float32),
            ln2_g=jnp.ones((d_model,), jnp.float32),
            ln2_b=jnp.zeros((d_model,), jnp.float32)))
    return {"layers": layers}


# ----------------------------------------------------------------------------
# Plain-JAX reference (mirrors the PyTorch module, eval mode) for self-check.
# Matmuls use the same bf16-operand / f32-accumulate precision as the kernel
# so the comparison isolates kernel logic rather than dtype policy.
# ----------------------------------------------------------------------------
def reference_forward(x, attention_mask, params, num_heads):
    B, S, E = x.shape
    hd = E // num_heads
    bf16 = jnp.bfloat16
    madd = jnp.where(attention_mask > 0, 0.0, -10000.0)[:, None, None, :]

    def mm(a, b):
        return jnp.einsum("...ij,jk->...ik", a.astype(bf16), b.astype(bf16),
                          preferred_element_type=jnp.float32)

    def layernorm(v, g, b):
        mu = jnp.mean(v, axis=-1, keepdims=True)
        var = jnp.mean((v - mu) ** 2, axis=-1, keepdims=True)
        return (v - mu) * lax.rsqrt(var + LN_EPS) * g + b

    for p in params["layers"]:
        qkv = mm(x, p["wqkv"]) + p["bqkv"]
        q, k, v = qkv[..., :E], qkv[..., E:2 * E], qkv[..., 2 * E:]

        def split(t):
            return t.reshape(B, S, num_heads, hd).transpose(0, 2, 1, 3)

        qh = split(q) / math.sqrt(hd)
        kh, vh = split(k), split(v)
        s = jnp.einsum("bhqd,bhkd->bhqk", qh.astype(bf16), kh.astype(bf16),
                       preferred_element_type=jnp.float32) + madd
        a = jax.nn.softmax(s, axis=-1)
        y = jnp.einsum("bhqk,bhkd->bhqd", a.astype(bf16), vh.astype(bf16),
                       preferred_element_type=jnp.float32)
        y = y.transpose(0, 2, 1, 3).reshape(B, S, E)

        x1 = layernorm(mm(y, p["wo"]) + p["bo"] + x, p["ln1_g"], p["ln1_b"])
        h = jnp.maximum(mm(x1, p["w1"]) + p["b1"], 0.0)
        x = layernorm(mm(h, p["w2"]) + p["b2"] + x1, p["ln2_g"], p["ln2_b"])
    return x


if __name__ == "__main__":
    key = jax.random.PRNGKey(0)
    B, S, E, H, F, L = 2, 8, 32, 4, 64, 2   # batch, seq, d_model, heads, ffn, layers

    x = jax.random.normal(jax.random.fold_in(key, 101), (B, S, E), jnp.float32)
    # attention_mask: 1 = real token, 0 = padding (batch 1 has 2 padded keys)
    attention_mask = jnp.ones((B, S), jnp.int32).at[1, -2:].set(0)
    params = build_params(key, L, E, F)

    fwd = jax.jit(functools.partial(transformer_encoder_stack, num_heads=H))
    y = jax.block_until_ready(fwd(x, attention_mask, params))

    assert y.shape == (B, S, E), y.shape
    assert bool(jnp.all(jnp.isfinite(y)))

    # correctness self-check vs bf16-precision plain-JAX reference (remaining
    # differences: MXU accumulation order + approx reciprocal in softmax)
    y_ref = reference_forward(x, attention_mask, params, H)
    max_err = float(jnp.max(jnp.abs(y - y_ref)))
    assert max_err < 2e-2, max_err

    print("KERNEL_OK")
</pallas_src>

<mosaic_0001>
module attributes {stable_mosaic.version = 11 : i64} {
  func.func @kernel(%arg0: i32, %arg1: i32, %arg2: memref<1x8x32xf32, #tpu.memory_space<vmem>>, %arg3: memref<1x1x8xf32, #tpu.memory_space<vmem>>, %arg4: memref<32x96xbf16, #tpu.memory_space<vmem>>, %arg5: memref<1x96xf32, #tpu.memory_space<vmem>>, %arg6: memref<32x32xbf16, #tpu.memory_space<vmem>>, %arg7: memref<1x32xf32, #tpu.memory_space<vmem>>, %arg8: memref<1x32xf32, #tpu.memory_space<vmem>>, %arg9: memref<1x32xf32, #tpu.memory_space<vmem>>, %arg10: memref<32x64xbf16, #tpu.memory_space<vmem>>, %arg11: memref<1x64xf32, #tpu.memory_space<vmem>>, %arg12: memref<64x32xbf16, #tpu.memory_space<vmem>>, %arg13: memref<1x32xf32, #tpu.memory_space<vmem>>, %arg14: memref<1x32xf32, #tpu.memory_space<vmem>>, %arg15: memref<1x32xf32, #tpu.memory_space<vmem>>, %arg16: memref<1x8x32xf32, #tpu.memory_space<vmem>>, %arg17: memref<8x96xf32, #tpu.memory_space<vmem>>, %arg18: memref<8x32xf32, #tpu.memory_space<vmem>>) attributes {dimension_semantics = [#tpu.dimension_semantics<parallel>, #tpu.dimension_semantics<arbitrary>], iteration_bounds = array<i64: 2, 1>, scalar_prefetch = 0 : i64, scratch_operands = 2 : i64, tpu.core_type = #tpu.core_type<tc>, window_params = [{transform_indices = @transform_0, window_bounds = array<i64: 1, 8, 32>}, {transform_indices = @transform_1, window_bounds = array<i64: 1, 1, 8>}, {pipeline_mode = #tpu.pipeline_mode<synchronous>, transform_indices = @transform_2, window_bounds = array<i64: 32, 96>}, {pipeline_mode = #tpu.pipeline_mode<synchronous>, transform_indices = @transform_3, window_bounds = array<i64: 1, 96>}, {pipeline_mode = #tpu.pipeline_mode<synchronous>, transform_indices = @transform_4, window_bounds = array<i64: 32, 32>}, {pipeline_mode = #tpu.pipeline_mode<synchronous>, transform_indices = @transform_5, window_bounds = array<i64: 1, 32>}, {pipeline_mode = #tpu.pipeline_mode<synchronous>, transform_indices = @transform_6, window_bounds = array<i64: 1, 32>}, {pipeline_mode = #tpu.pipeline_mode<synchronous>, transform_indices = @transform_7, window_bounds = array<i64: 1, 32>}, {pipeline_mode = #tpu.pipeline_mode<synchronous>, transform_indices = @transform_8, window_bounds = array<i64: 32, 64>}, {pipeline_mode = #tpu.pipeline_mode<synchronous>, transform_indices = @transform_9, window_bounds = array<i64: 1, 64>}, {pipeline_mode = #tpu.pipeline_mode<synchronous>, transform_indices = @transform_10, window_bounds = array<i64: 64, 32>}, {pipeline_mode = #tpu.pipeline_mode<synchronous>, transform_indices = @transform_11, window_bounds = array<i64: 1, 32>}, {pipeline_mode = #tpu.pipeline_mode<synchronous>, transform_indices = @transform_12, window_bounds = array<i64: 1, 32>}, {pipeline_mode = #tpu.pipeline_mode<synchronous>, transform_indices = @transform_13, window_bounds = array<i64: 1, 32>}, {transform_indices = @transform_14, window_bounds = array<i64: 1, 8, 32>}]} {
    %c8_i32 = arith.constant 8 : i32
    %0 = arith.muli %arg1, %c8_i32 : i32
    %1 = tpu.assume_multiple %0, 8 : i32
    %c0_i32 = arith.constant 0 : i32
    %2 = arith.cmpi eq, %arg1, %c0_i32 : i32
    %3 = arith.extui %2 : i1 to i32
    %c0_i32_0 = arith.constant 0 : i32
    %4 = arith.cmpi ne, %3, %c0_i32_0 : i32
    scf.if %4 {
      %c0_80 = arith.constant 0 : index
      %c0_81 = arith.constant 0 : index
      %c0_82 = arith.constant 0 : index
      %180 = vector.load %arg2[%c0_80, %c0_81, %c0_82] : memref<1x8x32xf32, #tpu.memory_space<vmem>>, vector<1x8x32xf32>
      %181 = vector.shape_cast %180 : vector<1x8x32xf32> to vector<8x32xf32>
      %182 = arith.truncf %181 : vector<8x32xf32> to vector<8x32xbf16>
      %c0_83 = arith.constant 0 : index
      %c0_84 = arith.constant 0 : index
      %183 = vector.load %arg4[%c0_83, %c0_84] : memref<32x96xbf16, #tpu.memory_space<vmem>>, vector<32x96xbf16>
      %cst_85 = arith.constant dense<0.000000e+00> : vector<8x96xf32>
      %184 = tpu.matmul %182, %183, %cst_85 {dimension_numbers = #tpu.dot_dimension_numbers<[1], [0], [0], [1], [0, 0, 1, 1], [], []>} : vector<8x32xbf16>, vector<32x96xbf16>, vector<8x96xf32> -> vector<8x96xf32>
      %c0_86 = arith.constant 0 : index
      %c0_87 = arith.constant 0 : index
      %185 = vector.load %arg5[%c0_86, %c0_87] : memref<1x96xf32, #tpu.memory_space<vmem>>, vector<1x96xf32>
      %186 = vector.broadcast %185 : vector<1x96xf32> to vector<8x96xf32>
      %187 = arith.addf %184, %186 : vector<8x96xf32>
      %c0_88 = arith.constant 0 : index
      %c0_89 = arith.constant 0 : index
      %188 = vector.load %arg17[%c0_88, %c0_89] : memref<8x96xf32, #tpu.memory_space<vmem>>, vector<8x96xf32>
      tpu.vector_store %arg17[%c0_88, %c0_89], %187 {strides = array<i32>} : memref<8x96xf32, #tpu.memory_space<vmem>>, vector<8x96xf32>,
    } else {
    }
    %c0 = arith.constant 0 : index
    %c0_1 = arith.constant 0 : index
    %c0_2 = arith.constant 0 : index
    %5 = vector.load %arg3[%c0, %c0_1, %c0_2] : memref<1x1x8xf32, #tpu.memory_space<vmem>>, vector<1x1x8xf32>
    %6 = vector.shape_cast %5 : vector<1x1x8xf32> to vector<1x8xf32>
    %7 = arith.index_cast %1 : i32 to index
    %c0_3 = arith.constant 0 : index
    %8 = vector.load %arg17[%7, %c0_3] : memref<8x96xf32, #tpu.memory_space<vmem>>, vector<8x8xf32>
    %cst = arith.constant 0.353553385 : f32
    %9 = vector.broadcast %cst : f32 to vector<8x8xf32>
    %10 = arith.mulf %8, %9 : vector<8x8xf32>
    %c0_4 = arith.constant 0 : index
    %c32 = arith.constant 32 : index
    %11 = vector.load %arg17[%c0_4, %c32] : memref<8x96xf32, #tpu.memory_space<vmem>>, vector<8x8xf32>
    %c0_5 = arith.constant 0 : index
    %c64 = arith.constant 64 : index
    %12 = vector.load %arg17[%c0_5, %c64] : memref<8x96xf32, #tpu.memory_space<vmem>>, vector<8x8xf32>
    %13 = arith.truncf %10 : vector<8x8xf32> to vector<8x8xbf16>
    %14 = arith.truncf %11 : vector<8x8xf32> to vector<8x8xbf16>
    %cst_6 = arith.constant dense<0.000000e+00> : vector<8x8xf32>
    %15 = tpu.matmul %13, %14, %cst_6 {dimension_numbers = #tpu.dot_dimension_numbers<[1], [1], [0], [0], [0, 0, 1, 0], [], []>} : vector<8x8xbf16>, vector<8x8xbf16>, vector<8x8xf32> -> vector<8x8xf32>
    %16 = vector.broadcast %6 : vector<1x8xf32> to vector<8x8xf32>
    %17 = arith.addf %15, %16 : vector<8x8xf32>
    %cst_7 = arith.constant dense<0xFF800000> : vector<8xf32>
    %18 = vector.multi_reduction <maximumf>, %17, %cst_7 [1] : vector<8x8xf32> to vector<8xf32>
    %19 = vector.shape_cast %18 : vector<8xf32> to vector<8x1xf32>
    %20 = vector.broadcast %19 : vector<8x1xf32> to vector<8x8xf32>
    %21 = arith.subf %17, %20 : vector<8x8xf32>
    %22 = math.exp %21 : vector<8x8xf32>
    %cst_8 = arith.constant dense<0.000000e+00> : vector<8xf32>
    %23 = vector.multi_reduction <add>, %22, %cst_8 [1] : vector<8x8xf32> to vector<8xf32>
    %24 = vector.shape_cast %23 : vector<8xf32> to vector<8x1xf32>
    %25 = tpu.reciprocal %24 {approx = true} : vector<8x1xf32> -> vector<8x1xf32>
    %26 = vector.broadcast %25 : vector<8x1xf32> to vector<8x8xf32>
    %27 = arith.mulf %22, %26 : vector<8x8xf32>
    %28 = arith.truncf %27 : vector<8x8xf32> to vector<8x8xbf16>
    %29 = arith.truncf %12 : vector<8x8xf32> to vector<8x8xbf16>
    %cst_9 = arith.constant dense<0.000000e+00> : vector<8x8xf32>
    %30 = tpu.matmul %28, %29, %cst_9 {dimension_numbers = #tpu.dot_dimension_numbers<[1], [0], [0], [1], [0, 0, 1, 1], [], []>} : vector<8x8xbf16>, vector<8x8xbf16>, vector<8x8xf32> -> vector<8x8xf32>
    %c0_10 = arith.constant 0 : index
    %c0_11 = arith.constant 0 : index
    %31 = vector.load %arg18[%c0_10, %c0_11] : memref<8x32xf32, #tpu.memory_space<vmem>>, vector<8x8xf32>
    tpu.vector_store %arg18[%c0_10, %c0_11], %30 {strides = array<i32>} : memref<8x32xf32, #tpu.memory_space<vmem>>, vector<8x8xf32>,
    %32 = arith.index_cast %1 : i32 to index
    %c8 = arith.constant 8 : index
    %33 = vector.load %arg17[%32, %c8] : memref<8x96xf32, #tpu.memory_space<vmem>>, vector<8x8xf32>
    %cst_12 = arith.constant 0.353553385 : f32
    %34 = vector.broadcast %cst_12 : f32 to vector<8x8xf32>
    %35 = arith.mulf %33, %34 : vector<8x8xf32>
    %c0_13 = arith.constant 0 : index
    %c40 = arith.constant 40 : index
    %36 = vector.load %arg17[%c0_13, %c40] : memref<8x96xf32, #tpu.memory_space<vmem>>, vector<8x8xf32>
    %c0_14 = arith.constant 0 : index
    %c72 = arith.constant 72 : index
    %37 = vector.load %arg17[%c0_14, %c72] : memref<8x96xf32, #tpu.memory_space<vmem>>, vector<8x8xf32>
    %38 = arith.truncf %35 : vector<8x8xf32> to vector<8x8xbf16>
    %39 = arith.truncf %36 : vector<8x8xf32> to vector<8x8xbf16>
    %cst_15 = arith.constant dense<0.000000e+00> : vector<8x8xf32>
    %40 = tpu.matmul %38, %39, %cst_15 {dimension_numbers = #tpu.dot_dimension_numbers<[1], [1], [0], [0], [0, 0, 1, 0], [], []>} : vector<8x8xbf16>, vector<8x8xbf16>, vector<8x8xf32> -> vector<8x8xf32>
    %41 = vector.broadcast %6 : vector<1x8xf32> to vector<8x8xf32>
    %42 = arith.addf %40, %41 : vector<8x8xf32>
    %cst_16 = arith.constant dense<0xFF800000> : vector<8xf32>
    %43 = vector.multi_reduction <maximumf>, %42, %cst_16 [1] : vector<8x8xf32> to vector<8xf32>
    %44 = vector.shape_cast %43 : vector<8xf32> to vector<8x1xf32>
    %45 = vector.broadcast %44 : vector<8x1xf32> to vector<8x8xf32>
    %46 = arith.subf %42, %45 : vector<8x8xf32>
    %47 = math.exp %46 : vector<8x8xf32>
    %cst_17 = arith.constant dense<0.000000e+00> : vector<8xf32>
    %48 = vector.multi_reduction <add>, %47, %cst_17 [1] : vector<8x8xf32> to vector<8xf32>
    %49 = vector.shape_cast %48 : vector<8xf32> to vector<8x1xf32>
    %50 = tpu.reciprocal %49 {approx = true} : vector<8x1xf32> -> vector<8x1xf32>
    %51 = vector.broadcast %50 : vector<8x1xf32> to vector<8x8xf32>
    %52 = arith.mulf %47, %51 : vector<8x8xf32>
    %53 = arith.truncf %52 : vector<8x8xf32> to vector<8x8xbf16>
    %54 = arith.truncf %37 : vector<8x8xf32> to vector<8x8xbf16>
    %cst_18 = arith.constant dense<0.000000e+00> : vector<8x8xf32>
    %55 = tpu.matmul %53, %54, %cst_18 {dimension_numbers = #tpu.dot_dimension_numbers<[1], [0], [0], [1], [0, 0, 1, 1], [], []>} : vector<8x8xbf16>, vector<8x8xbf16>, vector<8x8xf32> -> vector<8x8xf32>
    %c0_19 = arith.constant 0 : index
    %c8_20 = arith.constant 8 : index
    %56 = vector.load %arg18[%c0_19, %c8_20] : memref<8x32xf32, #tpu.memory_space<vmem>>, vector<8x8xf32>
    tpu.vector_store %arg18[%c0_19, %c8_20], %55 {strides = array<i32>} : memref<8x32xf32, #tpu.memory_space<vmem>>, vector<8x8xf32>,
    %57 = arith.index_cast %1 : i32 to index
    %c16 = arith.constant 16 : index
    %58 = vector.load %arg17[%57, %c16] : memref<8x96xf32, #tpu.memory_space<vmem>>, vector<8x8xf32>
    %cst_21 = arith.constant 0.353553385 : f32
    %59 = vector.broadcast %cst_21 : f32 to vector<8x8xf32>
    %60 = arith.mulf %58, %59 : vector<8x8xf32>
    %c0_22 = arith.constant 0 : index
    %c48 = arith.constant 48 : index
    %61 = vector.load %arg17[%c0_22, %c48] : memref<8x96xf32, #tpu.memory_space<vmem>>, vector<8x8xf32>
    %c0_23 = arith.constant 0 : index
    %c80 = arith.constant 80 : index
    %62 = vector.load %arg17[%c0_23, %c80] : memref<8x96xf32, #tpu.memory_space<vmem>>, vector<8x8xf32>
    %63 = arith.truncf %60 : vector<8x8xf32> to vector<8x8xbf16>
    %64 = arith.truncf %61 : vector<8x8xf32> to vector<8x8xbf16>
    %cst_24 = arith.constant dense<0.000000e+00> : vector<8x8xf32>
    %65 = tpu.matmul %63, %64, %cst_24 {dimension_numbers = #tpu.dot_dimension_numbers<[1], [1], [0], [0], [0, 0, 1, 0], [], []>} : vector<8x8xbf16>, vector<8x8xbf16>, vector<8x8xf32> -> vector<8x8xf32>
    %66 = vector.broadcast %6 : vector<1x8xf32> to vector<8x8xf32>
    %67 = arith.addf %65, %66 : vector<8x8xf32>
    %cst_25 = arith.constant dense<0xFF800000> : vector<8xf32>
    %68 = vector.multi_reduction <maximumf>, %67, %cst_25 [1] : vector<8x8xf32> to vector<8xf32>
    %69 = vector.shape_cast %68 : vector<8xf32> to vector<8x1xf32>
    %70 = vector.broadcast %69 : vector<8x1xf32> to vector<8x8xf32>
    %71 = arith.subf %67, %70 : vector<8x8xf32>
    %72 = math.exp %71 : vector<8x8xf32>
    %cst_26 = arith.constant dense<0.000000e+00> : vector<8xf32>
    %73 = vector.multi_reduction <add>, %72, %cst_26 [1] : vector<8x8xf32> to vector<8xf32>
    %74 = vector.shape_cast %73 : vector<8xf32> to vector<8x1xf32>
    %75 = tpu.reciprocal %74 {approx = true} : vector<8x1xf32> -> vector<8x1xf32>
    %76 = vector.broadcast %75 : vector<8x1xf32> to vector<8x8xf32>
    %77 = arith.mulf %72, %76 : vector<8x8xf32>
    %78 = arith.truncf %77 : vector<8x8xf32> to vector<8x8xbf16>
    %79 = arith.truncf %62 : vector<8x8xf32> to vector<8x8xbf16>
    %cst_27 = arith.constant dense<0.000000e+00> : vector<8x8xf32>
    %80 = tpu.matmul %78, %79, %cst_27 {dimension_numbers = #tpu.dot_dimension_numbers<[1], [0], [0], [1], [0, 0, 1, 1], [], []>} : vector<8x8xbf16>, vector<8x8xbf16>, vector<8x8xf32> -> vector<8x8xf32>
    %c0_28 = arith.constant 0 : index
    %c16_29 = arith.constant 16 : index
    %81 = vector.load %arg18[%c0_28, %c16_29] : memref<8x32xf32, #tpu.memory_space<vmem>>, vector<8x8xf32>
    tpu.vector_store %arg18[%c0_28, %c16_29], %80 {strides = array<i32>} : memref<8x32xf32, #tpu.memory_space<vmem>>, vector<8x8xf32>,
    %82 = arith.index_cast %1 : i32 to index
    %c24 = arith.constant 24 : index
    %83 = vector.load %arg17[%82, %c24] : memref<8x96xf32, #tpu.memory_space<vmem>>, vector<8x8xf32>
    %cst_30 = arith.constant 0.353553385 : f32
    %84 = vector.broadcast %cst_30 : f32 to vector<8x8xf32>
    %85 = arith.mulf %83, %84 : vector<8x8xf32>
    %c0_31 = arith.constant 0 : index
    %c56 = arith.constant 56 : index
    %86 = vector.load %arg17[%c0_31, %c56] : memref<8x96xf32, #tpu.memory_space<vmem>>, vector<8x8xf32>
    %c0_32 = arith.constant 0 : index
    %c88 = arith.constant 88 : index
    %87 = vector.load %arg17[%c0_32, %c88] : memref<8x96xf32, #tpu.memory_space<vmem>>, vector<8x8xf32>
    %88 = arith.truncf %85 : vector<8x8xf32> to vector<8x8xbf16>
    %89 = arith.truncf %86 : vector<8x8xf32> to vector<8x8xbf16>
    %cst_33 = arith.constant dense<0.000000e+00> : vector<8x8xf32>
    %90 = tpu.matmul %88, %89, %cst_33 {dimension_numbers = #tpu.dot_dimension_numbers<[1], [1], [0], [0], [0, 0, 1, 0], [], []>} : vector<8x8xbf16>, vector<8x8xbf16>, vector<8x8xf32> -> vector<8x8xf32>
    %91 = vector.broadcast %6 : vector<1x8xf32> to vector<8x8xf32>
    %92 = arith.addf %90, %91 : vector<8x8xf32>
    %cst_34 = arith.constant dense<0xFF800000> : vector<8xf32>
    %93 = vector.multi_reduction <maximumf>, %92, %cst_34 [1] : vector<8x8xf32> to vector<8xf32>
    %94 = vector.shape_cast %93 : vector<8xf32> to vector<8x1xf32>
    %95 = vector.broadcast %94 : vector<8x1xf32> to vector<8x8xf32>
    %96 = arith.subf %92, %95 : vector<8x8xf32>
    %97 = math.exp %96 : vector<8x8xf32>
    %cst_35 = arith.constant dense<0.000000e+00> : vector<8xf32>
    %98 = vector.multi_reduction <add>, %97, %cst_35 [1] : vector<8x8xf32> to vector<8xf32>
    %99 = vector.shape_cast %98 : vector<8xf32> to vector<8x1xf32>
    %100 = tpu.reciprocal %99 {approx = true} : vector<8x1xf32> -> vector<8x1xf32>
    %101 = vector.broadcast %100 : vector<8x1xf32> to vector<8x8xf32>
    %102 = arith.mulf %97, %101 : vector<8x8xf32>
    %103 = arith.truncf %102 : vector<8x8xf32> to vector<8x8xbf16>
    %104 = arith.truncf %87 : vector<8x8xf32> to vector<8x8xbf16>
    %cst_36 = arith.constant dense<0.000000e+00> : vector<8x8xf32>
    %105 = tpu.matmul %103, %104, %cst_36 {dimension_numbers = #tpu.dot_dimension_numbers<[1], [0], [0], [1], [0, 0, 1, 1], [], []>} : vector<8x8xbf16>, vector<8x8xbf16>, vector<8x8xf32> -> vector<8x8xf32>
    %c0_37 = arith.constant 0 : index
    %c24_38 = arith.constant 24 : index
    %106 = vector.load %arg18[%c0_37, %c24_38] : memref<8x32xf32, #tpu.memory_space<vmem>>, vector<8x8xf32>
    tpu.vector_store %arg18[%c0_37, %c24_38], %105 {strides = array<i32>} : memref<8x32xf32, #tpu.memory_space<vmem>>, vector<8x8xf32>,
    %c0_39 = arith.constant 0 : index
    %c0_40 = arith.constant 0 : index
    %107 = vector.load %arg18[%c0_39, %c0_40] : memref<8x32xf32, #tpu.memory_space<vmem>>, vector<8x32xf32>
    %108 = arith.truncf %107 : vector<8x32xf32> to vector<8x32xbf16>
    %c0_41 = arith.constant 0 : index
    %c0_42 = arith.constant 0 : index
    %109 = vector.load %arg6[%c0_41, %c0_42] : memref<32x32xbf16, #tpu.memory_space<vmem>>, vector<32x32xbf16>
    %cst_43 = arith.constant dense<0.000000e+00> : vector<8x32xf32>
    %110 = tpu.matmul %108, %109, %cst_43 {dimension_numbers = #tpu.dot_dimension_numbers<[1], [0], [0], [1], [0, 0, 1, 1], [], []>} : vector<8x32xbf16>, vector<32x32xbf16>, vector<8x32xf32> -> vector<8x32xf32>
    %c0_44 = arith.constant 0 : index
    %c0_45 = arith.constant 0 : index
    %111 = vector.load %arg7[%c0_44, %c0_45] : memref<1x32xf32, #tpu.memory_space<vmem>>, vector<1x32xf32>
    %112 = vector.broadcast %111 : vector<1x32xf32> to vector<8x32xf32>
    %113 = arith.addf %110, %112 : vector<8x32xf32>
    %c0_46 = arith.constant 0 : index
    %114 = arith.index_cast %1 : i32 to index
    %c0_47 = arith.constant 0 : index
    %115 = vector.load %arg2[%c0_46, %114, %c0_47] : memref<1x8x32xf32, #tpu.memory_space<vmem>>, vector<1x8x32xf32>
    %116 = vector.shape_cast %115 : vector<1x8x32xf32> to vector<8x32xf32>
    %117 = arith.addf %113, %116 : vector<8x32xf32>
    %cst_48 = arith.constant dense<0.000000e+00> : vector<8xf32>
    %118 = vector.multi_reduction <add>, %117, %cst_48 [1] : vector<8x32xf32> to vector<8xf32>
    %119 = vector.shape_cast %118 : vector<8xf32> to vector<8x1xf32>
    %cst_49 = arith.constant 3.200000e+01 : f32
    %120 = vector.broadcast %cst_49 : f32 to vector<8x1xf32>
    %121 = arith.divf %119, %120 : vector<8x1xf32>
    %122 = vector.broadcast %121 : vector<8x1xf32> to vector<8x32xf32>
    %123 = arith.subf %117, %122 : vector<8x32xf32>
    %124 = arith.mulf %123, %123 : vector<8x32xf32>
    %cst_50 = arith.constant dense<0.000000e+00> : vector<8xf32>
    %125 = vector.multi_reduction <add>, %124, %cst_50 [1] : vector<8x32xf32> to vector<8xf32>
    %126 = vector.shape_cast %125 : vector<8xf32> to vector<8x1xf32>
    %cst_51 = arith.constant 3.200000e+01 : f32
    %127 = vector.broadcast %cst_51 : f32 to vector<8x1xf32>
    %128 = arith.divf %126, %127 : vector<8x1xf32>
    %cst_52 = arith.constant 9.99999974E-6 : f32
    %129 = vector.broadcast %cst_52 : f32 to vector<8x1xf32>
    %130 = arith.addf %128, %129 : vector<8x1xf32>
    %131 = math.rsqrt %130 : vector<8x1xf32>
    %132 = vector.broadcast %131 : vector<8x1xf32> to vector<8x32xf32>
    %133 = arith.mulf %123, %132 : vector<8x32xf32>
    %c0_53 = arith.constant 0 : index
    %c0_54 = arith.constant 0 : index
    %134 = vector.load %arg8[%c0_53, %c0_54] : memref<1x32xf32, #tpu.memory_space<vmem>>, vector<1x32xf32>
    %135 = vector.broadcast %134 : vector<1x32xf32> to vector<8x32xf32>
    %136 = arith.mulf %133, %135 : vector<8x32xf32>
    %c0_55 = arith.constant 0 : index
    %c0_56 = arith.constant 0 : index
    %137 = vector.load %arg9[%c0_55, %c0_56] : memref<1x32xf32, #tpu.memory_space<vmem>>, vector<1x32xf32>
    %138 = vector.broadcast %137 : vector<1x32xf32> to vector<8x32xf32>
    %139 = arith.addf %136, %138 : vector<8x32xf32>
    %140 = arith.truncf %139 : vector<8x32xf32> to vector<8x32xbf16>
    %c0_57 = arith.constant 0 : index
    %c0_58 = arith.constant 0 : index
    %141 = vector.load %arg10[%c0_57, %c0_58] : memref<32x64xbf16, #tpu.memory_space<vmem>>, vector<32x64xbf16>
    %cst_59 = arith.constant dense<0.000000e+00> : vector<8x64xf32>
    %142 = tpu.matmul %140, %141, %cst_59 {dimension_numbers = #tpu.dot_dimension_numbers<[1], [0], [0], [1], [0, 0, 1, 1], [], []>} : vector<8x32xbf16>, vector<32x64xbf16>, vector<8x64xf32> -> vector<8x64xf32>
    %c0_60 = arith.constant 0 : index
    %c0_61 = arith.constant 0 : index
    %143 = vector.load %arg11[%c0_60, %c0_61] : memref<1x64xf32, #tpu.memory_space<vmem>>, vector<1x64xf32>
    %144 = vector.broadcast %143 : vector<1x64xf32> to vector<8x64xf32>
    %145 = arith.addf %142, %144 : vector<8x64xf32>
    %cst_62 = arith.constant 0.000000e+00 : f32
    %146 = vector.broadcast %cst_62 : f32 to vector<8x64xf32>
    %147 = arith.maximumf %145, %146 : vector<8x64xf32>
    %148 = arith.truncf %147 : vector<8x64xf32> to vector<8x64xbf16>
    %c0_63 = arith.constant 0 : index
    %c0_64 = arith.constant 0 : index
    %149 = vector.load %arg12[%c0_63, %c0_64] : memref<64x32xbf16, #tpu.memory_space<vmem>>, vector<64x32xbf16>
    %cst_65 = arith.constant dense<0.000000e+00> : vector<8x32xf32>
    %150 = tpu.matmul %148, %149, %cst_65 {dimension_numbers = #tpu.dot_dimension_numbers<[1], [0], [0], [1], [0, 0, 1, 1], [], []>} : vector<8x64xbf16>, vector<64x32xbf16>, vector<8x32xf32> -> vector<8x32xf32>
    %c0_66 = arith.constant 0 : index
    %c0_67 = arith.constant 0 : index
    %151 = vector.load %arg13[%c0_66, %c0_67] : memref<1x32xf32, #tpu.memory_space<vmem>>, vector<1x32xf32>
    %152 = vector.broadcast %151 : vector<1x32xf32> to vector<8x32xf32>
    %153 = arith.addf %150, %152 : vector<8x32xf32>
    %154 = arith.addf %153, %139 : vector<8x32xf32>
    %cst_68 = arith.constant dense<0.000000e+00> : vector<8xf32>
    %155 = vector.multi_reduction <add>, %154, %cst_68 [1] : vector<8x32xf32> to vector<8xf32>
    %156 = vector.shape_cast %155 : vector<8xf32> to vector<8x1xf32>
    %cst_69 = arith.constant 3.200000e+01 : f32
    %157 = vector.broadcast %cst_69 : f32 to vector<8x1xf32>
    %158 = arith.divf %156, %157 : vector<8x1xf32>
    %159 = vector.broadcast %158 : vector<8x1xf32> to vector<8x32xf32>
    %160 = arith.subf %154, %159 : vector<8x32xf32>
    %161 = arith.mulf %160, %160 : vector<8x32xf32>
    %cst_70 = arith.constant dense<0.000000e+00> : vector<8xf32>
    %162 = vector.multi_reduction <add>, %161, %cst_70 [1] : vector<8x32xf32> to vector<8xf32>
    %163 = vector.shape_cast %162 : vector<8xf32> to vector<8x1xf32>
    %cst_71 = arith.constant 3.200000e+01 : f32
    %164 = vector.broadcast %cst_71 : f32 to vector<8x1xf32>
    %165 = arith.divf %163, %164 : vector<8x1xf32>
    %cst_72 = arith.constant 9.99999974E-6 : f32
    %166 = vector.broadcast %cst_72 : f32 to vector<8x1xf32>
    %167 = arith.addf %165, %166 : vector<8x1xf32>
    %168 = math.rsqrt %167 : vector<8x1xf32>
    %169 = vector.broadcast %168 : vector<8x1xf32> to vector<8x32xf32>
    %170 = arith.mulf %160, %169 : vector<8x32xf32>
    %c0_73 = arith.constant 0 : index
    %c0_74 = arith.constant 0 : index
    %171 = vector.load %arg14[%c0_73, %c0_74] : memref<1x32xf32, #tpu.memory_space<vmem>>, vector<1x32xf32>
    %172 = vector.broadcast %171 : vector<1x32xf32> to vector<8x32xf32>
    %173 = arith.mulf %170, %172 : vector<8x32xf32>
    %c0_75 = arith.constant 0 : index
    %c0_76 = arith.constant 0 : index
    %174 = vector.load %arg15[%c0_75, %c0_76] : memref<1x32xf32, #tpu.memory_space<vmem>>, vector<1x32xf32>
    %175 = vector.broadcast %174 : vector<1x32xf32> to vector<8x32xf32>
    %176 = arith.addf %173, %175 : vector<8x32xf32>
    %c0_77 = arith.constant 0 : index
    %c0_78 = arith.constant 0 : index
    %c0_79 = arith.constant 0 : index
    %177 = vector.load %arg16[%c0_77, %c0_78, %c0_79] : memref<1x8x32xf32, #tpu.memory_space<vmem>>, vector<1x8x32xf32>
    %178 = vector.shape_cast %177 : vector<1x8x32xf32> to vector<8x32xf32>
    %179 = vector.shape_cast %176 : vector<8x32xf32> to vector<1x8x32xf32>
    tpu.vector_store %arg16[%c0_77, %c0_78, %c0_79], %179 {strides = array<i32>} : memref<1x8x32xf32, #tpu.memory_space<vmem>>, vector<1x8x32xf32>,
    return
  }
  func.func @transform_0(%arg0: i32, %arg1: i32) -> (i32, i32, i32) {
    %c0_i32 = arith.constant 0 : i32
    %c0_i32_0 = arith.constant 0 : i32
    %c0_i32_1 = arith.constant 0 : i32
    return %arg0, %c0_i32, %c0_i32_0 : i32, i32, i32
  }
  func.func @transform_1(%arg0: i32, %arg1: i32) -> (i32, i32, i32) {
    %c0_i32 = arith.constant 0 : i32
    %c0_i32_0 = arith.constant 0 : i32
    %c0_i32_1 = arith.constant 0 : i32
    return %arg0, %c0_i32, %c0_i32_0 : i32, i32, i32
  }
  func.func @transform_2(%arg0: i32, %arg1: i32) -> (i32, i32) {
    %c0_i32 = arith.constant 0 : i32
    %c0_i32_0 = arith.constant 0 : i32
    %c0_i32_1 = arith.constant 0 : i32
    return %c0_i32, %c0_i32_0 : i32, i32
  }
  func.func @transform_3(%arg0: i32, %arg1: i32) -> (i32, i32) {
    %c0_i32 = arith.constant 0 : i32
    %c0_i32_0 = arith.constant 0 : i32
    %c0_i32_1 = arith.constant 0 : i32
    return %c0_i32, %c0_i32_0 : i32, i32
  }
  func.func @transform_4(%arg0: i32, %arg1: i32) -> (i32, i32) {
    %c0_i32 = arith.constant 0 : i32
    %c0_i32_0 = arith.constant 0 : i32
    %c0_i32_1 = arith.constant 0 : i32
    return %c0_i32, %c0_i32_0 : i32, i32
  }
  func.func @transform_5(%arg0: i32, %arg1: i32) -> (i32, i32) {
    %c0_i32 = arith.constant 0 : i32
    %c0_i32_0 = arith.constant 0 : i32
    %c0_i32_1 = arith.constant 0 : i32
    return %c0_i32, %c0_i32_0 : i32, i32
  }
  func.func @transform_6(%arg0: i32, %arg1: i32) -> (i32, i32) {
    %c0_i32 = arith.constant 0 : i32
    %c0_i32_0 = arith.constant 0 : i32
    %c0_i32_1 = arith.constant 0 : i32
    return %c0_i32, %c0_i32_0 : i32, i32
  }
  func.func @transform_7(%arg0: i32, %arg1: i32) -> (i32, i32) {
    %c0_i32 = arith.constant 0 : i32
    %c0_i32_0 = arith.constant 0 : i32
    %c0_i32_1 = arith.constant 0 : i32
    return %c0_i32, %c0_i32_0 : i32, i32
  }
  func.func @transform_8(%arg0: i32, %arg1: i32) -> (i32, i32) {
    %c0_i32 = arith.constant 0 : i32
    %c0_i32_0 = arith.constant 0 : i32
    %c0_i32_1 = arith.constant 0 : i32
    return %c0_i32, %c0_i32_0 : i32, i32
  }
  func.func @transform_9(%arg0: i32, %arg1: i32) -> (i32, i32) {
    %c0_i32 = arith.constant 0 : i32
    %c0_i32_0 = arith.constant 0 : i32
    %c0_i32_1 = arith.constant 0 : i32
    return %c0_i32, %c0_i32_0 : i32, i32
  }
  func.func @transform_10(%arg0: i32, %arg1: i32) -> (i32, i32) {
    %c0_i32 = arith.constant 0 : i32
    %c0_i32_0 = arith.constant 0 : i32
    %c0_i32_1 = arith.constant 0 : i32
    return %c0_i32, %c0_i32_0 : i32, i32
  }
  func.func @transform_11(%arg0: i32, %arg1: i32) -> (i32, i32) {
    %c0_i32 = arith.constant 0 : i32
    %c0_i32_0 = arith.constant 0 : i32
    %c0_i32_1 = arith.constant 0 : i32
    return %c0_i32, %c0_i32_0 : i32, i32
  }
  func.func @transform_12(%arg0: i32, %arg1: i32) -> (i32, i32) {
    %c0_i32 = arith.constant 0 : i32
    %c0_i32_0 = arith.constant 0 : i32
    %c0_i32_1 = arith.constant 0 : i32
    return %c0_i32, %c0_i32_0 : i32, i32
  }
  func.func @transform_13(%arg0: i32, %arg1: i32) -> (i32, i32) {
    %c0_i32 = arith.constant 0 : i32
    %c0_i32_0 = arith.constant 0 : i32
    %c0_i32_1 = arith.constant 0 : i32
    return %c0_i32, %c0_i32_0 : i32, i32
  }
  func.func @transform_14(%arg0: i32, %arg1: i32) -> (i32, i32, i32) {
    %c0_i32 = arith.constant 0 : i32
    %c0_i32_0 = arith.constant 0 : i32
    return %arg0, %arg1, %c0_i32 : i32, i32, i32
  }
}

module attributes {stable_mosaic.version = 11 : i64} {
  func.func @kernel(%arg0: i32, %arg1: i32, %arg2: memref<1x8x32xf32, #tpu.memory_space<vmem>>, %arg3: memref<1x1x8xf32, #tpu.memory_space<vmem>>, %arg4: memref<32x96xbf16, #tpu.memory_space<vmem>>, %arg5: memref<1x96xf32, #tpu.memory_space<vmem>>, %arg6: memref<32x32xbf16, #tpu.memory_space<vmem>>, %arg7: memref<1x32xf32, #tpu.memory_space<vmem>>, %arg8: memref<1x32xf32, #tpu.memory_space<vmem>>, %arg9: memref<1x32xf32, #tpu.memory_space<vmem>>, %arg10: memref<32x64xbf16, #tpu.memory_space<vmem>>, %arg11: memref<1x64xf32, #tpu.memory_space<vmem>>, %arg12: memref<64x32xbf16, #tpu.memory_space<vmem>>, %arg13: memref<1x32xf32, #tpu.memory_space<vmem>>, %arg14: memref<1x32xf32, #tpu.memory_space<vmem>>, %arg15: memref<1x32xf32, #tpu.memory_space<vmem>>, %arg16: memref<1x8x32xf32, #tpu.memory_space<vmem>>, %arg17: memref<8x96xf32, #tpu.memory_space<vmem>>, %arg18: memref<8x32xf32, #tpu.memory_space<vmem>>) attributes {dimension_semantics = [#tpu.dimension_semantics<parallel>, #tpu.dimension_semantics<arbitrary>], iteration_bounds = array<i64: 2, 1>, scalar_prefetch = 0 : i64, scratch_operands = 2 : i64, tpu.core_type = #tpu.core_type<tc>, window_params = [{transform_indices = @transform_0, window_bounds = array<i64: 1, 8, 32>}, {transform_indices = @transform_1, window_bounds = array<i64: 1, 1, 8>}, {pipeline_mode = #tpu.pipeline_mode<synchronous>, transform_indices = @transform_2, window_bounds = array<i64: 32, 96>}, {pipeline_mode = #tpu.pipeline_mode<synchronous>, transform_indices = @transform_3, window_bounds = array<i64: 1, 96>}, {pipeline_mode = #tpu.pipeline_mode<synchronous>, transform_indices = @transform_4, window_bounds = array<i64: 32, 32>}, {pipeline_mode = #tpu.pipeline_mode<synchronous>, transform_indices = @transform_5, window_bounds = array<i64: 1, 32>}, {pipeline_mode = #tpu.pipeline_mode<synchronous>, transform_indices = @transform_6, window_bounds = array<i64: 1, 32>}, {pipeline_mode = #tpu.pipeline_mode<synchronous>, transform_indices = @transform_7, window_bounds = array<i64: 1, 32>}, {pipeline_mode = #tpu.pipeline_mode<synchronous>, transform_indices = @transform_8, window_bounds = array<i64: 32, 64>}, {pipeline_mode = #tpu.pipeline_mode<synchronous>, transform_indices = @transform_9, window_bounds = array<i64: 1, 64>}, {pipeline_mode = #tpu.pipeline_mode<synchronous>, transform_indices = @transform_10, window_bounds = array<i64: 64, 32>}, {pipeline_mode = #tpu.pipeline_mode<synchronous>, transform_indices = @transform_11, window_bounds = array<i64: 1, 32>}, {pipeline_mode = #tpu.pipeline_mode<synchronous>, transform_indices = @transform_12, window_bounds = array<i64: 1, 32>}, {pipeline_mode = #tpu.pipeline_mode<synchronous>, transform_indices = @transform_13, window_bounds = array<i64: 1, 32>}, {transform_indices = @transform_14, window_bounds = array<i64: 1, 8, 32>}]} {
    %c8_i32 = arith.constant 8 : i32
    %0 = arith.muli %arg1, %c8_i32 : i32
    %1 = tpu.assume_multiple %0, 8 : i32
    %c0_i32 = arith.constant 0 : i32
    %2 = arith.cmpi eq, %arg1, %c0_i32 : i32
    %3 = arith.extui %2 : i1 to i32
    %c0_i32_0 = arith.constant 0 : i32
    %4 = arith.cmpi ne, %3, %c0_i32_0 : i32
    scf.if %4 {
      %c0_80 = arith.constant 0 : index
      %c0_81 = arith.constant 0 : index
      %c0_82 = arith.constant 0 : index
      %180 = vector.load %arg2[%c0_80, %c0_81, %c0_82] : memref<1x8x32xf32, #tpu.memory_space<vmem>>, vector<1x8x32xf32>
      %181 = vector.shape_cast %180 : vector<1x8x32xf32> to vector<8x32xf32>
      %182 = arith.truncf %181 : vector<8x32xf32> to vector<8x32xbf16>
      %c0_83 = arith.constant 0 : index
      %c0_84 = arith.constant 0 : index
      %183 = vector.load %arg4[%c0_83, %c0_84] : memref<32x96xbf16, #tpu.memory_space<vmem>>, vector<32x96xbf16>
      %cst_85 = arith.constant dense<0.000000e+00> : vector<8x96xf32>
      %184 = tpu.matmul %182, %183, %cst_85 {dimension_numbers = #tpu.dot_dimension_numbers<[1], [0], [0], [1], [0, 0, 1, 1], [], []>} : vector<8x32xbf16>, vector<32x96xbf16>, vector<8x96xf32> -> vector<8x96xf32>
      %c0_86 = arith.constant 0 : index
      %c0_87 = arith.constant 0 : index
      %185 = vector.load %arg5[%c0_86, %c0_87] : memref<1x96xf32, #tpu.memory_space<vmem>>, vector<1x96xf32>
      %186 = vector.broadcast %185 : vector<1x96xf32> to vector<8x96xf32>
      %187 = arith.addf %184, %186 : vector<8x96xf32>
      %c0_88 = arith.constant 0 : index
      %c0_89 = arith.constant 0 : index
      %188 = vector.load %arg17[%c0_88, %c0_89] : memref<8x96xf32, #tpu.memory_space<vmem>>, vector<8x96xf32>
      tpu.vector_store %arg17[%c0_88, %c0_89], %187 {strides = array<i32>} : memref<8x96xf32, #tpu.memory_space<vmem>>, vector<8x96xf32>,
    } else {
    }
    %c0 = arith.constant 0 : index
    %c0_1 = arith.constant 0 : index
    %c0_2 = arith.constant 0 : index
    %5 = vector.load %arg3[%c0, %c0_1, %c0_2] : memref<1x1x8xf32, #tpu.memory_space<vmem>>, vector<1x1x8xf32>
    %6 = vector.shape_cast %5 : vector<1x1x8xf32> to vector<1x8xf32>
    %7 = arith.index_cast %1 : i32 to index
    %c0_3 = arith.constant 0 : index
    %8 = vector.load %arg17[%7, %c0_3] : memref<8x96xf32, #tpu.memory_space<vmem>>, vector<8x8xf32>
    %cst = arith.constant 0.353553385 : f32
    %9 = vector.broadcast %cst : f32 to vector<8x8xf32>
    %10 = arith.mulf %8, %9 : vector<8x8xf32>
    %c0_4 = arith.constant 0 : index
    %c32 = arith.constant 32 : index
    %11 = vector.load %arg17[%c0_4, %c32] : memref<8x96xf32, #tpu.memory_space<vmem>>, vector<8x8xf32>
    %c0_5 = arith.constant 0 : index
    %c64 = arith.constant 64 : index
    %12 = vector.load %arg17[%c0_5, %c64] : memref<8x96xf32, #tpu.memory_space<vmem>>, vector<8x8xf32>
    %13 = arith.truncf %10 : vector<8x8xf32> to vector<8x8xbf16>
    %14 = arith.truncf %11 : vector<8x8xf32> to vector<8x8xbf16>
    %cst_6 = arith.constant dense<0.000000e+00> : vector<8x8xf32>
    %15 = tpu.matmul %13, %14, %cst_6 {dimension_numbers = #tpu.dot_dimension_numbers<[1], [1], [0], [0], [0, 0, 1, 0], [], []>} : vector<8x8xbf16>, vector<8x8xbf16>, vector<8x8xf32> -> vector<8x8xf32>
    %16 = vector.broadcast %6 : vector<1x8xf32> to vector<8x8xf32>
    %17 = arith.addf %15, %16 : vector<8x8xf32>
    %cst_7 = arith.constant dense<0xFF800000> : vector<8xf32>
    %18 = vector.multi_reduction <maximumf>, %17, %cst_7 [1] : vector<8x8xf32> to vector<8xf32>
    %19 = vector.shape_cast %18 : vector<8xf32> to vector<8x1xf32>
    %20 = vector.broadcast %19 : vector<8x1xf32> to vector<8x8xf32>
    %21 = arith.subf %17, %20 : vector<8x8xf32>
    %22 = math.exp %21 : vector<8x8xf32>
    %cst_8 = arith.constant dense<0.000000e+00> : vector<8xf32>
    %23 = vector.multi_reduction <add>, %22, %cst_8 [1] : vector<8x8xf32> to vector<8xf32>
    %24 = vector.shape_cast %23 : vector<8xf32> to vector<8x1xf32>
    %25 = tpu.reciprocal %24 {approx = true} : vector<8x1xf32> -> vector<8x1xf32>
    %26 = vector.broadcast %25 : vector<8x1xf32> to vector<8x8xf32>
    %27 = arith.mulf %22, %26 : vector<8x8xf32>
    %28 = arith.truncf %27 : vector<8x8xf32> to vector<8x8xbf16>
    %29 = arith.truncf %12 : vector<8x8xf32> to vector<8x8xbf16>
    %cst_9 = arith.constant dense<0.000000e+00> : vector<8x8xf32>
    %30 = tpu.matmul %28, %29, %cst_9 {dimension_numbers = #tpu.dot_dimension_numbers<[1], [0], [0], [1], [0, 0, 1, 1], [], []>} : vector<8x8xbf16>, vector<8x8xbf16>, vector<8x8xf32> -> vector<8x8xf32>
    %c0_10 = arith.constant 0 : index
    %c0_11 = arith.constant 0 : index
    %31 = vector.load %arg18[%c0_10, %c0_11] : memref<8x32xf32, #tpu.memory_space<vmem>>, vector<8x8xf32>
    tpu.vector_store %arg18[%c0_10, %c0_11], %30 {strides = array<i32>} : memref<8x32xf32, #tpu.memory_space<vmem>>, vector<8x8xf32>,
    %32 = arith.index_cast %1 : i32 to index
    %c8 = arith.constant 8 : index
    %33 = vector.load %arg17[%32, %c8] : memref<8x96xf32, #tpu.memory_space<vmem>>, vector<8x8xf32>
    %cst_12 = arith.constant 0.353553385 : f32
    %34 = vector.broadcast %cst_12 : f32 to vector<8x8xf32>
    %35 = arith.mulf %33, %34 : vector<8x8xf32>
    %c0_13 = arith.constant 0 : index
    %c40 = arith.constant 40 : index
    %36 = vector.load %arg17[%c0_13, %c40] : memref<8x96xf32, #tpu.memory_space<vmem>>, vector<8x8xf32>
    %c0_14 = arith.constant 0 : index
    %c72 = arith.constant 72 : index
    %37 = vector.load %arg17[%c0_14, %c72] : memref<8x96xf32, #tpu.memory_space<vmem>>, vector<8x8xf32>
    %38 = arith.truncf %35 : vector<8x8xf32> to vector<8x8xbf16>
    %39 = arith.truncf %36 : vector<8x8xf32> to vector<8x8xbf16>
    %cst_15 = arith.constant dense<0.000000e+00> : vector<8x8xf32>
    %40 = tpu.matmul %38, %39, %cst_15 {dimension_numbers = #tpu.dot_dimension_numbers<[1], [1], [0], [0], [0, 0, 1, 0], [], []>} : vector<8x8xbf16>, vector<8x8xbf16>, vector<8x8xf32> -> vector<8x8xf32>
    %41 = vector.broadcast %6 : vector<1x8xf32> to vector<8x8xf32>
    %42 = arith.addf %40, %41 : vector<8x8xf32>
    %cst_16 = arith.constant dense<0xFF800000> : vector<8xf32>
    %43 = vector.multi_reduction <maximumf>, %42, %cst_16 [1] : vector<8x8xf32> to vector<8xf32>
    %44 = vector.shape_cast %43 : vector<8xf32> to vector<8x1xf32>
    %45 = vector.broadcast %44 : vector<8x1xf32> to vector<8x8xf32>
    %46 = arith.subf %42, %45 : vector<8x8xf32>
    %47 = math.exp %46 : vector<8x8xf32>
    %cst_17 = arith.constant dense<0.000000e+00> : vector<8xf32>
    %48 = vector.multi_reduction <add>, %47, %cst_17 [1] : vector<8x8xf32> to vector<8xf32>
    %49 = vector.shape_cast %48 : vector<8xf32> to vector<8x1xf32>
    %50 = tpu.reciprocal %49 {approx = true} : vector<8x1xf32> -> vector<8x1xf32>
    %51 = vector.broadcast %50 : vector<8x1xf32> to vector<8x8xf32>
    %52 = arith.mulf %47, %51 : vector<8x8xf32>
    %53 = arith.truncf %52 : vector<8x8xf32> to vector<8x8xbf16>
    %54 = arith.truncf %37 : vector<8x8xf32> to vector<8x8xbf16>
    %cst_18 = arith.constant dense<0.000000e+00> : vector<8x8xf32>
    %55 = tpu.matmul %53, %54, %cst_18 {dimension_numbers = #tpu.dot_dimension_numbers<[1], [0], [0], [1], [0, 0, 1, 1], [], []>} : vector<8x8xbf16>, vector<8x8xbf16>, vector<8x8xf32> -> vector<8x8xf32>
    %c0_19 = arith.constant 0 : index
    %c8_20 = arith.constant 8 : index
    %56 = vector.load %arg18[%c0_19, %c8_20] : memref<8x32xf32, #tpu.memory_space<vmem>>, vector<8x8xf32>
    tpu.vector_store %arg18[%c0_19, %c8_20], %55 {strides = array<i32>} : memref<8x32xf32, #tpu.memory_space<vmem>>, vector<8x8xf32>,
    %57 = arith.index_cast %1 : i32 to index
    %c16 = arith.constant 16 : index
    %58 = vector.load %arg17[%57, %c16] : memref<8x96xf32, #tpu.memory_space<vmem>>, vector<8x8xf32>
    %cst_21 = arith.constant 0.353553385 : f32
    %59 = vector.broadcast %cst_21 : f32 to vector<8x8xf32>
    %60 = arith.mulf %58, %59 : vector<8x8xf32>
    %c0_22 = arith.constant 0 : index
    %c48 = arith.constant 48 : index
    %61 = vector.load %arg17[%c0_22, %c48] : memref<8x96xf32, #tpu.memory_space<vmem>>, vector<8x8xf32>
    %c0_23 = arith.constant 0 : index
    %c80 = arith.constant 80 : index
    %62 = vector.load %arg17[%c0_23, %c80] : memref<8x96xf32, #tpu.memory_space<vmem>>, vector<8x8xf32>
    %63 = arith.truncf %60 : vector<8x8xf32> to vector<8x8xbf16>
    %64 = arith.truncf %61 : vector<8x8xf32> to vector<8x8xbf16>
    %cst_24 = arith.constant dense<0.000000e+00> : vector<8x8xf32>
    %65 = tpu.matmul %63, %64, %cst_24 {dimension_numbers = #tpu.dot_dimension_numbers<[1], [1], [0], [0], [0, 0, 1, 0], [], []>} : vector<8x8xbf16>, vector<8x8xbf16>, vector<8x8xf32> -> vector<8x8xf32>
    %66 = vector.broadcast %6 : vector<1x8xf32> to vector<8x8xf32>
    %67 = arith.addf %65, %66 : vector<8x8xf32>
    %cst_25 = arith.constant dense<0xFF800000> : vector<8xf32>
    %68 = vector.multi_reduction <maximumf>, %67, %cst_25 [1] : vector<8x8xf32> to vector<8xf32>
    %69 = vector.shape_cast %68 : vector<8xf32> to vector<8x1xf32>
    %70 = vector.broadcast %69 : vector<8x1xf32> to vector<8x8xf32>
    %71 = arith.subf %67, %70 : vector<8x8xf32>
    %72 = math.exp %71 : vector<8x8xf32>
    %cst_26 = arith.constant dense<0.000000e+00> : vector<8xf32>
    %73 = vector.multi_reduction <add>, %72, %cst_26 [1] : vector<8x8xf32> to vector<8xf32>
    %74 = vector.shape_cast %73 : vector<8xf32> to vector<8x1xf32>
    %75 = tpu.reciprocal %74 {approx = true} : vector<8x1xf32> -> vector<8x1xf32>
    %76 = vector.broadcast %75 : vector<8x1xf32> to vector<8x8xf32>
    %77 = arith.mulf %72, %76 : vector<8x8xf32>
    %78 = arith.truncf %77 : vector<8x8xf32> to vector<8x8xbf16>
    %79 = arith.truncf %62 : vector<8x8xf32> to vector<8x8xbf16>
    %cst_27 = arith.constant dense<0.000000e+00> : vector<8x8xf32>
    %80 = tpu.matmul %78, %79, %cst_27 {dimension_numbers = #tpu.dot_dimension_numbers<[1], [0], [0], [1], [0, 0, 1, 1], [], []>} : vector<8x8xbf16>, vector<8x8xbf16>, vector<8x8xf32> -> vector<8x8xf32>
    %c0_28 = arith.constant 0 : index
    %c16_29 = arith.constant 16 : index
    %81 = vector.load %arg18[%c0_28, %c16_29] : memref<8x32xf32, #tpu.memory_space<vmem>>, vector<8x8xf32>
    tpu.vector_store %arg18[%c0_28, %c16_29], %80 {strides = array<i32>} : memref<8x32xf32, #tpu.memory_space<vmem>>, vector<8x8xf32>,
    %82 = arith.index_cast %1 : i32 to index
    %c24 = arith.constant 24 : index
    %83 = vector.load %arg17[%82, %c24] : memref<8x96xf32, #tpu.memory_space<vmem>>, vector<8x8xf32>
    %cst_30 = arith.constant 0.353553385 : f32
    %84 = vector.broadcast %cst_30 : f32 to vector<8x8xf32>
    %85 = arith.mulf %83, %84 : vector<8x8xf32>
    %c0_31 = arith.constant 0 : index
    %c56 = arith.constant 56 : index
    %86 = vector.load %arg17[%c0_31, %c56] : memref<8x96xf32, #tpu.memory_space<vmem>>, vector<8x8xf32>
    %c0_32 = arith.constant 0 : index
    %c88 = arith.constant 88 : index
    %87 = vector.load %arg17[%c0_32, %c88] : memref<8x96xf32, #tpu.memory_space<vmem>>, vector<8x8xf32>
    %88 = arith.truncf %85 : vector<8x8xf32> to vector<8x8xbf16>
    %89 = arith.truncf %86 : vector<8x8xf32> to vector<8x8xbf16>
    %cst_33 = arith.constant dense<0.000000e+00> : vector<8x8xf32>
    %90 = tpu.matmul %88, %89, %cst_33 {dimension_numbers = #tpu.dot_dimension_numbers<[1], [1], [0], [0], [0, 0, 1, 0], [], []>} : vector<8x8xbf16>, vector<8x8xbf16>, vector<8x8xf32> -> vector<8x8xf32>
    %91 = vector.broadcast %6 : vector<1x8xf32> to vector<8x8xf32>
    %92 = arith.addf %90, %91 : vector<8x8xf32>
    %cst_34 = arith.constant dense<0xFF800000> : vector<8xf32>
    %93 = vector.multi_reduction <maximumf>, %92, %cst_34 [1] : vector<8x8xf32> to vector<8xf32>
    %94 = vector.shape_cast %93 : vector<8xf32> to vector<8x1xf32>
    %95 = vector.broadcast %94 : vector<8x1xf32> to vector<8x8xf32>
    %96 = arith.subf %92, %95 : vector<8x8xf32>
    %97 = math.exp %96 : vector<8x8xf32>
    %cst_35 = arith.constant dense<0.000000e+00> : vector<8xf32>
    %98 = vector.multi_reduction <add>, %97, %cst_35 [1] : vector<8x8xf32> to vector<8xf32>
    %99 = vector.shape_cast %98 : vector<8xf32> to vector<8x1xf32>
    %100 = tpu.reciprocal %99 {approx = true} : vector<8x1xf32> -> vector<8x1xf32>
    %101 = vector.broadcast %100 : vector<8x1xf32> to vector<8x8xf32>
    %102 = arith.mulf %97, %101 : vector<8x8xf32>
    %103 = arith.truncf %102 : vector<8x8xf32> to vector<8x8xbf16>
    %104 = arith.truncf %87 : vector<8x8xf32> to vector<8x8xbf16>
    %cst_36 = arith.constant dense<0.000000e+00> : vector<8x8xf32>
    %105 = tpu.matmul %103, %104, %cst_36 {dimension_numbers = #tpu.dot_dimension_numbers<[1], [0], [0], [1], [0, 0, 1, 1], [], []>} : vector<8x8xbf16>, vector<8x8xbf16>, vector<8x8xf32> -> vector<8x8xf32>
    %c0_37 = arith.constant 0 : index
    %c24_38 = arith.constant 24 : index
    %106 = vector.load %arg18[%c0_37, %c24_38] : memref<8x32xf32, #tpu.memory_space<vmem>>, vector<8x8xf32>
    tpu.vector_store %arg18[%c0_37, %c24_38], %105 {strides = array<i32>} : memref<8x32xf32, #tpu.memory_space<vmem>>, vector<8x8xf32>,
    %c0_39 = arith.constant 0 : index
    %c0_40 = arith.constant 0 : index
    %107 = vector.load %arg18[%c0_39, %c0_40] : memref<8x32xf32, #tpu.memory_space<vmem>>, vector<8x32xf32>
    %108 = arith.truncf %107 : vector<8x32xf32> to vector<8x32xbf16>
    %c0_41 = arith.constant 0 : index
    %c0_42 = arith.constant 0 : index
    %109 = vector.load %arg6[%c0_41, %c0_42] : memref<32x32xbf16, #tpu.memory_space<vmem>>, vector<32x32xbf16>
    %cst_43 = arith.constant dense<0.000000e+00> : vector<8x32xf32>
    %110 = tpu.matmul %108, %109, %cst_43 {dimension_numbers = #tpu.dot_dimension_numbers<[1], [0], [0], [1], [0, 0, 1, 1], [], []>} : vector<8x32xbf16>, vector<32x32xbf16>, vector<8x32xf32> -> vector<8x32xf32>
    %c0_44 = arith.constant 0 : index
    %c0_45 = arith.constant 0 : index
    %111 = vector.load %arg7[%c0_44, %c0_45] : memref<1x32xf32, #tpu.memory_space<vmem>>, vector<1x32xf32>
    %112 = vector.broadcast %111 : vector<1x32xf32> to vector<8x32xf32>
    %113 = arith.addf %110, %112 : vector<8x32xf32>
    %c0_46 = arith.constant 0 : index
    %114 = arith.index_cast %1 : i32 to index
    %c0_47 = arith.constant 0 : index
    %115 = vector.load %arg2[%c0_46, %114, %c0_47] : memref<1x8x32xf32, #tpu.memory_space<vmem>>, vector<1x8x32xf32>
    %116 = vector.shape_cast %115 : vector<1x8x32xf32> to vector<8x32xf32>
    %117 = arith.addf %113, %116 : vector<8x32xf32>
    %cst_48 = arith.constant dense<0.000000e+00> : vector<8xf32>
    %118 = vector.multi_reduction <add>, %117, %cst_48 [1] : vector<8x32xf32> to vector<8xf32>
    %119 = vector.shape_cast %118 : vector<8xf32> to vector<8x1xf32>
    %cst_49 = arith.constant 3.200000e+01 : f32
    %120 = vector.broadcast %cst_49 : f32 to vector<8x1xf32>
    %121 = arith.divf %119, %120 : vector<8x1xf32>
    %122 = vector.broadcast %121 : vector<8x1xf32> to vector<8x32xf32>
    %123 = arith.subf %117, %122 : vector<8x32xf32>
    %124 = arith.mulf %123, %123 : vector<8x32xf32>
    %cst_50 = arith.constant dense<0.000000e+00> : vector<8xf32>
    %125 = vector.multi_reduction <add>, %124, %cst_50 [1] : vector<8x32xf32> to vector<8xf32>
    %126 = vector.shape_cast %125 : vector<8xf32> to vector<8x1xf32>
    %cst_51 = arith.constant 3.200000e+01 : f32
    %127 = vector.broadcast %cst_51 : f32 to vector<8x1xf32>
    %128 = arith.divf %126, %127 : vector<8x1xf32>
    %cst_52 = arith.constant 9.99999974E-6 : f32
    %129 = vector.broadcast %cst_52 : f32 to vector<8x1xf32>
    %130 = arith.addf %128, %129 : vector<8x1xf32>
    %131 = math.rsqrt %130 : vector<8x1xf32>
    %132 = vector.broadcast %131 : vector<8x1xf32> to vector<8x32xf32>
    %133 = arith.mulf %123, %132 : vector<8x32xf32>
    %c0_53 = arith.constant 0 : index
    %c0_54 = arith.constant 0 : index
    %134 = vector.load %arg8[%c0_53, %c0_54] : memref<1x32xf32, #tpu.memory_space<vmem>>, vector<1x32xf32>
    %135 = vector.broadcast %134 : vector<1x32xf32> to vector<8x32xf32>
    %136 = arith.mulf %133, %135 : vector<8x32xf32>
    %c0_55 = arith.constant 0 : index
    %c0_56 = arith.constant 0 : index
    %137 = vector.load %arg9[%c0_55, %c0_56] : memref<1x32xf32, #tpu.memory_space<vmem>>, vector<1x32xf32>
    %138 = vector.broadcast %137 : vector<1x32xf32> to vector<8x32xf32>
    %139 = arith.addf %136, %138 : vector<8x32xf32>
    %140 = arith.truncf %139 : vector<8x32xf32> to vector<8x32xbf16>
    %c0_57 = arith.constant 0 : index
    %c0_58 = arith.constant 0 : index
    %141 = vector.load %arg10[%c0_57, %c0_58] : memref<32x64xbf16, #tpu.memory_space<vmem>>, vector<32x64xbf16>
    %cst_59 = arith.constant dense<0.000000e+00> : vector<8x64xf32>
    %142 = tpu.matmul %140, %141, %cst_59 {dimension_numbers = #tpu.dot_dimension_numbers<[1], [0], [0], [1], [0, 0, 1, 1], [], []>} : vector<8x32xbf16>, vector<32x64xbf16>, vector<8x64xf32> -> vector<8x64xf32>
    %c0_60 = arith.constant 0 : index
    %c0_61 = arith.constant 0 : index
    %143 = vector.load %arg11[%c0_60, %c0_61] : memref<1x64xf32, #tpu.memory_space<vmem>>, vector<1x64xf32>
    %144 = vector.broadcast %143 : vector<1x64xf32> to vector<8x64xf32>
    %145 = arith.addf %142, %144 : vector<8x64xf32>
    %cst_62 = arith.constant 0.000000e+00 : f32
    %146 = vector.broadcast %cst_62 : f32 to vector<8x64xf32>
    %147 = arith.maximumf %145, %146 : vector<8x64xf32>
    %148 = arith.truncf %147 : vector<8x64xf32> to vector<8x64xbf16>
    %c0_63 = arith.constant 0 : index
    %c0_64 = arith.constant 0 : index
    %149 = vector.load %arg12[%c0_63, %c0_64] : memref<64x32xbf16, #tpu.memory_space<vmem>>, vector<64x32xbf16>
    %cst_65 = arith.constant dense<0.000000e+00> : vector<8x32xf32>
    %150 = tpu.matmul %148, %149, %cst_65 {dimension_numbers = #tpu.dot_dimension_numbers<[1], [0], [0], [1], [0, 0, 1, 1], [], []>} : vector<8x64xbf16>, vector<64x32xbf16>, vector<8x32xf32> -> vector<8x32xf32>
    %c0_66 = arith.constant 0 : index
    %c0_67 = arith.constant 0 : index
    %151 = vector.load %arg13[%c0_66, %c0_67] : memref<1x32xf32, #tpu.memory_space<vmem>>, vector<1x32xf32>
    %152 = vector.broadcast %151 : vector<1x32xf32> to vector<8x32xf32>
    %153 = arith.addf %150, %152 : vector<8x32xf32>
    %154 = arith.addf %153, %139 : vector<8x32xf32>
    %cst_68 = arith.constant dense<0.000000e+00> : vector<8xf32>
    %155 = vector.multi_reduction <add>, %154, %cst_68 [1] : vector<8x32xf32> to vector<8xf32>
    %156 = vector.shape_cast %155 : vector<8xf32> to vector<8x1xf32>
    %cst_69 = arith.constant 3.200000e+01 : f32
    %157 = vector.broadcast %cst_69 : f32 to vector<8x1xf32>
    %158 = arith.divf %156, %157 : vector<8x1xf32>
    %159 = vector.broadcast %158 : vector<8x1xf32> to vector<8x32xf32>
    %160 = arith.subf %154, %159 : vector<8x32xf32>
    %161 = arith.mulf %160, %160 : vector<8x32xf32>
    %cst_70 = arith.constant dense<0.000000e+00> : vector<8xf32>
    %162 = vector.multi_reduction <add>, %161, %cst_70 [1] : vector<8x32xf32> to vector<8xf32>
    %163 = vector.shape_cast %162 : vector<8xf32> to vector<8x1xf32>
    %cst_71 = arith.constant 3.200000e+01 : f32
    %164 = vector.broadcast %cst_71 : f32 to vector<8x1xf32>
    %165 = arith.divf %163, %164 : vector<8x1xf32>
    %cst_72 = arith.constant 9.99999974E-6 : f32
    %166 = vector.broadcast %cst_72 : f32 to vector<8x1xf32>
    %167 = arith.addf %165, %166 : vector<8x1xf32>
    %168 = math.rsqrt %167 : vector<8x1xf32>
    %169 = vector.broadcast %168 : vector<8x1xf32> to vector<8x32xf32>
    %170 = arith.mulf %160, %169 : vector<8x32xf32>
    %c0_73 = arith.constant 0 : index
    %c0_74 = arith.constant 0 : index
    %171 = vector.load %arg14[%c0_73, %c0_74] : memref<1x32xf32, #tpu.memory_space<vmem>>, vector<1x32xf32>
    %172 = vector.broadcast %171 : vector<1x32xf32> to vector<8x32xf32>
    %173 = arith.mulf %170, %172 : vector<8x32xf32>
    %c0_75 = arith.constant 0 : index
    %c0_76 = arith.constant 0 : index
    %174 = vector.load %arg15[%c0_75, %c0_76] : memref<1x32xf32, #tpu.memory_space<vmem>>, vector<1x32xf32>
    %175 = vector.broadcast %174 : vector<1x32xf32> to vector<8x32xf32>
    %176 = arith.addf %173, %175 : vector<8x32xf32>
    %c0_77 = arith.constant 0 : index
    %c0_78 = arith.constant 0 : index
    %c0_79 = arith.constant 0 : index
    %177 = vector.load %arg16[%c0_77, %c0_78, %c0_79] : memref<1x8x32xf32, #tpu.memory_space<vmem>>, vector<1x8x32xf32>
    %178 = vector.shape_cast %177 : vector<1x8x32xf32> to vector<8x32xf32>
    %179 = vector.shape_cast %176 : vector<8x32xf32> to vector<1x8x32xf32>
    tpu.vector_store %arg16[%c0_77, %c0_78, %c0_79], %179 {strides = array<i32>} : memref<1x8x32xf32, #tpu.memory_space<vmem>>, vector<1x8x32xf32>,
    return
  }
  func.func @transform_0(%arg0: i32, %arg1: i32) -> (i32, i32, i32) {
    %c0_i32 = arith.constant 0 : i32
    %c0_i32_0 = arith.constant 0 : i32
    %c0_i32_1 = arith.constant 0 : i32
    return %arg0, %c0_i32, %c0_i32_0 : i32, i32, i32
  }
  func.func @transform_1(%arg0: i32, %arg1: i32) -> (i32, i32, i32) {
    %c0_i32 = arith.constant 0 : i32
    %c0_i32_0 = arith.constant 0 : i32
    %c0_i32_1 = arith.constant 0 : i32
    return %arg0, %c0_i32, %c0_i32_0 : i32, i32, i32
  }
  func.func @transform_2(%arg0: i32, %arg1: i32) -> (i32, i32) {
    %c0_i32 = arith.constant 0 : i32
    %c0_i32_0 = arith.constant 0 : i32
    %c0_i32_1 = arith.constant 0 : i32
    return %c0_i32, %c0_i32_0 : i32, i32
  }
  func.func @transform_3(%arg0: i32, %arg1: i32) -> (i32, i32) {
    %c0_i32 = arith.constant 0 : i32
    %c0_i32_0 = arith.constant 0 : i32
    %c0_i32_1 = arith.constant 0 : i32
    return %c0_i32, %c0_i32_0 : i32, i32
  }
  func.func @transform_4(%arg0: i32, %arg1: i32) -> (i32, i32) {
    %c0_i32 = arith.constant 0 : i32
    %c0_i32_0 = arith.constant 0 : i32
    %c0_i32_1 = arith.constant 0 : i32
    return %c0_i32, %c0_i32_0 : i32, i32
  }
  func.func @transform_5(%arg0: i32, %arg1: i32) -> (i32, i32) {
    %c0_i32 = arith.constant 0 : i32
    %c0_i32_0 = arith.constant 0 : i32
    %c0_i32_1 = arith.constant 0 : i32
    return %c0_i32, %c0_i32_0 : i32, i32
  }
  func.func @transform_6(%arg0: i32, %arg1: i32) -> (i32, i32) {
    %c0_i32 = arith.constant 0 : i32
    %c0_i32_0 = arith.constant 0 : i32
    %c0_i32_1 = arith.constant 0 : i32
    return %c0_i32, %c0_i32_0 : i32, i32
  }
  func.func @transform_7(%arg0: i32, %arg1: i32) -> (i32, i32) {
    %c0_i32 = arith.constant 0 : i32
    %c0_i32_0 = arith.constant 0 : i32
    %c0_i32_1 = arith.constant 0 : i32
    return %c0_i32, %c0_i32_0 : i32, i32
  }
  func.func @transform_8(%arg0: i32, %arg1: i32) -> (i32, i32) {
    %c0_i32 = arith.constant 0 : i32
    %c0_i32_0 = arith.constant 0 : i32
    %c0_i32_1 = arith.constant 0 : i32
    return %c0_i32, %c0_i32_0 : i32, i32
  }
  func.func @transform_9(%arg0: i32, %arg1: i32) -> (i32, i32) {
    %c0_i32 = arith.constant 0 : i32
    %c0_i32_0 = arith.constant 0 : i32
    %c0_i32_1 = arith.constant 0 : i32
    return %c0_i32, %c0_i32_0 : i32, i32
  }
  func.func @transform_10(%arg0: i32, %arg1: i32) -> (i32, i32) {
    %c0_i32 = arith.constant 0 : i32
    %c0_i32_0 = arith.constant 0 : i32
    %c0_i32_1 = arith.constant 0 : i32
    return %c0_i32, %c0_i32_0 : i32, i32
  }
  func.func @transform_11(%arg0: i32, %arg1: i32) -> (i32, i32) {
    %c0_i32 = arith.constant 0 : i32
    %c0_i32_0 = arith.constant 0 : i32
    %c0_i32_1 = arith.constant 0 : i32
    return %c0_i32, %c0_i32_0 : i32, i32
  }
  func.func @transform_12(%arg0: i32, %arg1: i32) -> (i32, i32) {
    %c0_i32 = arith.constant 0 : i32
    %c0_i32_0 = arith.constant 0 : i32
    %c0_i32_1 = arith.constant 0 : i32
    return %c0_i32, %c0_i32_0 : i32, i32
  }
  func.func @transform_13(%arg0: i32, %arg1: i32) -> (i32, i32) {
    %c0_i32 = arith.constant 0 : i32
    %c0_i32_0 = arith.constant 0 : i32
    %c0_i32_1 = arith.constant 0 : i32
    return %c0_i32, %c0_i32_0 : i32, i32
  }
  func.func @transform_14(%arg0: i32, %arg1: i32) -> (i32, i32, i32) {
    %c0_i32 = arith.constant 0 : i32
    %c0_i32_0 = arith.constant 0 : i32
    return %arg0, %arg1, %c0_i32 : i32, i32, i32
  }
}

</mosaic_0001>

<llo_original>
// kernel: transformer_encoder_stack.2
$region0: #{transformer_encoder_stack.2}
  #allocation0 [shape = 'u32[]', space=smem, size = 0x4, offset = 0x4, fixed_abs, tag = 'smem constant byte address 0x4 - core index']
  #allocation1 [shape = 'u32[144,128]{1,0:T(1,128)}', space=vmem, size = 0x12000, scoped, tag = 'internal scratch']
  #allocation2 [shape = 'f32[8,96]{1,0:T(8,128)}', space=vmem, size = 0x1000, scoped, tag = 'scratch operand']
  #allocation3 [shape = 'f32[8,32]{1,0:T(8,128)}', space=vmem, size = 0x1000, scoped, tag = 'scratch operand']
  %s0 = inlined_call_operand.vmem [shape: f32[2,8,32], index: 0, kind: input, shape index: {}]
  %s1 = inlined_call_operand.vmem [shape: f32[2,1,8], index: 1, kind: input, shape index: {}]
  %s2 = inlined_call_operand.vmem [shape: bf16[32,96], index: 2, kind: input, shape index: {}]
  %s3 = inlined_call_operand.vmem [shape: f32[1,96], index: 3, kind: input, shape index: {}]
  %s4 = inlined_call_operand.vmem [shape: bf16[32,32], index: 4, kind: input, shape index: {}]
  %s5 = inlined_call_operand.vmem [shape: f32[1,32], index: 5, kind: input, shape index: {}]
  %s6 = inlined_call_operand.vmem [shape: f32[1,32], index: 6, kind: input, shape index: {}]
  %s7 = inlined_call_operand.vmem [shape: f32[1,32], index: 7, kind: input, shape index: {}]
  %s8 = inlined_call_operand.vmem [shape: bf16[32,64], index: 8, kind: input, shape index: {}]
  %s9 = inlined_call_operand.vmem [shape: f32[1,64], index: 9, kind: input, shape index: {}]
  %s10 = inlined_call_operand.vmem [shape: bf16[64,32], index: 10, kind: input, shape index: {}]
  %s11 = inlined_call_operand.vmem [shape: f32[1,32], index: 11, kind: input, shape index: {}]
  %s12 = inlined_call_operand.vmem [shape: f32[1,32], index: 12, kind: input, shape index: {}]
  %s13 = inlined_call_operand.vmem [shape: f32[1,32], index: 13, kind: input, shape index: {}]
  %s14 = inlined_call_operand.vmem [shape: f32[2,8,32], index: 14, kind: output, shape index: {}]
  %s15 = sld [smem:[#allocation0]]
  $region93: #{transformer_encoder_stack.2} parent=0
    _
  %s17 = ssub.s32 1, %s15
  %s18 = scalar_select 0, %s17, %s15
  loop: start=0, step=1, limit=4
  $region2: #{transformer_encoder_stack.2} parent=0 // loop_pre_header
    _
  $region3: #{transformer_encoder_stack.2} parent=0 // loop_header
    %s20 = sphi 0, %s24
    %p21 = scmp.ge.s32.totalorder %s20, 4
    %s27 = sphi 0, %s39
    %s28 = sphi 0, %s35
    %s29 = sphi 0, %s27
    %s30 = sphi 0, %s28
    %s31 = sphi 0, %s29
    %s32 = sphi 0, %s30
    %s42 = sphi 0, %s44
    %s45 = sphi 0, %s42
    %s46 = sphi 0, %s45
    %s62 = sphi 0, %s46
    %s68 = sphi 0, %s70
    %s71 = sphi 0, %s68
    %s72 = sphi 0, %s71
    %s88 = sphi 0, %s72
    %s92 = sphi 0, %s92
    %s94 = sphi 0, %s92
    %s95 = sphi 0, %s94
    %s109 = sphi 0, %s95
    %s113 = sphi 0, %s113
    %s115 = sphi 0, %s113
    %s116 = sphi 0, %s115
    %s130 = sphi 0, %s116
    %s134 = sphi 0, %s134
    %s136 = sphi 0, %s134
    %s137 = sphi 0, %s136
    %s151 = sphi 0, %s137
    %s155 = sphi 0, %s155
    %s157 = sphi 0, %s155
    %s158 = sphi 0, %s157
    %s172 = sphi 0, %s158
    %s176 = sphi 0, %s176
    %s178 = sphi 0, %s176
    %s179 = sphi 0, %s178
    %s193 = sphi 0, %s179
    %s197 = sphi 0, %s197
    %s199 = sphi 0, %s197
    %s200 = sphi 0, %s199
    %s214 = sphi 0, %s200
    %s218 = sphi 0, %s218
    %s220 = sphi 0, %s218
    %s221 = sphi 0, %s220
    %s235 = sphi 0, %s221
    %s239 = sphi 0, %s239
    %s241 = sphi 0, %s239
    %s242 = sphi 0, %s241
    %s256 = sphi 0, %s242
    %s260 = sphi 0, %s260
    %s262 = sphi 0, %s260
    %s263 = sphi 0, %s262
    %s277 = sphi 0, %s263
    %s281 = sphi 0, %s281
    %s283 = sphi 0, %s281
    %s284 = sphi 0, %s283
    %s298 = sphi 0, %s284
    %s302 = sphi 0, %s302
    %s304 = sphi 0, %s302
    %s305 = sphi 0, %s304
    %s319 = sphi 0, %s305
    %s323 = sphi 0, %s323
    %s325 = sphi 0, %s323
    %s326 = sphi 0, %s325
    %s340 = sphi 0, %s326
    %s348 = sphi 0, %s350
    %s351 = sphi 0, %s348
    %s352 = sphi 0, %s351
    %s368 = sphi 0, %s352
  $region4: #{transformer_encoder_stack.2} parent=0 // loop_header_branch
    %23 = sbr.rel (%p21) target = $region8
  $region5: #{transformer_encoder_stack.2} parent=0 // loop_body
    %s25 = ssub.s32 %s20, 1
    %s26 = ssub.s32 %s20, 2
    %s33 = sadd.s32 1, %s28
    %p34 = scmp.ge.s32.totalorder %s33, 1
    %s35 = scalar_select %p34, 0, %s33
    %s36 = sadd.s32 1, %s27
    %s37 = scalar_select %p34, %s36, %s27
    %p38 = scmp.ge.s32.totalorder %s37, 2
    %s39 = scalar_select %p38, 0, %s37
    %s40 = ssub.s32 %s27, %s39
    %p41 = scmp.eq.s32.totalorder %s40, 0
    %s43 = sadd.s32 %s42, 1
    %s44 = scalar_select %p41, %s42, %s43
    %p47 = pneg %p41
    %p48 = scmp.eq.s32.totalorder %s20, 1
    %p49 = por %p47, %p48
    %p50 = scmp.ne.s32.totalorder %s42, %s45
    %p51 = scmp.eq.s32.totalorder %s20, 0
    %p52 = por %p50, %p51
    %p53 = scmp.ne.s32.totalorder %s42, %s45
    %p54 = scmp.eq.s32.totalorder %s25, 1
    %p55 = por %p53, %p54
    %p56 = scmp.ne.s32.totalorder %s45, %s46
    %p57 = scmp.eq.s32.totalorder %s25, 0
    %p58 = por %p56, %p57
    %p59 = scmp.ne.s32.totalorder %s45, %s46
    %p60 = scmp.eq.s32.totalorder %s26, 1
    %p61 = por %p59, %p60
    %p63 = scmp.ne.s32.totalorder %s46, %s62
    %p64 = scmp.eq.s32.totalorder %s26, 0
    %p65 = por %p63, %p64
    %s66 = ssub.s32 %s27, %s39
    %p67 = scmp.eq.s32.totalorder %s66, 0
    %s69 = sadd.s32 %s68, 1
    %s70 = scalar_select %p67, %s68, %s69
    %p73 = pneg %p67
    %p74 = scmp.eq.s32.totalorder %s20, 1
    %p75 = por %p73, %p74
    %p76 = scmp.ne.s32.totalorder %s68, %s71
    %p77 = scmp.eq.s32.totalorder %s20, 0
    %p78 = por %p76, %p77
    %p79 = scmp.ne.s32.totalorder %s68, %s71
    %p80 = scmp.eq.s32.totalorder %s25, 1
    %p81 = por %p79, %p80
    %p82 = scmp.ne.s32.totalorder %s71, %s72
    %p83 = scmp.eq.s32.totalorder %s25, 0
    %p84 = por %p82, %p83
    %p85 = scmp.ne.s32.totalorder %s71, %s72
    %p86 = scmp.eq.s32.totalorder %s26, 1
    %p87 = por %p85, %p86
    %p89 = scmp.ne.s32.totalorder %s72, %s88
    %p90 = scmp.eq.s32.totalorder %s26, 0
    %p91 = por %p89, %p90
    %s93 = sadd.s32 %s92, 1
    %p96 = scmp.eq.s32.totalorder %s20, 1
    %p97 = scmp.ne.s32.totalorder %s92, %s94
    %p98 = scmp.eq.s32.totalorder %s20, 0
    %p99 = por %p97, %p98
    %p100 = scmp.ne.s32.totalorder %s92, %s94
    %p101 = scmp.eq.s32.totalorder %s25, 1
    %p102 = por %p100, %p101
    %p103 = scmp.ne.s32.totalorder %s94, %s95
    %p104 = scmp.eq.s32.totalorder %s25, 0
    %p105 = por %p103, %p104
    %p106 = scmp.ne.s32.totalorder %s94, %s95
    %p107 = scmp.eq.s32.totalorder %s26, 1
    %p108 = por %p106, %p107
    %p110 = scmp.ne.s32.totalorder %s95, %s109
    %p111 = scmp.eq.s32.totalorder %s26, 0
    %p112 = por %p110, %p111
    %s114 = sadd.s32 %s113, 1
    %p117 = scmp.eq.s32.totalorder %s20, 1
    %p118 = scmp.ne.s32.totalorder %s113, %s115
    %p119 = scmp.eq.s32.totalorder %s20, 0
    %p120 = por %p118, %p119
    %p121 = scmp.ne.s32.totalorder %s113, %s115
    %p122 = scmp.eq.s32.totalorder %s25, 1
    %p123 = por %p121, %p122
    %p124 = scmp.ne.s32.totalorder %s115, %s116
    %p125 = scmp.eq.s32.totalorder %s25, 0
    %p126 = por %p124, %p125
    %p127 = scmp.ne.s32.totalorder %s115, %s116
    %p128 = scmp.eq.s32.totalorder %s26, 1
    %p129 = por %p127, %p128
    %p131 = scmp.ne.s32.totalorder %s116, %s130
    %p132 = scmp.eq.s32.totalorder %s26, 0
    %p133 = por %p131, %p132
    %s135 = sadd.s32 %s134, 1
    %p138 = scmp.eq.s32.totalorder %s20, 1
    %p139 = scmp.ne.s32.totalorder %s134, %s136
    %p140 = scmp.eq.s32.totalorder %s20, 0
    %p141 = por %p139, %p140
    %p142 = scmp.ne.s32.totalorder %s134, %s136
    %p143 = scmp.eq.s32.totalorder %s25, 1
    %p144 = por %p142, %p143
    %p145 = scmp.ne.s32.totalorder %s136, %s137
    %p146 = scmp.eq.s32.totalorder %s25, 0
    %p147 = por %p145, %p146
    %p148 = scmp.ne.s32.totalorder %s136, %s137
    %p149 = scmp.eq.s32.totalorder %s26, 1
    %p150 = por %p148, %p149
    %p152 = scmp.ne.s32.totalorder %s137, %s151
    %p153 = scmp.eq.s32.totalorder %s26, 0
    %p154 = por %p152, %p153
    %s156 = sadd.s32 %s155, 1
    %p159 = scmp.eq.s32.totalorder %s20, 1
    %p160 = scmp.ne.s32.totalorder %s155, %s157
    %p161 = scmp.eq.s32.totalorder %s20, 0
    %p162 = por %p160, %p161
    %p163 = scmp.ne.s32.totalorder %s155, %s157
    %p164 = scmp.eq.s32.totalorder %s25, 1
    %p165 = por %p163, %p164
    %p166 = scmp.ne.s32.totalorder %s157, %s158
    %p167 = scmp.eq.s32.totalorder %s25, 0
    %p168 = por %p166, %p167
    %p169 = scmp.ne.s32.totalorder %s157, %s158
    %p170 = scmp.eq.s32.totalorder %s26, 1
    %p171 = por %p169, %p170
    %p173 = scmp.ne.s32.totalorder %s158, %s172
    %p174 = scmp.eq.s32.totalorder %s26, 0
    %p175 = por %p173, %p174
    %s177 = sadd.s32 %s176, 1
    %p180 = scmp.eq.s32.totalorder %s20, 1
    %p181 = scmp.ne.s32.totalorder %s176, %s178
    %p182 = scmp.eq.s32.totalorder %s20, 0
    %p183 = por %p181, %p182
    %p184 = scmp.ne.s32.totalorder %s176, %s178
    %p185 = scmp.eq.s32.totalorder %s25, 1
    %p186 = por %p184, %p185
    %p187 = scmp.ne.s32.totalorder %s178, %s179
    %p188 = scmp.eq.s32.totalorder %s25, 0
    %p189 = por %p187, %p188
    %p190 = scmp.ne.s32.totalorder %s178, %s179
    %p191 = scmp.eq.s32.totalorder %s26, 1
    %p192 = por %p190, %p191
    %p194 = scmp.ne.s32.totalorder %s179, %s193
    %p195 = scmp.eq.s32.totalorder %s26, 0
    %p196 = por %p194, %p195
    %s198 = sadd.s32 %s197, 1
    %p201 = scmp.eq.s32.totalorder %s20, 1
    %p202 = scmp.ne.s32.totalorder %s197, %s199
    %p203 = scmp.eq.s32.totalorder %s20, 0
    %p204 = por %p202, %p203
    %p205 = scmp.ne.s32.totalorder %s197, %s199
    %p206 = scmp.eq.s32.totalorder %s25, 1
    %p207 = por %p205, %p206
    %p208 = scmp.ne.s32.totalorder %s199, %s200
    %p209 = scmp.eq.s32.totalorder %s25, 0
    %p210 = por %p208, %p209
    %p211 = scmp.ne.s32.totalorder %s199, %s200
    %p212 = scmp.eq.s32.totalorder %s26, 1
    %p213 = por %p211, %p212
    %p215 = scmp.ne.s32.totalorder %s200, %s214
    %p216 = scmp.eq.s32.totalorder %s26, 0
    %p217 = por %p215, %p216
    %s219 = sadd.s32 %s218, 1
    %p222 = scmp.eq.s32.totalorder %s20, 1
    %p223 = scmp.ne.s32.totalorder %s218, %s220
    %p224 = scmp.eq.s32.totalorder %s20, 0
    %p225 = por %p223, %p224
    %p226 = scmp.ne.s32.totalorder %s218, %s220
    %p227 = scmp.eq.s32.totalorder %s25, 1
    %p228 = por %p226, %p227
    %p229 = scmp.ne.s32.totalorder %s220, %s221
    %p230 = scmp.eq.s32.totalorder %s25, 0
    %p231 = por %p229, %p230
    %p232 = scmp.ne.s32.totalorder %s220, %s221
    %p233 = scmp.eq.s32.totalorder %s26, 1
    %p234 = por %p232, %p233
    %p236 = scmp.ne.s32.totalorder %s221, %s235
    %p237 = scmp.eq.s32.totalorder %s26, 0
    %p238 = por %p236, %p237
    %s240 = sadd.s32 %s239, 1
    %p243 = scmp.eq.s32.totalorder %s20, 1
    %p244 = scmp.ne.s32.totalorder %s239, %s241
    %p245 = scmp.eq.s32.totalorder %s20, 0
    %p246 = por %p244, %p245
    %p247 = scmp.ne.s32.totalorder %s239, %s241
    %p248 = scmp.eq.s32.totalorder %s25, 1
    %p249 = por %p247, %p248
    %p250 = scmp.ne.s32.totalorder %s241, %s242
    %p251 = scmp.eq.s32.totalorder %s25, 0
    %p252 = por %p250, %p251
    %p253 = scmp.ne.s32.totalorder %s241, %s242
    %p254 = scmp.eq.s32.totalorder %s26, 1
    %p255 = por %p253, %p254
    %p257 = scmp.ne.s32.totalorder %s242, %s256
    %p258 = scmp.eq.s32.totalorder %s26, 0
    %p259 = por %p257, %p258
    %s261 = sadd.s32 %s260, 1
    %p264 = scmp.eq.s32.totalorder %s20, 1
    %p265 = scmp.ne.s32.totalorder %s260, %s262
    %p266 = scmp.eq.s32.totalorder %s20, 0
    %p267 = por %p265, %p266
    %p268 = scmp.ne.s32.totalorder %s260, %s262
    %p269 = scmp.eq.s32.totalorder %s25, 1
    %p270 = por %p268, %p269
    %p271 = scmp.ne.s32.totalorder %s262, %s263
    %p272 = scmp.eq.s32.totalorder %s25, 0
    %p273 = por %p271, %p272
    %p274 = scmp.ne.s32.totalorder %s262, %s263
    %p275 = scmp.eq.s32.totalorder %s26, 1
    %p276 = por %p274, %p275
    %p278 = scmp.ne.s32.totalorder %s263, %s277
    %p279 = scmp.eq.s32.totalorder %s26, 0
    %p280 = por %p278, %p279
    %s282 = sadd.s32 %s281, 1
    %p285 = scmp.eq.s32.totalorder %s20, 1
    %p286 = scmp.ne.s32.totalorder %s281, %s283
    %p287 = scmp.eq.s32.totalorder %s20, 0
    %p288 = por %p286, %p287
    %p289 = scmp.ne.s32.totalorder %s281, %s283
    %p290 = scmp.eq.s32.totalorder %s25, 1
    %p291 = por %p289, %p290
    %p292 = scmp.ne.s32.totalorder %s283, %s284
    %p293 = scmp.eq.s32.totalorder %s25, 0
    %p294 = por %p292, %p293
    %p295 = scmp.ne.s32.totalorder %s283, %s284
    %p296 = scmp.eq.s32.totalorder %s26, 1
    %p297 = por %p295, %p296
    %p299 = scmp.ne.s32.totalorder %s284, %s298
    %p300 = scmp.eq.s32.totalorder %s26, 0
    %p301 = por %p299, %p300
    %s303 = sadd.s32 %s302, 1
    %p306 = scmp.eq.s32.totalorder %s20, 1
    %p307 = scmp.ne.s32.totalorder %s302, %s304
    %p308 = scmp.eq.s32.totalorder %s20, 0
    %p309 = por %p307, %p308
    %p310 = scmp.ne.s32.totalorder %s302, %s304
    %p311 = scmp.eq.s32.totalorder %s25, 1
    %p312 = por %p310, %p311
    %p313 = scmp.ne.s32.totalorder %s304, %s305
    %p314 = scmp.eq.s32.totalorder %s25, 0
    %p315 = por %p313, %p314
    %p316 = scmp.ne.s32.totalorder %s304, %s305
    %p317 = scmp.eq.s32.totalorder %s26, 1
    %p318 = por %p316, %p317
    %p320 = scmp.ne.s32.totalorder %s305, %s319
    %p321 = scmp.eq.s32.totalorder %s26, 0
    %p322 = por %p320, %p321
    %s324 = sadd.s32 %s323, 1
    %p327 = scmp.eq.s32.totalorder %s20, 1
    %p328 = scmp.ne.s32.totalorder %s323, %s325
    %p329 = scmp.eq.s32.totalorder %s20, 0
    %p330 = por %p328, %p329
    %p331 = scmp.ne.s32.totalorder %s323, %s325
    %p332 = scmp.eq.s32.totalorder %s25, 1
    %p333 = por %p331, %p332
    %p334 = scmp.ne.s32.totalorder %s325, %s326
    %p335 = scmp.eq.s32.totalorder %s25, 0
    %p336 = por %p334, %p335
    %p337 = scmp.ne.s32.totalorder %s325, %s326
    %p338 = scmp.eq.s32.totalorder %s26, 1
    %p339 = por %p337, %p338
    %p341 = scmp.ne.s32.totalorder %s326, %s340
    %p342 = scmp.eq.s32.totalorder %s26, 0
    %p343 = por %p341, %p342
    %s344 = ssub.s32 %s27, %s39
    %s345 = ssub.s32 %s28, %s35
    %s346 = sor.u32 %s344, %s345
    %p347 = scmp.eq.s32.totalorder %s346, 0
    %s349 = sadd.s32 %s348, 1
    %s350 = scalar_select %p347, %s348, %s349
    %p353 = pneg %p347
    %p354 = scmp.eq.s32.totalorder %s20, 1
    %p355 = por %p353, %p354
    %p356 = scmp.ne.s32.totalorder %s348, %s351
    %p357 = scmp.eq.s32.totalorder %s20, 0
    %p358 = por %p356, %p357
    %p359 = scmp.ne.s32.totalorder %s348, %s351
    %p360 = scmp.eq.s32.totalorder %s25, 1
    %p361 = por %p359, %p360
    %p362 = scmp.ne.s32.totalorder %s351, %s352
    %p363 = scmp.eq.s32.totalorder %s25, 0
    %p364 = por %p362, %p363
    %p365 = scmp.ne.s32.totalorder %s351, %s352
    %p366 = scmp.eq.s32.totalorder %s26, 1
    %p367 = por %p365, %p366
    %p369 = scmp.ne.s32.totalorder %s352, %s368
    %p370 = scmp.eq.s32.totalorder %s26, 0
    %p371 = por %p369, %p370
    %p372 = scmp.le.s32.totalorder 1, %s20
    %p373 = scmp.lt.s32.totalorder %s20, 3
    %p374 = pnand %p372, %p373
    %p375 = pneg %p374
    // Predicated region
    $region9: #{transformer_encoder_stack.2} parent=5 // pred_check
      _
    $region10: #{transformer_encoder_stack.2} parent=5 // pred_check_branch
      %377 = sbr.rel (%p374) target = $region12
    $region11: #{transformer_encoder_stack.2} parent=5 // pred_region
      %s378 = ssub.s32 %s20, 1
      // Predicated region
      $region13: #{transformer_encoder_stack.2} parent=11 // pred_check
        %p379 = pneg %p105
      $region14: #{transformer_encoder_stack.2} parent=11 // pred_check_branch
        %381 = sbr.rel (%p379) target = $region16
      $region15: #{transformer_encoder_stack.2} parent=11 // pred_region
        _
      $region16: #{transformer_encoder_stack.2} parent=11 // pred_fallthru
        _
      // Predicated region
      $region17: #{transformer_encoder_stack.2} parent=11 // pred_check
        %p382 = pneg %p126
      $region18: #{transformer_encoder_stack.2} parent=11 // pred_check_branch
        %384 = sbr.rel (%p382) target = $region20
      $region19: #{transformer_encoder_stack.2} parent=11 // pred_region
        _
      $region20: #{transformer_encoder_stack.2} parent=11 // pred_fallthru
        _
      // Predicated region
      $region21: #{transformer_encoder_stack.2} parent=11 // pred_check
        %p385 = pneg %p147
      $region22: #{transformer_encoder_stack.2} parent=11 // pred_check_branch
        %387 = sbr.rel (%p385) target = $region24
      $region23: #{transformer_encoder_stack.2} parent=11 // pred_region
        _
      $region24: #{transformer_encoder_stack.2} parent=11 // pred_fallthru
        _
      // Predicated region
      $region25: #{transformer_encoder_stack.2} parent=11 // pred_check
        %p388 = pneg %p168
      $region26: #{transformer_encoder_stack.2} parent=11 // pred_check_branch
        %390 = sbr.rel (%p388) target = $region28
      $region27: #{transformer_encoder_stack.2} parent=11 // pred_region
        _
      $region28: #{transformer_encoder_stack.2} parent=11 // pred_fallthru
        _
      // Predicated region
      $region29: #{transformer_encoder_stack.2} parent=11 // pred_check
        %p391 = pneg %p189
      $region30: #{transformer_encoder_stack.2} parent=11 // pred_check_branch
        %393 = sbr.rel (%p391) target = $region32
      $region31: #{transformer_encoder_stack.2} parent=11 // pred_region
        _
      $region32: #{transformer_encoder_stack.2} parent=11 // pred_fallthru
        _
      // Predicated region
      $region33: #{transformer_encoder_stack.2} parent=11 // pred_check
        %p394 = pneg %p210
      $region34: #{transformer_encoder_stack.2} parent=11 // pred_check_branch
        %396 = sbr.rel (%p394) target = $region36
      $region35: #{transformer_encoder_stack.2} parent=11 // pred_region
        _
      $region36: #{transformer_encoder_stack.2} parent=11 // pred_fallthru
        _
      // Predicated region
      $region37: #{transformer_encoder_stack.2} parent=11 // pred_check
        %p397 = pneg %p231
      $region38: #{transformer_encoder_stack.2} parent=11 // pred_check_branch
        %399 = sbr.rel (%p397) target = $region40
      $region39: #{transformer_encoder_stack.2} parent=11 // pred_region
        _
      $region40: #{transformer_encoder_stack.2} parent=11 // pred_fallthru
        _
      // Predicated region
      $region41: #{transformer_encoder_stack.2} parent=11 // pred_check
        %p400 = pneg %p252
      $region42: #{transformer_encoder_stack.2} parent=11 // pred_check_branch
        %402 = sbr.rel (%p400) target = $region44
      $region43: #{transformer_encoder_stack.2} parent=11 // pred_region
        _
      $region44: #{transformer_encoder_stack.2} parent=11 // pred_fallthru
        _
      // Predicated region
      $region45: #{transformer_encoder_stack.2} parent=11 // pred_check
        %p403 = pneg %p273
      $region46: #{transformer_encoder_stack.2} parent=11 // pred_check_branch
        %405 = sbr.rel (%p403) target = $region48
      $region47: #{transformer_encoder_stack.2} parent=11 // pred_region
        _
      $region48: #{transformer_encoder_stack.2} parent=11 // pred_fallthru
        _
      // Predicated region
      $region49: #{transformer_encoder_stack.2} parent=11 // pred_check
        %p406 = pneg %p294
      $region50: #{transformer_encoder_stack.2} parent=11 // pred_check_branch
        %408 = sbr.rel (%p406) target = $region52
      $region51: #{transformer_encoder_stack.2} parent=11 // pred_region
        _
      $region52: #{transformer_encoder_stack.2} parent=11 // pred_fallthru
        _
      // Predicated region
      $region53: #{transformer_encoder_stack.2} parent=11 // pred_check
        %p409 = pneg %p315
      $region54: #{transformer_encoder_stack.2} parent=11 // pred_check_branch
        %411 = sbr.rel (%p409) target = $region56
      $region55: #{transformer_encoder_stack.2} parent=11 // pred_region
        _
      $region56: #{transformer_encoder_stack.2} parent=11 // pred_fallthru
        _
      // Predicated region
      $region57: #{transformer_encoder_stack.2} parent=11 // pred_check
        %p412 = pneg %p336
      $region58: #{transformer_encoder_stack.2} parent=11 // pred_check_branch
        %414 = sbr.rel (%p412) target = $region60
      $region59: #{transformer_encoder_stack.2} parent=11 // pred_region
        _
      $region60: #{transformer_encoder_stack.2} parent=11 // pred_fallthru
        _
    $region12: #{transformer_encoder_stack.2} parent=5 // pred_fallthru
      _
    %p415 = scmp.lt.s32.totalorder %s20, 2
    // Predicated region
    $region61: #{transformer_encoder_stack.2} parent=5 // pred_check
      %p416 = pneg %p415
    $region62: #{transformer_encoder_stack.2} parent=5 // pred_check_branch
      %418 = sbr.rel (%p416) target = $region64
    $region63: #{transformer_encoder_stack.2} parent=5 // pred_region
      // Predicated region
      $region65: #{transformer_encoder_stack.2} parent=63 // pred_check
        %p419 = pneg %p52
      $region66: #{transformer_encoder_stack.2} parent=63 // pred_check_branch
        %421 = sbr.rel (%p419) target = $region68
      $region67: #{transformer_encoder_stack.2} parent=63 // pred_region
        %p422 = scmp.lt.s32.totalorder %s27, 1
        %s423 = scalar_select %p422, %s27, 1
        %s424 = smul.addr %s423, 8
        %s425 = scalar_lea.vmem %s0, %s424
      $region68: #{transformer_encoder_stack.2} parent=63 // pred_fallthru
        _
      // Predicated region
      $region69: #{transformer_encoder_stack.2} parent=63 // pred_check
        %p426 = pneg %p78
      $region70: #{transformer_encoder_stack.2} parent=63 // pred_check_branch
        %428 = sbr.rel (%p426) target = $region72
      $region71: #{transformer_encoder_stack.2} parent=63 // pred_region
        %p429 = scmp.lt.s32.totalorder %s27, 1
        %s430 = scalar_select %p429, %s27, 1
        %s431 = scalar_lea.vmem %s1, %s430
      $region72: #{transformer_encoder_stack.2} parent=63 // pred_fallthru
        _
    $region64: #{transformer_encoder_stack.2} parent=5 // pred_fallthru
      _
    %p432 = scmp.le.s32.totalorder 1, %s20
    %p433 = scmp.lt.s32.totalorder %s20, 3
    %p434 = pnand %p432, %p433
    %p435 = pneg %p434
    // Predicated region
    $region73: #{transformer_encoder_stack.2} parent=5 // pred_check
      _
    $region74: #{transformer_encoder_stack.2} parent=5 // pred_check_branch
      %437 = sbr.rel (%p434) target = $region76
    $region75: #{transformer_encoder_stack.2} parent=5 // pred_region
      %s438 = ssub.s32 %s20, 1
      %p439 = scmp.lt.s32.totalorder %s29, 1
      %s440 = scalar_select %p439, %s29, 1
      %s441 = smul.addr %s440, 8
      %s442 = scalar_lea.vmem %s0, %s441
      %p443 = pneg %p58
      %p444 = pneg %p55
      %p445 = scmp.lt.s32.totalorder %s29, 1
      %s446 = scalar_select %p445, %s29, 1
      %s447 = scalar_lea.vmem %s1, %s446
      %p448 = pneg %p84
      %p449 = pneg %p81
      %p450 = pneg %p105
      %p451 = pneg %p102
      %p452 = pneg %p126
      %p453 = pneg %p123
      %p454 = pneg %p147
      %p455 = pneg %p144
      %p456 = pneg %p168
      %p457 = pneg %p165
      %p458 = pneg %p189
      %p459 = pneg %p186
      %p460 = pneg %p210
      %p461 = pneg %p207
      %p462 = pneg %p231
      %p463 = pneg %p228
      %p464 = pneg %p252
      %p465 = pneg %p249
      %p466 = pneg %p273
      %p467 = pneg %p270
      %p468 = pneg %p294
      %p469 = pneg %p291
      %p470 = pneg %p315
      %p471 = pneg %p312
      %p472 = pneg %p336
      %p473 = pneg %p333
      %p474 = pneg %p364
      %p475 = pneg %p361
      %p476 = scmp.lt.s32.totalorder %s29, 1
      %s477 = scalar_select %p476, %s29, 1
      %p478 = scmp.lt.s32.totalorder %s30, 0
      %s479 = scalar_select %p478, %s30, 0
      %s480 = sadd.s32 %s479, %s477
      %s481 = smul.addr %s480, 8
      %s482 = scalar_lea.vmem %s14, %s481
      %p483 = scmp.lt.s32.totalorder %s29, 1
      %s484 = scalar_select %p483, %s29, 1
      %s485 = smul.addr %s484, 8
      %s486 = scalar_lea.vmem %s0, %s485
      %p487 = scmp.lt.s32.totalorder %s29, 1
      %s488 = scalar_select %p487, %s29, 1
      %s489 = scalar_lea.vmem %s1, %s488
      %p490 = scmp.lt.s32.totalorder %s29, 1
      %s491 = scalar_select %p490, %s29, 1
      %p492 = scmp.lt.s32.totalorder %s30, 0
      %s493 = scalar_select %p492, %s30, 0
      %s494 = sadd.s32 %s493, %s491
      %s495 = smul.addr %s494, 8
      %s496 = scalar_lea.vmem %s14, %s495
      %s498 = smul.u32 %s30, 8
      %p499 = scmp.eq.s32.totalorder %s30, 0
      // Predicated region
      $region77: #{transformer_encoder_stack.2} parent=75 // pred_check
        %p500 = pneg %p499
      $region78: #{transformer_encoder_stack.2} parent=75 // pred_check_branch
        %502 = sbr.rel (%p500) target = $region80
      $region79: #{transformer_encoder_stack.2} parent=75 // pred_region
        %v503 = vld [vmem:[%s486] sm:$0xff]
        %v504 = vpack.c.bf16 %v503, %v503
        %v505 = vld [vmem:[%s2] sm:$0xf]
        %v506 = vld [vmem:[%s2 + $0x4] sm:$0xf]
        %v507 = vld [vmem:[%s2 + $0x8] sm:$0xf]
        %v508 = vld [vmem:[%s2 + $0xc] sm:$0xf]
        %v509 = vld [vmem:[%s3] sm:$0x1]
        %v511 = vlaneseq
        %v512 = vshrl.u32 %v511, 7
        %v513 = vsub.s32 0, %v512
        %v514 = vrot.slane %v509, %v513
        %v520 = vunpack.c.l.b16 %v505
        %v521 = vunpack.c.l.b16 %v506
        %v522 = vunpack.c.l.b16 %v507
        %v523 = vunpack.c.l.b16 %v508
        %v524 = vpack.c.b16 %v521, %v520
        %v525 = vpack.c.b16 %v523, %v522
        %vm528 = vcmask 261120
        %v530 = vsel %vm528, %v504, 0
        %532 = vmatprep.subr.bf16.mxu0 0
        %533 = vmatpush1.bf16.msra.mxu0 0
        %534 = vmatprep.subr.bf16.mxu0 0
        %535 = vmatpush1.bf16.msra.mxu0 0
        %536 = vmatprep.subr.bf16.mxu0 0
        %537 = vmatpush1.bf16.msra.mxu0 0
        %538 = vmatprep.subr.bf16.mxu0 0
        %539 = vmatpush1.bf16.msra.mxu0 0
        %540 = vmatprep.subr.bf16.mxu0 0
        %541 = vmatpush1.bf16.msra.mxu0 0
        %542 = vmatprep.subr.bf16.mxu0 0
        %543 = vmatpush1.bf16.msra.mxu0 0
        %544 = vmatprep.subr.bf16.mxu0 0
        %545 = vmatpush1.bf16.msra.mxu0 %v525
        %546 = vmatprep.subr.bf16.mxu0 0
        %547 = vmatpush1.bf16.msra.mxu0 %v524
        %548 = vmatprep.subr.bf16.mxu0 0
        %549 = vmatpush2.bf16.msra.mxu0 0
        %550 = vmatprep.subr.bf16.mxu0 0
        %551 = vmatpush2.bf16.msra.mxu0 0
        %552 = vmatprep.subr.bf16.mxu0 0
        %553 = vmatpush2.bf16.msra.mxu0 0
        %554 = vmatprep.subr.bf16.mxu0 0
        %555 = vmatpush2.bf16.msra.mxu0 0
        %556 = vmatprep.subr.bf16.mxu0 0
        %557 = vmatpush2.bf16.msra.mxu0 0
        %558 = vmatprep.subr.bf16.mxu0 0
        %559 = vmatpush2.bf16.msra.mxu0 0
        %560 = vmatprep.subr.bf16.mxu0 0
        %561 = vmatpush2.bf16.msra.mxu0 0
        %562 = vmatprep.subr.bf16.mxu0 0
        %563 = vmatpush2.bf16.msra.mxu0 0
        %564 = vmatprep.mubr.bf16.mxu0 0
        %565 = vmatmul.mubr.bf16.gmra.mxu0 %v530
        %v566 = vpop.f32.mrf.mxu0
        %v567 = vadd.f32 %v514, %v566
        %v568 = vpop.f32.mrf.mxu0
        %v569 = vpop.f32.mrf.mxu0
        %v570 = vpop.f32.mrf.mxu0
        %571 = vdwg.mxu0
        %vm572 = vcmask 785408
        %573 = vst.msk [vmem:[#allocation2] sm:$0xff] %vm572, %v567
      $region80: #{transformer_encoder_stack.2} parent=75 // pred_fallthru
        _
      %v574 = vld [vmem:[%s489] sm:$0x1]
      %s575 = scalar_lea.vmem [#allocation2], %s498
      %v576 = vld [vmem:[%s575] sm:$0xff]
      %v577 = vmul.f32 %v576, 0.35355338
      %v578 = vld [vmem:[#allocation2] sm:$0xff]
      %v579 = vpack.c.bf16 %v577, %v577
      %v580 = vpack.c.bf16 %v578, %v578
      %v582 = vlaneseq
      %v583 = vshrl.u32 %v582, 7
      %v584 = vsub.s32 0, %v583
      %v585 = vrot.slane %v574, %v584
      %588 = vrot.lane.b32.xlu0 %v580, 96
      %v589 = vpop.permute.xlu0 %588
      %vm590 = vcmask 64512
      %v592 = vsel %vm590, %v579, 0
      %v595 = vsel %vm590, %v589, 0
      %597 = vmatprep.subr.bf16.mxu0 0
      %598 = vmatpush1.bf16.xpose.msra.mxu0 0
      %599 = vmatprep.subr.bf16.mxu0 0
      %600 = vmatpush1.bf16.xpose.msra.mxu0 0
      %601 = vmatprep.subr.bf16.mxu0 0
      %602 = vmatpush1.bf16.xpose.msra.mxu0 0
      %603 = vmatprep.subr.bf16.mxu0 0
      %604 = vmatpush1.bf16.xpose.msra.mxu0 0
      %605 = vmatprep.subr.bf16.mxu0 0
      %606 = vmatpush1.bf16.xpose.msra.mxu0 0
      %607 = vmatprep.subr.bf16.mxu0 0
      %608 = vmatpush1.bf16.xpose.msra.mxu0 0
      %609 = vmatprep.subr.bf16.mxu0 0
      %610 = vmatpush1.bf16.xpose.msra.mxu0 0
      %611 = vmatprep.subr.bf16.mxu0 0
      %612 = vmatpush1.bf16.xpose.msra.mxu0 %v595
      %613 = vmatprep.subr.bf16.mxu0 0
      %614 = vmatpush2.bf16.xpose.msra.mxu0 0
      %615 = vmatprep.subr.bf16.mxu0 0
      %616 = vmatpush2.bf16.xpose.msra.mxu0 0
      %617 = vmatprep.subr.bf16.mxu0 0
      %618 = vmatpush2.bf16.xpose.msra.mxu0 0
      %619 = vmatprep.subr.bf16.mxu0 0
      %620 = vmatpush2.bf16.xpose.msra.mxu0 0
      %621 = vmatprep.subr.bf16.mxu0 0
      %622 = vmatpush2.bf16.xpose.msra.mxu0 0
      %623 = vmatprep.subr.bf16.mxu0 0
      %624 = vmatpush2.bf16.xpose.msra.mxu0 0
      %625 = vmatprep.subr.bf16.mxu0 0
      %626 = vmatpush2.bf16.xpose.msra.mxu0 0
      %627 = vmatprep.subr.bf16.mxu0 0
      %628 = vmatpush2.bf16.xpose.msra.mxu0 0
      %629 = vmatprep.mubr.bf16.mxu0 0
      %630 = vmatmul.mubr.bf16.gmra.mxu0 %v592
      %v631 = vpop.f32.mrf.mxu0
      %v632 = vadd.f32 %v585, %v631
      %v633 = vpop.f32.mrf.mxu0
      %v634 = vpop.f32.mrf.mxu0
      %v635 = vpop.f32.mrf.mxu0
      %636 = vdwg.mxu0
      %v637 = vsel %vm590, %v632, -inf
      %638 = vmax.xlane.f32.xlu0 %v637
      %v639 = vpop.xlane.xlu0 %638
      %v640 = vsub.f32 %v632, %v639
      %v641 = vmul.f32 %v640, 1.442695
      %v642 = vpow.pop %v641
      %v643 = vsel %vm590, %v642, 0.0
      %644 = vadd.xlane.f32.xlu0 %v643
      %v645 = vpop.xlane.xlu0 %644
      %v646 = vrcp.pop %v645
      %v647 = vmul.f32 %v642, %v646
      %v648 = vpack.c.bf16 %v647, %v647
      %649 = vrot.lane.b32.xlu0 %v580, 64
      %v650 = vpop.permute.xlu0 %649
      %v652 = vsel %vm590, %v648, 0
      %vm654 = vcmask 1043456
      %v656 = vsel %vm654, %v650, 0
      %658 = vmatprep.subr.bf16.mxu0 0
      %659 = vmatpush1.bf16.msra.mxu0 0
      %660 = vmatprep.subr.bf16.mxu0 0
      %661 = vmatpush1.bf16.msra.mxu0 0
      %662 = vmatprep.subr.bf16.mxu0 0
      %663 = vmatpush1.bf16.msra.mxu0 0
      %664 = vmatprep.subr.bf16.mxu0 0
      %665 = vmatpush1.bf16.msra.mxu0 0
      %666 = vmatprep.subr.bf16.mxu0 0
      %667 = vmatpush1.bf16.msra.mxu0 0
      %668 = vmatprep.subr.bf16.mxu0 0
      %669 = vmatpush1.bf16.msra.mxu0 0
      %670 = vmatprep.subr.bf16.mxu0 0
      %671 = vmatpush1.bf16.msra.mxu0 0
      %672 = vmatprep.subr.bf16.mxu0 0
      %673 = vmatpush1.bf16.msra.mxu0 %v656
      %674 = vmatprep.subr.bf16.mxu0 0
      %675 = vmatpush2.bf16.msra.mxu0 0
      %676 = vmatprep.subr.bf16.mxu0 0
      %677 = vmatpush2.bf16.msra.mxu0 0
      %678 = vmatprep.subr.bf16.mxu0 0
      %679 = vmatpush2.bf16.msra.mxu0 0
      %680 = vmatprep.subr.bf16.mxu0 0
      %681 = vmatpush2.bf16.msra.mxu0 0
      %682 = vmatprep.subr.bf16.mxu0 0
      %683 = vmatpush2.bf16.msra.mxu0 0
      %684 = vmatprep.subr.bf16.mxu0 0
      %685 = vmatpush2.bf16.msra.mxu0 0
      %686 = vmatprep.subr.bf16.mxu0 0
      %687 = vmatpush2.bf16.msra.mxu0 0
      %688 = vmatprep.subr.bf16.mxu0 0
      %689 = vmatpush2.bf16.msra.mxu0 0
      %690 = vmatprep.mubr.bf16.mxu0 0
      %691 = vmatmul.mubr.bf16.gmra.mxu0 %v652
      %v692 = vpop.f32.mrf.mxu0
      %v693 = vadd.f32 0.0, %v692
      %v694 = vpop.f32.mrf.mxu0
      %v695 = vpop.f32.mrf.mxu0
      %v696 = vpop.f32.mrf.mxu0
      %697 = vdwg.mxu0
      %698 = vst.msk [vmem:[#allocation3] sm:$0xff] %vm590, %v693
      %v699 = vld [vmem:[%s575] sm:$0xff]
      %v700 = vmul.f32 %v699, 0.35355338
      %v701 = vld [vmem:[#allocation2] sm:$0xff]
      %v702 = vpack.c.bf16 %v700, %v700
      %v703 = vpack.c.bf16 %v701, %v701
      %705 = vrot.lane.b32.xlu0 %v702, 120
      %v706 = vpop.permute.xlu0 %705
      %708 = vrot.lane.b32.xlu0 %v703, 88
      %v709 = vpop.permute.xlu0 %708
      %v711 = vsel %vm590, %v706, 0
      %v714 = vsel %vm590, %v709, 0
      %716 = vmatprep.subr.bf16.mxu0 0
      %717 = vmatpush1.bf16.xpose.msra.mxu0 0
      %718 = vmatprep.subr.bf16.mxu0 0
      %719 = vmatpush1.bf16.xpose.msra.mxu0 0
      %720 = vmatprep.subr.bf16.mxu0 0
      %721 = vmatpush1.bf16.xpose.msra.mxu0 0
      %722 = vmatprep.subr.bf16.mxu0 0
      %723 = vmatpush1.bf16.xpose.msra.mxu0 0
      %724 = vmatprep.subr.bf16.mxu0 0
      %725 = vmatpush1.bf16.xpose.msra.mxu0 0
      %726 = vmatprep.subr.bf16.mxu0 0
      %727 = vmatpush1.bf16.xpose.msra.mxu0 0
      %728 = vmatprep.subr.bf16.mxu0 0
      %729 = vmatpush1.bf16.xpose.msra.mxu0 0
      %730 = vmatprep.subr.bf16.mxu0 0
      %731 = vmatpush1.bf16.xpose.msra.mxu0 %v714
      %732 = vmatprep.subr.bf16.mxu0 0
      %733 = vmatpush2.bf16.xpose.msra.mxu0 0
      %734 = vmatprep.subr.bf16.mxu0 0
      %735 = vmatpush2.bf16.xpose.msra.mxu0 0
      %736 = vmatprep.subr.bf16.mxu0 0
      %737 = vmatpush2.bf16.xpose.msra.mxu0 0
      %738 = vmatprep.subr.bf16.mxu0 0
      %739 = vmatpush2.bf16.xpose.msra.mxu0 0
      %740 = vmatprep.subr.bf16.mxu0 0
      %741 = vmatpush2.bf16.xpose.msra.mxu0 0
      %742 = vmatprep.subr.bf16.mxu0 0
      %743 = vmatpush2.bf16.xpose.msra.mxu0 0
      %744 = vmatprep.subr.bf16.mxu0 0
      %745 = vmatpush2.bf16.xpose.msra.mxu0 0
      %746 = vmatprep.subr.bf16.mxu0 0
      %747 = vmatpush2.bf16.xpose.msra.mxu0 0
      %748 = vmatprep.mubr.bf16.mxu0 0
      %749 = vmatmul.mubr.bf16.gmra.mxu0 %v711
      %v750 = vpop.f32.mrf.mxu0
      %v751 = vadd.f32 %v585, %v750
      %v752 = vpop.f32.mrf.mxu0
      %v753 = vpop.f32.mrf.mxu0
      %v754 = vpop.f32.mrf.mxu0
      %755 = vdwg.mxu0
      %v756 = vsel %vm590, %v751, -inf
      %757 = vmax.xlane.f32.xlu0 %v756
      %v758 = vpop.xlane.xlu0 %757
      %v759 = vsub.f32 %v751, %v758
      %v760 = vmul.f32 %v759, 1.442695
      %v761 = vpow.pop %v760
      %v762 = vsel %vm590, %v761, 0.0
      %763 = vadd.xlane.f32.xlu0 %v762
      %v764 = vpop.xlane.xlu0 %763
      %v765 = vrcp.pop %v764
      %v766 = vmul.f32 %v761, %v765
      %v767 = vpack.c.bf16 %v766, %v766
      %768 = vrot.lane.b32.xlu0 %v703, 56
      %v769 = vpop.permute.xlu0 %768
      %v771 = vsel %vm590, %v767, 0
      %v774 = vsel %vm654, %v769, 0
      %776 = vmatprep.subr.bf16.mxu0 0
      %777 = vmatpush1.bf16.msra.mxu0 0
      %778 = vmatprep.subr.bf16.mxu0 0
      %779 = vmatpush1.bf16.msra.mxu0 0
      %780 = vmatprep.subr.bf16.mxu0 0
      %781 = vmatpush1.bf16.msra.mxu0 0
      %782 = vmatprep.subr.bf16.mxu0 0
      %783 = vmatpush1.bf16.msra.mxu0 0
      %784 = vmatprep.subr.bf16.mxu0 0
      %785 = vmatpush1.bf16.msra.mxu0 0
      %786 = vmatprep.subr.bf16.mxu0 0
      %787 = vmatpush1.bf16.msra.mxu0 0
      %788 = vmatprep.subr.bf16.mxu0 0
      %789 = vmatpush1.bf16.msra.mxu0 0
      %790 = vmatprep.subr.bf16.mxu0 0
      %791 = vmatpush1.bf16.msra.mxu0 %v774
      %792 = vmatprep.subr.bf16.mxu0 0
      %793 = vmatpush2.bf16.msra.mxu0 0
      %794 = vmatprep.subr.bf16.mxu0 0
      %795 = vmatpush2.bf16.msra.mxu0 0
      %796 = vmatprep.subr.bf16.mxu0 0
      %797 = vmatpush2.bf16.msra.mxu0 0
      %798 = vmatprep.subr.bf16.mxu0 0
      %799 = vmatpush2.bf16.msra.mxu0 0
      %800 = vmatprep.subr.bf16.mxu0 0
      %801 = vmatpush2.bf16.msra.mxu0 0
      %802 = vmatprep.subr.bf16.mxu0 0
      %803 = vmatpush2.bf16.msra.mxu0 0
      %804 = vmatprep.subr.bf16.mxu0 0
      %805 = vmatpush2.bf16.msra.mxu0 0
      %806 = vmatprep.subr.bf16.mxu0 0
      %807 = vmatpush2.bf16.msra.mxu0 0
      %808 = vmatprep.mubr.bf16.mxu0 0
      %809 = vmatmul.mubr.bf16.gmra.mxu0 %v771
      %v810 = vpop.f32.mrf.mxu0
      %v811 = vadd.f32 0.0, %v810
      %v812 = vpop.f32.mrf.mxu0
      %v813 = vpop.f32.mrf.mxu0
      %v814 = vpop.f32.mrf.mxu0
      %815 = vdwg.mxu0
      %817 = vrot.lane.b32.xlu0 %v811, 8
      %v818 = vpop.permute.xlu0 %817
      %vm820 = vcmask 130112
      %821 = vst.msk [vmem:[#allocation3] sm:$0xff] %vm820, %v818
      %v822 = vld [vmem:[%s575] sm:$0xff]
      %v823 = vmul.f32 %v822, 0.35355338
      %v824 = vld [vmem:[#allocation2] sm:$0xff]
      %v825 = vpack.c.bf16 %v823, %v823
      %v826 = vpack.c.bf16 %v824, %v824
      %828 = vrot.lane.b32.xlu0 %v825, 112
      %v829 = vpop.permute.xlu0 %828
      %831 = vrot.lane.b32.xlu0 %v826, 80
      %v832 = vpop.permute.xlu0 %831
      %v834 = vsel %vm590, %v829, 0
      %v837 = vsel %vm590, %v832, 0
      %839 = vmatprep.subr.bf16.mxu0 0
      %840 = vmatpush1.bf16.xpose.msra.mxu0 0
      %841 = vmatprep.subr.bf16.mxu0 0
      %842 = vmatpush1.bf16.xpose.msra.mxu0 0
      %843 = vmatprep.subr.bf16.mxu0 0
      %844 = vmatpush1.bf16.xpose.msra.mxu0 0
      %845 = vmatprep.subr.bf16.mxu0 0
      %846 = vmatpush1.bf16.xpose.msra.mxu0 0
      %847 = vmatprep.subr.bf16.mxu0 0
      %848 = vmatpush1.bf16.xpose.msra.mxu0 0
      %849 = vmatprep.subr.bf16.mxu0 0
      %850 = vmatpush1.bf16.xpose.msra.mxu0 0
      %851 = vmatprep.subr.bf16.mxu0 0
      %852 = vmatpush1.bf16.xpose.msra.mxu0 0
      %853 = vmatprep.subr.bf16.mxu0 0
      %854 = vmatpush1.bf16.xpose.msra.mxu0 %v837
      %855 = vmatprep.subr.bf16.mxu0 0
      %856 = vmatpush2.bf16.xpose.msra.mxu0 0
      %857 = vmatprep.subr.bf16.mxu0 0
      %858 = vmatpush2.bf16.xpose.msra.mxu0 0
      %859 = vmatprep.subr.bf16.mxu0 0
      %860 = vmatpush2.bf16.xpose.msra.mxu0 0
      %861 = vmatprep.subr.bf16.mxu0 0
      %862 = vmatpush2.bf16.xpose.msra.mxu0 0
      %863 = vmatprep.subr.bf16.mxu0 0
      %864 = vmatpush2.bf16.xpose.msra.mxu0 0
      %865 = vmatprep.subr.bf16.mxu0 0
      %866 = vmatpush2.bf16.xpose.msra.mxu0 0
      %867 = vmatprep.subr.bf16.mxu0 0
      %868 = vmatpush2.bf16.xpose.msra.mxu0 0
      %869 = vmatprep.subr.bf16.mxu0 0
      %870 = vmatpush2.bf16.xpose.msra.mxu0 0
      %871 = vmatprep.mubr.bf16.mxu0 0
      %872 = vmatmul.mubr.bf16.gmra.mxu0 %v834
      %v873 = vpop.f32.mrf.mxu0
      %v874 = vadd.f32 %v585, %v873
      %v875 = vpop.f32.mrf.mxu0
      %v876 = vpop.f32.mrf.mxu0
      %v877 = vpop.f32.mrf.mxu0
      %878 = vdwg.mxu0
      %v879 = vsel %vm590, %v874, -inf
      %880 = vmax.xlane.f32.xlu0 %v879
      %v881 = vpop.xlane.xlu0 %880
      %v882 = vsub.f32 %v874, %v881
      %v883 = vmul.f32 %v882, 1.442695
      %v884 = vpow.pop %v883
      %v885 = vsel %vm590, %v884, 0.0
      %886 = vadd.xlane.f32.xlu0 %v885
      %v887 = vpop.xlane.xlu0 %886
      %v888 = vrcp.pop %v887
      %v889 = vmul.f32 %v884, %v888
      %v890 = vpack.c.bf16 %v889, %v889
      %891 = vrot.lane.b32.xlu0 %v826, 48
      %v892 = vpop.permute.xlu0 %891
      %v894 = vsel %vm590, %v890, 0
      %v897 = vsel %vm654, %v892, 0
      %899 = vmatprep.subr.bf16.mxu0 0
      %900 = vmatpush1.bf16.msra.mxu0 0
      %901 = vmatprep.subr.bf16.mxu0 0
      %902 = vmatpush1.bf16.msra.mxu0 0
      %903 = vmatprep.subr.bf16.mxu0 0
      %904 = vmatpush1.bf16.msra.mxu0 0
      %905 = vmatprep.subr.bf16.mxu0 0
      %906 = vmatpush1.bf16.msra.mxu0 0
      %907 = vmatprep.subr.bf16.mxu0 0
      %908 = vmatpush1.bf16.msra.mxu0 0
      %909 = vmatprep.subr.bf16.mxu0 0
      %910 = vmatpush1.bf16.msra.mxu0 0
      %911 = vmatprep.subr.bf16.mxu0 0
      %912 = vmatpush1.bf16.msra.mxu0 0
      %913 = vmatprep.subr.bf16.mxu0 0
      %914 = vmatpush1.bf16.msra.mxu0 %v897
      %915 = vmatprep.subr.bf16.mxu0 0
      %916 = vmatpush2.bf16.msra.mxu0 0
      %917 = vmatprep.subr.bf16.mxu0 0
      %918 = vmatpush2.bf16.msra.mxu0 0
      %919 = vmatprep.subr.bf16.mxu0 0
      %920 = vmatpush2.bf16.msra.mxu0 0
      %921 = vmatprep.subr.bf16.mxu0 0
      %922 = vmatpush2.bf16.msra.mxu0 0
      %923 = vmatprep.subr.bf16.mxu0 0
      %924 = vmatpush2.bf16.msra.mxu0 0
      %925 = vmatprep.subr.bf16.mxu0 0
      %926 = vmatpush2.bf16.msra.mxu0 0
      %927 = vmatprep.subr.bf16.mxu0 0
      %928 = vmatpush2.bf16.msra.mxu0 0
      %929 = vmatprep.subr.bf16.mxu0 0
      %930 = vmatpush2.bf16.msra.mxu0 0
      %931 = vmatprep.mubr.bf16.mxu0 0
      %932 = vmatmul.mubr.bf16.gmra.mxu0 %v894
      %v933 = vpop.f32.mrf.mxu0
      %v934 = vadd.f32 0.0, %v933
      %v935 = vpop.f32.mrf.mxu0
      %v936 = vpop.f32.mrf.mxu0
      %v937 = vpop.f32.mrf.mxu0
      %938 = vdwg.mxu0
      %940 = vrot.lane.b32.xlu0 %v934, 16
      %v941 = vpop.permute.xlu0 %940
      %vm943 = vcmask 195712
      %944 = vst.msk [vmem:[#allocation3] sm:$0xff] %vm943, %v941
      %v945 = vld [vmem:[%s575] sm:$0xff]
      %v946 = vmul.f32 %v945, 0.35355338
      %v947 = vld [vmem:[#allocation2] sm:$0xff]
      %v948 = vpack.c.bf16 %v946, %v946
      %v949 = vpack.c.bf16 %v947, %v947
      %951 = vrot.lane.b32.xlu0 %v948, 104
      %v952 = vpop.permute.xlu0 %951
      %954 = vrot.lane.b32.xlu0 %v949, 72
      %v955 = vpop.permute.xlu0 %954
      %v957 = vsel %vm590, %v952, 0
      %v960 = vsel %vm590, %v955, 0
      %962 = vmatprep.subr.bf16.mxu0 0
      %963 = vmatpush1.bf16.xpose.msra.mxu0 0
      %964 = vmatprep.subr.bf16.mxu0 0
      %965 = vmatpush1.bf16.xpose.msra.mxu0 0
      %966 = vmatprep.subr.bf16.mxu0 0
      %967 = vmatpush1.bf16.xpose.msra.mxu0 0
      %968 = vmatprep.subr.bf16.mxu0 0
      %969 = vmatpush1.bf16.xpose.msra.mxu0 0
      %970 = vmatprep.subr.bf16.mxu0 0
      %971 = vmatpush1.bf16.xpose.msra.mxu0 0
      %972 = vmatprep.subr.bf16.mxu0 0
      %973 = vmatpush1.bf16.xpose.msra.mxu0 0
      %974 = vmatprep.subr.bf16.mxu0 0
      %975 = vmatpush1.bf16.xpose.msra.mxu0 0
      %976 = vmatprep.subr.bf16.mxu0 0
      %977 = vmatpush1.bf16.xpose.msra.mxu0 %v960
      %978 = vmatprep.subr.bf16.mxu0 0
      %979 = vmatpush2.bf16.xpose.msra.mxu0 0
      %980 = vmatprep.subr.bf16.mxu0 0
      %981 = vmatpush2.bf16.xpose.msra.mxu0 0
      %982 = vmatprep.subr.bf16.mxu0 0
      %983 = vmatpush2.bf16.xpose.msra.mxu0 0
      %984 = vmatprep.subr.bf16.mxu0 0
      %985 = vmatpush2.bf16.xpose.msra.mxu0 0
      %986 = vmatprep.subr.bf16.mxu0 0
      %987 = vmatpush2.bf16.xpose.msra.mxu0 0
      %988 = vmatprep.subr.bf16.mxu0 0
      %989 = vmatpush2.bf16.xpose.msra.mxu0 0
      %990 = vmatprep.subr.bf16.mxu0 0
      %991 = vmatpush2.bf16.xpose.msra.mxu0 0
      %992 = vmatprep.subr.bf16.mxu0 0
      %993 = vmatpush2.bf16.xpose.msra.mxu0 0
      %994 = vmatprep.mubr.bf16.mxu0 0
      %995 = vmatmul.mubr.bf16.gmra.mxu0 %v957
      %v996 = vpop.f32.mrf.mxu0
      %v997 = vadd.f32 %v585, %v996
      %v998 = vpop.f32.mrf.mxu0
      %v999 = vpop.f32.mrf.mxu0
      %v1000 = vpop.f32.mrf.mxu0
      %1001 = vdwg.mxu0
      %v1002 = vsel %vm590, %v997, -inf
      %1003 = vmax.xlane.f32.xlu0 %v1002
      %v1004 = vpop.xlane.xlu0 %1003
      %v1005 = vsub.f32 %v997, %v1004
      %v1006 = vmul.f32 %v1005, 1.442695
      %v1007 = vpow.pop %v1006
      %v1008 = vsel %vm590, %v1007, 0.0
      %1009 = vadd.xlane.f32.xlu0 %v1008
      %v1010 = vpop.xlane.xlu0 %1009
      %v1011 = vrcp.pop %v1010
      %v1012 = vmul.f32 %v1007, %v1011
      %v1013 = vpack.c.bf16 %v1012, %v1012
      %1014 = vrot.lane.b32.xlu0 %v949, 40
      %v1015 = vpop.permute.xlu0 %1014
      %v1017 = vsel %vm590, %v1013, 0
      %v1020 = vsel %vm654, %v1015, 0
      %1022 = vmatprep.subr.bf16.mxu0 0
      %1023 = vmatpush1.bf16.msra.mxu0 0
      %1024 = vmatprep.subr.bf16.mxu0 0
      %1025 = vmatpush1.bf16.msra.mxu0 0
      %1026 = vmatprep.subr.bf16.mxu0 0
      %1027 = vmatpush1.bf16.msra.mxu0 0
      %1028 = vmatprep.subr.bf16.mxu0 0
      %1029 = vmatpush1.bf16.msra.mxu0 0
      %1030 = vmatprep.subr.bf16.mxu0 0
      %1031 = vmatpush1.bf16.msra.mxu0 0
      %1032 = vmatprep.subr.bf16.mxu0 0
      %1033 = vmatpush1.bf16.msra.mxu0 0
      %1034 = vmatprep.subr.bf16.mxu0 0
      %1035 = vmatpush1.bf16.msra.mxu0 0
      %1036 = vmatprep.subr.bf16.mxu0 0
      %1037 = vmatpush1.bf16.msra.mxu0 %v1020
      %1038 = vmatprep.subr.bf16.mxu0 0
      %1039 = vmatpush2.bf16.msra.mxu0 0
      %1040 = vmatprep.subr.bf16.mxu0 0
      %1041 = vmatpush2.bf16.msra.mxu0 0
      %1042 = vmatprep.subr.bf16.mxu0 0
      %1043 = vmatpush2.bf16.msra.mxu0 0
      %1044 = vmatprep.subr.bf16.mxu0 0
      %1045 = vmatpush2.bf16.msra.mxu0 0
      %1046 = vmatprep.subr.bf16.mxu0 0
      %1047 = vmatpush2.bf16.msra.mxu0 0
      %1048 = vmatprep.subr.bf16.mxu0 0
      %1049 = vmatpush2.bf16.msra.mxu0 0
      %1050 = vmatprep.subr.bf16.mxu0 0
      %1051 = vmatpush2.bf16.msra.mxu0 0
      %1052 = vmatprep.subr.bf16.mxu0 0
      %1053 = vmatpush2.bf16.msra.mxu0 0
      %1054 = vmatprep.mubr.bf16.mxu0 0
      %1055 = vmatmul.mubr.bf16.gmra.mxu0 %v1017
      %v1056 = vpop.f32.mrf.mxu0
      %v1057 = vadd.f32 0.0, %v1056
      %v1058 = vpop.f32.mrf.mxu0
      %v1059 = vpop.f32.mrf.mxu0
      %v1060 = vpop.f32.mrf.mxu0
      %1061 = vdwg.mxu0
      %1063 = vrot.lane.b32.xlu0 %v1057, 24
      %v1064 = vpop.permute.xlu0 %1063
      %vm1066 = vcmask 261312
      %1067 = vst.msk [vmem:[#allocation3] sm:$0xff] %vm1066, %v1064
      %v1068 = vld [vmem:[#allocation3] sm:$0xff]
      %v1069 = vpack.c.bf16 %v1068, %v1068
      %v1070 = vld [vmem:[%s4] sm:$0xf]
      %v1071 = vld [vmem:[%s4 + $0x4] sm:$0xf]
      %v1072 = vld [vmem:[%s4 + $0x8] sm:$0xf]
      %v1073 = vld [vmem:[%s4 + $0xc] sm:$0xf]
      %v1074 = vld [vmem:[%s5] sm:$0x1]
      %v1076 = vlaneseq
      %v1077 = vshrl.u32 %v1076, 7
      %v1078 = vsub.s32 0, %v1077
      %v1079 = vrot.slane %v1074, %v1078
      %v1085 = vunpack.c.l.b16 %v1070
      %v1086 = vunpack.c.l.b16 %v1071
      %v1087 = vunpack.c.l.b16 %v1072
      %v1088 = vunpack.c.l.b16 %v1073
      %v1089 = vpack.c.b16 %v1086, %v1085
      %v1090 = vpack.c.b16 %v1088, %v1087
      %vm1093 = vcmask 261120
      %v1095 = vsel %vm1093, %v1069, 0
      %1097 = vmatprep.subr.bf16.mxu0 0
      %1098 = vmatpush1.bf16.msra.mxu0 0
      %1099 = vmatprep.subr.bf16.mxu0 0
      %1100 = vmatpush1.bf16.msra.mxu0 0
      %1101 = vmatprep.subr.bf16.mxu0 0
      %1102 = vmatpush1.bf16.msra.mxu0 0
      %1103 = vmatprep.subr.bf16.mxu0 0
      %1104 = vmatpush1.bf16.msra.mxu0 0
      %1105 = vmatprep.subr.bf16.mxu0 0
      %1106 = vmatpush1.bf16.msra.mxu0 0
      %1107 = vmatprep.subr.bf16.mxu0 0
      %1108 = vmatpush1.bf16.msra.mxu0 0
      %1109 = vmatprep.subr.bf16.mxu0 0
      %1110 = vmatpush1.bf16.msra.mxu0 %v1090
      %1111 = vmatprep.subr.bf16.mxu0 0
      %1112 = vmatpush1.bf16.msra.mxu0 %v1089
      %1113 = vmatprep.subr.bf16.mxu0 0
      %1114 = vmatpush2.bf16.msra.mxu0 0
      %1115 = vmatprep.subr.bf16.mxu0 0
      %1116 = vmatpush2.bf16.msra.mxu0 0
      %1117 = vmatprep.subr.bf16.mxu0 0
      %1118 = vmatpush2.bf16.msra.mxu0 0
      %1119 = vmatprep.subr.bf16.mxu0 0
      %1120 = vmatpush2.bf16.msra.mxu0 0
      %1121 = vmatprep.subr.bf16.mxu0 0
      %1122 = vmatpush2.bf16.msra.mxu0 0
      %1123 = vmatprep.subr.bf16.mxu0 0
      %1124 = vmatpush2.bf16.msra.mxu0 0
      %1125 = vmatprep.subr.bf16.mxu0 0
      %1126 = vmatpush2.bf16.msra.mxu0 0
      %1127 = vmatprep.subr.bf16.mxu0 0
      %1128 = vmatpush2.bf16.msra.mxu0 0
      %1129 = vmatprep.mubr.bf16.mxu0 0
      %1130 = vmatmul.mubr.bf16.gmra.mxu0 %v1095
      %v1131 = vpop.f32.mrf.mxu0
      %v1132 = vadd.f32 %v1079, %v1131
      %v1133 = vpop.f32.mrf.mxu0
      %v1134 = vpop.f32.mrf.mxu0
      %v1135 = vpop.f32.mrf.mxu0
      %1136 = vdwg.mxu0
      %s1137 = scalar_lea.vmem %s486, %s498
      %v1138 = vld [vmem:[%s1137] sm:$0xff]
      %v1139 = vadd.f32 %v1132, %v1138
      %v1140 = vsel %vm1093, %v1139, 0.0
      %1141 = vadd.xlane.f32.xlu0 %v1140
      %v1142 = vpop.xlane.xlu0 %1141
      %v1143 = vrcp.pop 32.0
      %v1144 = vmul.f32 %v1142, %v1143
      %v1145 = vsub.f32 %v1139, %v1144
      %v1146 = vmul.f32 %v1145, %v1145
      %v1147 = vsel %vm1093, %v1146, 0.0
      %1148 = vadd.xlane.f32.xlu0 %v1147
      %v1149 = vpop.xlane.xlu0 %1148
      %v1150 = vmul.f32 %v1149, %v1143
      %v1151 = vadd.f32 %v1150, 1e-05
      %v1152 = vrsqrt.pop %v1151
      %v1153 = vmul.f32 %v1145, %v1152
      %v1154 = vld [vmem:[%s6] sm:$0x1]
      %v1156 = vlaneseq
      %v1157 = vshrl.u32 %v1156, 7
      %v1158 = vsub.s32 0, %v1157
      %v1159 = vrot.slane %v1154, %v1158
      %v1161 = vmul.f32 %v1153, %v1159
      %v1162 = vld [vmem:[%s7] sm:$0x1]
      %v1164 = vlaneseq
      %v1165 = vshrl.u32 %v1164, 7
      %v1166 = vsub.s32 0, %v1165
      %v1167 = vrot.slane %v1162, %v1166
      %v1169 = vadd.f32 %v1161, %v1167
      %v1170 = vpack.c.bf16 %v1169, %v1169
      %v1171 = vld [vmem:[%s8] sm:$0xf]
      %v1172 = vld [vmem:[%s8 + $0x4] sm:$0xf]
      %v1173 = vld [vmem:[%s8 + $0x8] sm:$0xf]
      %v1174 = vld [vmem:[%s8 + $0xc] sm:$0xf]
      %v1175 = vld [vmem:[%s9] sm:$0x1]
      %v1177 = vlaneseq
      %v1178 = vshrl.u32 %v1177, 7
      %v1179 = vsub.s32 0, %v1178
      %v1180 = vrot.slane %v1175, %v1179
      %v1186 = vunpack.c.l.b16 %v1171
      %v1187 = vunpack.c.l.b16 %v1172
      %v1188 = vunpack.c.l.b16 %v1173
      %v1189 = vunpack.c.l.b16 %v1174
      %v1190 = vpack.c.b16 %v1187, %v1186
      %v1191 = vpack.c.b16 %v1189, %v1188
      %v1195 = vsel %vm1093, %v1170, 0
      %1197 = vmatprep.subr.bf16.mxu0 0
      %1198 = vmatpush1.bf16.msra.mxu0 0
      %1199 = vmatprep.subr.bf16.mxu0 0
      %1200 = vmatpush1.bf16.msra.mxu0 0
      %1201 = vmatprep.subr.bf16.mxu0 0
      %1202 = vmatpush1.bf16.msra.mxu0 0
      %1203 = vmatprep.subr.bf16.mxu0 0
      %1204 = vmatpush1.bf16.msra.mxu0 0
      %1205 = vmatprep.subr.bf16.mxu0 0
      %1206 = vmatpush1.bf16.msra.mxu0 0
      %1207 = vmatprep.subr.bf16.mxu0 0
      %1208 = vmatpush1.bf16.msra.mxu0 0
      %1209 = vmatprep.subr.bf16.mxu0 0
      %1210 = vmatpush1.bf16.msra.mxu0 %v1191
      %1211 = vmatprep.subr.bf16.mxu0 0
      %1212 = vmatpush1.bf16.msra.mxu0 %v1190
      %1213 = vmatprep.subr.bf16.mxu0 0
      %1214 = vmatpush2.bf16.msra.mxu0 0
      %1215 = vmatprep.subr.bf16.mxu0 0
      %1216 = vmatpush2.bf16.msra.mxu0 0
      %1217 = vmatprep.subr.bf16.mxu0 0
      %1218 = vmatpush2.bf16.msra.mxu0 0
      %1219 = vmatprep.subr.bf16.mxu0 0
      %1220 = vmatpush2.bf16.msra.mxu0 0
      %1221 = vmatprep.subr.bf16.mxu0 0
      %1222 = vmatpush2.bf16.msra.mxu0 0
      %1223 = vmatprep.subr.bf16.mxu0 0
      %1224 = vmatpush2.bf16.msra.mxu0 0
      %1225 = vmatprep.subr.bf16.mxu0 0
      %1226 = vmatpush2.bf16.msra.mxu0 0
      %1227 = vmatprep.subr.bf16.mxu0 0
      %1228 = vmatpush2.bf16.msra.mxu0 0
      %1229 = vmatprep.mubr.bf16.mxu0 0
      %1230 = vmatmul.mubr.bf16.gmra.mxu0 %v1195
      %v1231 = vpop.f32.mrf.mxu0
      %v1232 = vadd.f32 %v1180, %v1231
      %v1233 = vpop.f32.mrf.mxu0
      %v1234 = vpop.f32.mrf.mxu0
      %v1235 = vpop.f32.mrf.mxu0
      %1236 = vdwg.mxu0
      %v1237 = vmax.f32 %v1232, 0.0
      %v1238 = vpack.c.bf16 %v1237, %v1237
      %v1239 = vld [vmem:[%s10] sm:$0xf]
      %v1240 = vld [vmem:[%s10 + $0x4] sm:$0xf]
      %v1241 = vld [vmem:[%s10 + $0x8] sm:$0xf]
      %v1242 = vld [vmem:[%s10 + $0xc] sm:$0xf]
      %v1243 = vld [vmem:[%s10 + $0x10] sm:$0xf]
      %v1244 = vld [vmem:[%s10 + $0x14] sm:$0xf]
      %v1245 = vld [vmem:[%s10 + $0x18] sm:$0xf]
      %v1246 = vld [vmem:[%s10 + $0x1c] sm:$0xf]
      %v1247 = vld [vmem:[%s11] sm:$0x1]
      %v1249 = vlaneseq
      %v1250 = vshrl.u32 %v1249, 7
      %v1251 = vsub.s32 0, %v1250
      %v1252 = vrot.slane %v1247, %v1251
      %v1262 = vunpack.c.l.b16 %v1239
      %v1263 = vunpack.c.l.b16 %v1240
      %v1264 = vunpack.c.l.b16 %v1241
      %v1265 = vunpack.c.l.b16 %v1242
      %v1266 = vunpack.c.l.b16 %v1243
      %v1267 = vunpack.c.l.b16 %v1244
      %v1268 = vunpack.c.l.b16 %v1245
      %v1269 = vunpack.c.l.b16 %v1246
      %v1270 = vpack.c.b16 %v1263, %v1262
      %v1271 = vpack.c.b16 %v1265, %v1264
      %v1272 = vpack.c.b16 %v1267, %v1266
      %v1273 = vpack.c.b16 %v1269, %v1268
      %vm1278 = vcmask 523264
      %v1280 = vsel %vm1278, %v1238, 0
      %1282 = vmatprep.subr.bf16.mxu0 0
      %1283 = vmatpush1.bf16.msra.mxu0 0
      %1284 = vmatprep.subr.bf16.mxu0 0
      %1285 = vmatpush1.bf16.msra.mxu0 0
      %1286 = vmatprep.subr.bf16.mxu0 0
      %1287 = vmatpush1.bf16.msra.mxu0 0
      %1288 = vmatprep.subr.bf16.mxu0 0
      %1289 = vmatpush1.bf16.msra.mxu0 0
      %1290 = vmatprep.subr.bf16.mxu0 0
      %1291 = vmatpush1.bf16.msra.mxu0 %v1273
      %1292 = vmatprep.subr.bf16.mxu0 0
      %1293 = vmatpush1.bf16.msra.mxu0 %v1272
      %1294 = vmatprep.subr.bf16.mxu0 0
      %1295 = vmatpush1.bf16.msra.mxu0 %v1271
      %1296 = vmatprep.subr.bf16.mxu0 0
      %1297 = vmatpush1.bf16.msra.mxu0 %v1270
      %1298 = vmatprep.subr.bf16.mxu0 0
      %1299 = vmatpush2.bf16.msra.mxu0 0
      %1300 = vmatprep.subr.bf16.mxu0 0
      %1301 = vmatpush2.bf16.msra.mxu0 0
      %1302 = vmatprep.subr.bf16.mxu0 0
      %1303 = vmatpush2.bf16.msra.mxu0 0
      %1304 = vmatprep.subr.bf16.mxu0 0
      %1305 = vmatpush2.bf16.msra.mxu0 0
      %1306 = vmatprep.subr.bf16.mxu0 0
      %1307 = vmatpush2.bf16.msra.mxu0 0
      %1308 = vmatprep.subr.bf16.mxu0 0
      %1309 = vmatpush2.bf16.msra.mxu0 0
      %1310 = vmatprep.subr.bf16.mxu0 0
      %1311 = vmatpush2.bf16.msra.mxu0 0
      %1312 = vmatprep.subr.bf16.mxu0 0
      %1313 = vmatpush2.bf16.msra.mxu0 0
      %1314 = vmatprep.mubr.bf16.mxu0 0
      %1315 = vmatmul.mubr.bf16.gmra.mxu0 %v1280
      %v1316 = vpop.f32.mrf.mxu0
      %v1317 = vadd.f32 %v1252, %v1316
      %v1318 = vpop.f32.mrf.mxu0
      %v1319 = vpop.f32.mrf.mxu0
      %v1320 = vpop.f32.mrf.mxu0
      %1321 = vdwg.mxu0
      %v1322 = vadd.f32 %v1317, %v1169
      %v1323 = vsel %vm1093, %v1322, 0.0
      %1324 = vadd.xlane.f32.xlu0 %v1323
      %v1325 = vpop.xlane.xlu0 %1324
      %v1326 = vmul.f32 %v1325, %v1143
      %v1327 = vsub.f32 %v1322, %v1326
      %v1328 = vmul.f32 %v1327, %v1327
      %v1329 = vsel %vm1093, %v1328, 0.0
      %1330 = vadd.xlane.f32.xlu0 %v1329
      %v1331 = vpop.xlane.xlu0 %1330
      %v1332 = vmul.f32 %v1331, %v1143
      %v1333 = vadd.f32 %v1332, 1e-05
      %v1334 = vrsqrt.pop %v1333
      %v1335 = vmul.f32 %v1327, %v1334
      %v1336 = vld [vmem:[%s12] sm:$0x1]
      %v1338 = vlaneseq
      %v1339 = vshrl.u32 %v1338, 7
      %v1340 = vsub.s32 0, %v1339
      %v1341 = vrot.slane %v1336, %v1340
      %v1343 = vmul.f32 %v1335, %v1341
      %v1344 = vld [vmem:[%s13] sm:$0x1]
      %v1346 = vlaneseq
      %v1347 = vshrl.u32 %v1346, 7
      %v1348 = vsub.s32 0, %v1347
      %v1349 = vrot.slane %v1344, %v1348
      %v1351 = vadd.f32 %v1343, %v1349
      %1352 = vst.msk [vmem:[%s496] sm:$0xff] %vm1093, %v1351
      %p1353 = scmp.lt.s32.totalorder %s29, 1
      %s1354 = scalar_select %p1353, %s29, 1
      %p1355 = scmp.lt.s32.totalorder %s30, 0
      %s1356 = scalar_select %p1355, %s30, 0
      %s1357 = sadd.s32 %s1356, %s1354
      %s1358 = smul.addr %s1357, 8
      %s1359 = scalar_lea.vmem %s14, %s1358
      // Predicated region
      $region81: #{transformer_encoder_stack.2} parent=75 // pred_check
        %p1360 = pneg %p361
      $region82: #{transformer_encoder_stack.2} parent=75 // pred_check_branch
        %1362 = sbr.rel (%p1360) target = $region84
      $region83: #{transformer_encoder_stack.2} parent=75 // pred_region
        _
      $region84: #{transformer_encoder_stack.2} parent=75 // pred_fallthru
        _
    $region76: #{transformer_encoder_stack.2} parent=5 // pred_fallthru
      _
    %p1363 = scmp.le.s32.totalorder 2, %s20
    // Predicated region
    $region85: #{transformer_encoder_stack.2} parent=5 // pred_check
      %p1364 = pneg %p1363
    $region86: #{transformer_encoder_stack.2} parent=5 // pred_check_branch
      %1366 = sbr.rel (%p1364) target = $region88
    $region87: #{transformer_encoder_stack.2} parent=5 // pred_region
      %s1367 = ssub.s32 %s20, 2
      // Predicated region
      $region89: #{transformer_encoder_stack.2} parent=87 // pred_check
        %p1368 = pneg %p367
      $region90: #{transformer_encoder_stack.2} parent=87 // pred_check_branch
        %1370 = sbr.rel (%p1368) target = $region92
      $region91: #{transformer_encoder_stack.2} parent=87 // pred_region
        %p1371 = scmp.lt.s32.totalorder %s31, 1
        %s1372 = scalar_select %p1371, %s31, 1
        %p1373 = scmp.lt.s32.totalorder %s32, 0
        %s1374 = scalar_select %p1373, %s32, 0
        %s1375 = sadd.s32 %s1374, %s1372
        %s1376 = smul.addr %s1375, 8
        %s1377 = scalar_lea.vmem %s14, %s1376
      $region92: #{transformer_encoder_stack.2} parent=87 // pred_fallthru
        _
    $region88: #{transformer_encoder_stack.2} parent=5 // pred_fallthru
      _
  $region6: #{transformer_encoder_stack.2} parent=0 // loop_footer
    %s24 = sadd.s32 1, %s20
  $region7: #{transformer_encoder_stack.2} parent=0 // loop_footer_branch
    %19 = sbr.rel target = $region3
  $region8: #{transformer_encoder_stack.2} parent=0 // loop_exit
    _

// kernel: transformer_encoder_stack.3
$region0: #{transformer_encoder_stack.3}
  #allocation0 [shape = 'u32[]', space=smem, size = 0x4, offset = 0x4, fixed_abs, tag = 'smem constant byte address 0x4 - core index']
  #allocation1 [shape = 'u32[144,128]{1,0:T(1,128)}', space=vmem, size = 0x12000, scoped, tag = 'internal scratch']
  #allocation2 [shape = 'f32[8,96]{1,0:T(8,128)}', space=vmem, size = 0x1000, scoped, tag = 'scratch operand']
  #allocation3 [shape = 'f32[8,32]{1,0:T(8,128)}', space=vmem, size = 0x1000, scoped, tag = 'scratch operand']
  %s0 = inlined_call_operand.vmem [shape: f32[2,8,32], index: 0, kind: input, shape index: {}]
  %s1 = inlined_call_operand.vmem [shape: f32[2,1,8], index: 1, kind: input, shape index: {}]
  %s2 = inlined_call_operand.vmem [shape: bf16[32,96], index: 2, kind: input, shape index: {}]
  %s3 = inlined_call_operand.vmem [shape: f32[1,96], index: 3, kind: input, shape index: {}]
  %s4 = inlined_call_operand.vmem [shape: bf16[32,32], index: 4, kind: input, shape index: {}]
  %s5 = inlined_call_operand.vmem [shape: f32[1,32], index: 5, kind: input, shape index: {}]
  %s6 = inlined_call_operand.vmem [shape: f32[1,32], index: 6, kind: input, shape index: {}]
  %s7 = inlined_call_operand.vmem [shape: f32[1,32], index: 7, kind: input, shape index: {}]
  %s8 = inlined_call_operand.vmem [shape: bf16[32,64], index: 8, kind: input, shape index: {}]
  %s9 = inlined_call_operand.vmem [shape: f32[1,64], index: 9, kind: input, shape index: {}]
  %s10 = inlined_call_operand.vmem [shape: bf16[64,32], index: 10, kind: input, shape index: {}]
  %s11 = inlined_call_operand.vmem [shape: f32[1,32], index: 11, kind: input, shape index: {}]
  %s12 = inlined_call_operand.vmem [shape: f32[1,32], index: 12, kind: input, shape index: {}]
  %s13 = inlined_call_operand.vmem [shape: f32[1,32], index: 13, kind: input, shape index: {}]
  %s14 = inlined_call_operand.hbm [shape: f32[2,8,32], index: 14, kind: output, shape index: {}]
  %s15 = sld [smem:[#allocation0]]
  $region93: #{transformer_encoder_stack.3} parent=0
    _
  %s17 = ssub.s32 1, %s15
  %s18 = scalar_select 0, %s17, %s15
  $region1: #{transformer_encoder_stack.3} parent=0
    #allocation4 [shape = 'u8[8192]{0}', space=vmem, size = 0x2000, scoped, tag = 'output window, operand 0']
    #allocation5 [shape = 's32[2]{0}', space=sflag, size = 0x8, scoped, tag = 'scoped memory for transformer_encoder_stack.3']
    %19 = vsyncpa [#allocation5], 0
    %s20 = scalar_lea.sflag [#allocation5], 1
    %21 = vsyncpa %s20, 0
    loop: start=0, step=1, limit=4
    $region2: #{transformer_encoder_stack.3} parent=1 // loop_pre_header
      _
    $region3: #{transformer_encoder_stack.3} parent=1 // loop_header
      %s23 = sphi 0, %s27
      %p24 = scmp.ge.s32.totalorder %s23, 4
      %s30 = sphi 0, %s42
      %s31 = sphi 0, %s38
      %s32 = sphi 0, %s30
      %s33 = sphi 0, %s31
      %s34 = sphi 0, %s32
      %s35 = sphi 0, %s33
      %s45 = sphi 0, %s47
      %s48 = sphi 0, %s45
      %s49 = sphi 0, %s48
      %s65 = sphi 0, %s49
      %s71 = sphi 0, %s73
      %s74 = sphi 0, %s71
      %s75 = sphi 0, %s74
      %s91 = sphi 0, %s75
      %s95 = sphi 0, %s95
      %s97 = sphi 0, %s95
      %s98 = sphi 0, %s97
      %s112 = sphi 0, %s98
      %s116 = sphi 0, %s116
      %s118 = sphi 0, %s116
      %s119 = sphi 0, %s118
      %s133 = sphi 0, %s119
      %s137 = sphi 0, %s137
      %s139 = sphi 0, %s137
      %s140 = sphi 0, %s139
      %s154 = sphi 0, %s140
      %s158 = sphi 0, %s158
      %s160 = sphi 0, %s158
      %s161 = sphi 0, %s160
      %s175 = sphi 0, %s161
      %s179 = sphi 0, %s179
      %s181 = sphi 0, %s179
      %s182 = sphi 0, %s181
      %s196 = sphi 0, %s182
      %s200 = sphi 0, %s200
      %s202 = sphi 0, %s200
      %s203 = sphi 0, %s202
      %s217 = sphi 0, %s203
      %s221 = sphi 0, %s221
      %s223 = sphi 0, %s221
      %s224 = sphi 0, %s223
      %s238 = sphi 0, %s224
      %s242 = sphi 0, %s242
      %s244 = sphi 0, %s242
      %s245 = sphi 0, %s244
      %s259 = sphi 0, %s245
      %s263 = sphi 0, %s263
      %s265 = sphi 0, %s263
      %s266 = sphi 0, %s265
      %s280 = sphi 0, %s266
      %s284 = sphi 0, %s284
      %s286 = sphi 0, %s284
      %s287 = sphi 0, %s286
      %s301 = sphi 0, %s287
      %s305 = sphi 0, %s305
      %s307 = sphi 0, %s305
      %s308 = sphi 0, %s307
      %s322 = sphi 0, %s308
      %s326 = sphi 0, %s326
      %s328 = sphi 0, %s326
      %s329 = sphi 0, %s328
      %s343 = sphi 0, %s329
      %s351 = sphi 0, %s353
      %s354 = sphi 0, %s351
      %s355 = sphi 0, %s354
      %s371 = sphi 0, %s355
    $region4: #{transformer_encoder_stack.3} parent=1 // loop_header_branch
      %26 = sbr.rel (%p24) target = $region8
    $region5: #{transformer_encoder_stack.3} parent=1 // loop_body
      %s28 = ssub.s32 %s23, 1
      %s29 = ssub.s32 %s23, 2
      %s36 = sadd.s32 1, %s31
      %p37 = scmp.ge.s32.totalorder %s36, 1
      %s38 = scalar_select %p37, 0, %s36
      %s39 = sadd.s32 1, %s30
      %s40 = scalar_select %p37, %s39, %s30
      %p41 = scmp.ge.s32.totalorder %s40, 2
      %s42 = scalar_select %p41, 0, %s40
      %s43 = ssub.s32 %s30, %s42
      %p44 = scmp.eq.s32.totalorder %s43, 0
      %s46 = sadd.s32 %s45, 1
      %s47 = scalar_select %p44, %s45, %s46
      %p50 = pneg %p44
      %p51 = scmp.eq.s32.totalorder %s23, 1
      %p52 = por %p50, %p51
      %p53 = scmp.ne.s32.totalorder %s45, %s48
      %p54 = scmp.eq.s32.totalorder %s23, 0
      %p55 = por %p53, %p54
      %p56 = scmp.ne.s32.totalorder %s45, %s48
      %p57 = scmp.eq.s32.totalorder %s28, 1
      %p58 = por %p56, %p57
      %p59 = scmp.ne.s32.totalorder %s48, %s49
      %p60 = scmp.eq.s32.totalorder %s28, 0
      %p61 = por %p59, %p60
      %p62 = scmp.ne.s32.totalorder %s48, %s49
      %p63 = scmp.eq.s32.totalorder %s29, 1
      %p64 = por %p62, %p63
      %p66 = scmp.ne.s32.totalorder %s49, %s65
      %p67 = scmp.eq.s32.totalorder %s29, 0
      %p68 = por %p66, %p67
      %s69 = ssub.s32 %s30, %s42
      %p70 = scmp.eq.s32.totalorder %s69, 0
      %s72 = sadd.s32 %s71, 1
      %s73 = scalar_select %p70, %s71, %s72
      %p76 = pneg %p70
      %p77 = scmp.eq.s32.totalorder %s23, 1
      %p78 = por %p76, %p77
      %p79 = scmp.ne.s32.totalorder %s71, %s74
      %p80 = scmp.eq.s32.totalorder %s23, 0
      %p81 = por %p79, %p80
      %p82 = scmp.ne.s32.totalorder %s71, %s74
      %p83 = scmp.eq.s32.totalorder %s28, 1
      %p84 = por %p82, %p83
      %p85 = scmp.ne.s32.totalorder %s74, %s75
      %p86 = scmp.eq.s32.totalorder %s28, 0
      %p87 = por %p85, %p86
      %p88 = scmp.ne.s32.totalorder %s74, %s75
      %p89 = scmp.eq.s32.totalorder %s29, 1
      %p90 = por %p88, %p89
      %p92 = scmp.ne.s32.totalorder %s75, %s91
      %p93 = scmp.eq.s32.totalorder %s29, 0
      %p94 = por %p92, %p93
      %s96 = sadd.s32 %s95, 1
      %p99 = scmp.eq.s32.totalorder %s23, 1
      %p100 = scmp.ne.s32.totalorder %s95, %s97
      %p101 = scmp.eq.s32.totalorder %s23, 0
      %p102 = por %p100, %p101
      %p103 = scmp.ne.s32.totalorder %s95, %s97
      %p104 = scmp.eq.s32.totalorder %s28, 1
      %p105 = por %p103, %p104
      %p106 = scmp.ne.s32.totalorder %s97, %s98
      %p107 = scmp.eq.s32.totalorder %s28, 0
      %p108 = por %p106, %p107
      %p109 = scmp.ne.s32.totalorder %s97, %s98
      %p110 = scmp.eq.s32.totalorder %s29, 1
      %p111 = por %p109, %p110
      %p113 = scmp.ne.s32.totalorder %s98, %s112
      %p114 = scmp.eq.s32.totalorder %s29, 0
      %p115 = por %p113, %p114
      %s117 = sadd.s32 %s116, 1
      %p120 = scmp.eq.s32.totalorder %s23, 1
      %p121 = scmp.ne.s32.totalorder %s116, %s118
      %p122 = scmp.eq.s32.totalorder %s23, 0
      %p123 = por %p121, %p122
      %p124 = scmp.ne.s32.totalorder %s116, %s118
      %p125 = scmp.eq.s32.totalorder %s28, 1
      %p126 = por %p124, %p125
      %p127 = scmp.ne.s32.totalorder %s118, %s119
      %p128 = scmp.eq.s32.totalorder %s28, 0
      %p129 = por %p127, %p128
      %p130 = scmp.ne.s32.totalorder %s118, %s119
      %p131 = scmp.eq.s32.totalorder %s29, 1
      %p132 = por %p130, %p131
      %p134 = scmp.ne.s32.totalorder %s119, %s133
      %p135 = scmp.eq.s32.totalorder %s29, 0
      %p136 = por %p134, %p135
      %s138 = sadd.s32 %s137, 1
      %p141 = scmp.eq.s32.totalorder %s23, 1
      %p142 = scmp.ne.s32.totalorder %s137, %s139
      %p143 = scmp.eq.s32.totalorder %s23, 0
      %p144 = por %p142, %p143
      %p145 = scmp.ne.s32.totalorder %s137, %s139
      %p146 = scmp.eq.s32.totalorder %s28, 1
      %p147 = por %p145, %p146
      %p148 = scmp.ne.s32.totalorder %s139, %s140
      %p149 = scmp.eq.s32.totalorder %s28, 0
      %p150 = por %p148, %p149
      %p151 = scmp.ne.s32.totalorder %s139, %s140
      %p152 = scmp.eq.s32.totalorder %s29, 1
      %p153 = por %p151, %p152
      %p155 = scmp.ne.s32.totalorder %s140, %s154
      %p156 = scmp.eq.s32.totalorder %s29, 0
      %p157 = por %p155, %p156
      %s159 = sadd.s32 %s158, 1
      %p162 = scmp.eq.s32.totalorder %s23, 1
      %p163 = scmp.ne.s32.totalorder %s158, %s160
      %p164 = scmp.eq.s32.totalorder %s23, 0
      %p165 = por %p163, %p164
      %p166 = scmp.ne.s32.totalorder %s158, %s160
      %p167 = scmp.eq.s32.totalorder %s28, 1
      %p168 = por %p166, %p167
      %p169 = scmp.ne.s32.totalorder %s160, %s161
      %p170 = scmp.eq.s32.totalorder %s28, 0
      %p171 = por %p169, %p170
      %p172 = scmp.ne.s32.totalorder %s160, %s161
      %p173 = scmp.eq.s32.totalorder %s29, 1
      %p174 = por %p172, %p173
      %p176 = scmp.ne.s32.totalorder %s161, %s175
      %p177 = scmp.eq.s32.totalorder %s29, 0
      %p178 = por %p176, %p177
      %s180 = sadd.s32 %s179, 1
      %p183 = scmp.eq.s32.totalorder %s23, 1
      %p184 = scmp.ne.s32.totalorder %s179, %s181
      %p185 = scmp.eq.s32.totalorder %s23, 0
      %p186 = por %p184, %p185
      %p187 = scmp.ne.s32.totalorder %s179, %s181
      %p188 = scmp.eq.s32.totalorder %s28, 1
      %p189 = por %p187, %p188
      %p190 = scmp.ne.s32.totalorder %s181, %s182
      %p191 = scmp.eq.s32.totalorder %s28, 0
      %p192 = por %p190, %p191
      %p193 = scmp.ne.s32.totalorder %s181, %s182
      %p194 = scmp.eq.s32.totalorder %s29, 1
      %p195 = por %p193, %p194
      %p197 = scmp.ne.s32.totalorder %s182, %s196
      %p198 = scmp.eq.s32.totalorder %s29, 0
      %p199 = por %p197, %p198
      %s201 = sadd.s32 %s200, 1
      %p204 = scmp.eq.s32.totalorder %s23, 1
      %p205 = scmp.ne.s32.totalorder %s200, %s202
      %p206 = scmp.eq.s32.totalorder %s23, 0
      %p207 = por %p205, %p206
      %p208 = scmp.ne.s32.totalorder %s200, %s202
      %p209 = scmp.eq.s32.totalorder %s28, 1
      %p210 = por %p208, %p209
      %p211 = scmp.ne.s32.totalorder %s202, %s203
      %p212 = scmp.eq.s32.totalorder %s28, 0
      %p213 = por %p211, %p212
      %p214 = scmp.ne.s32.totalorder %s202, %s203
      %p215 = scmp.eq.s32.totalorder %s29, 1
      %p216 = por %p214, %p215
      %p218 = scmp.ne.s32.totalorder %s203, %s217
      %p219 = scmp.eq.s32.totalorder %s29, 0
      %p220 = por %p218, %p219
      %s222 = sadd.s32 %s221, 1
      %p225 = scmp.eq.s32.totalorder %s23, 1
      %p226 = scmp.ne.s32.totalorder %s221, %s223
      %p227 = scmp.eq.s32.totalorder %s23, 0
      %p228 = por %p226, %p227
      %p229 = scmp.ne.s32.totalorder %s221, %s223
      %p230 = scmp.eq.s32.totalorder %s28, 1
      %p231 = por %p229, %p230
      %p232 = scmp.ne.s32.totalorder %s223, %s224
      %p233 = scmp.eq.s32.totalorder %s28, 0
      %p234 = por %p232, %p233
      %p235 = scmp.ne.s32.totalorder %s223, %s224
      %p236 = scmp.eq.s32.totalorder %s29, 1
      %p237 = por %p235, %p236
      %p239 = scmp.ne.s32.totalorder %s224, %s238
      %p240 = scmp.eq.s32.totalorder %s29, 0
      %p241 = por %p239, %p240
      %s243 = sadd.s32 %s242, 1
      %p246 = scmp.eq.s32.totalorder %s23, 1
      %p247 = scmp.ne.s32.totalorder %s242, %s244
      %p248 = scmp.eq.s32.totalorder %s23, 0
      %p249 = por %p247, %p248
      %p250 = scmp.ne.s32.totalorder %s242, %s244
      %p251 = scmp.eq.s32.totalorder %s28, 1
      %p252 = por %p250, %p251
      %p253 = scmp.ne.s32.totalorder %s244, %s245
      %p254 = scmp.eq.s32.totalorder %s28, 0
      %p255 = por %p253, %p254
      %p256 = scmp.ne.s32.totalorder %s244, %s245
      %p257 = scmp.eq.s32.totalorder %s29, 1
      %p258 = por %p256, %p257
      %p260 = scmp.ne.s32.totalorder %s245, %s259
      %p261 = scmp.eq.s32.totalorder %s29, 0
      %p262 = por %p260, %p261
      %s264 = sadd.s32 %s263, 1
      %p267 = scmp.eq.s32.totalorder %s23, 1
      %p268 = scmp.ne.s32.totalorder %s263, %s265
      %p269 = scmp.eq.s32.totalorder %s23, 0
      %p270 = por %p268, %p269
      %p271 = scmp.ne.s32.totalorder %s263, %s265
      %p272 = scmp.eq.s32.totalorder %s28, 1
      %p273 = por %p271, %p272
      %p274 = scmp.ne.s32.totalorder %s265, %s266
      %p275 = scmp.eq.s32.totalorder %s28, 0
      %p276 = por %p274, %p275
      %p277 = scmp.ne.s32.totalorder %s265, %s266
      %p278 = scmp.eq.s32.totalorder %s29, 1
      %p279 = por %p277, %p278
      %p281 = scmp.ne.s32.totalorder %s266, %s280
      %p282 = scmp.eq.s32.totalorder %s29, 0
      %p283 = por %p281, %p282
      %s285 = sadd.s32 %s284, 1
      %p288 = scmp.eq.s32.totalorder %s23, 1
      %p289 = scmp.ne.s32.totalorder %s284, %s286
      %p290 = scmp.eq.s32.totalorder %s23, 0
      %p291 = por %p289, %p290
      %p292 = scmp.ne.s32.totalorder %s284, %s286
      %p293 = scmp.eq.s32.totalorder %s28, 1
      %p294 = por %p292, %p293
      %p295 = scmp.ne.s32.totalorder %s286, %s287
      %p296 = scmp.eq.s32.totalorder %s28, 0
      %p297 = por %p295, %p296
      %p298 = scmp.ne.s32.totalorder %s286, %s287
      %p299 = scmp.eq.s32.totalorder %s29, 1
      %p300 = por %p298, %p299
      %p302 = scmp.ne.s32.totalorder %s287, %s301
      %p303 = scmp.eq.s32.totalorder %s29, 0
      %p304 = por %p302, %p303
      %s306 = sadd.s32 %s305, 1
      %p309 = scmp.eq.s32.totalorder %s23, 1
      %p310 = scmp.ne.s32.totalorder %s305, %s307
      %p311 = scmp.eq.s32.totalorder %s23, 0
      %p312 = por %p310, %p311
      %p313 = scmp.ne.s32.totalorder %s305, %s307
      %p314 = scmp.eq.s32.totalorder %s28, 1
      %p315 = por %p313, %p314
      %p316 = scmp.ne.s32.totalorder %s307, %s308
      %p317 = scmp.eq.s32.totalorder %s28, 0
      %p318 = por %p316, %p317
      %p319 = scmp.ne.s32.totalorder %s307, %s308
      %p320 = scmp.eq.s32.totalorder %s29, 1
      %p321 = por %p319, %p320
      %p323 = scmp.ne.s32.totalorder %s308, %s322
      %p324 = scmp.eq.s32.totalorder %s29, 0
      %p325 = por %p323, %p324
      %s327 = sadd.s32 %s326, 1
      %p330 = scmp.eq.s32.totalorder %s23, 1
      %p331 = scmp.ne.s32.totalorder %s326, %s328
      %p332 = scmp.eq.s32.totalorder %s23, 0
      %p333 = por %p331, %p332
      %p334 = scmp.ne.s32.totalorder %s326, %s328
      %p335 = scmp.eq.s32.totalorder %s28, 1
      %p336 = por %p334, %p335
      %p337 = scmp.ne.s32.totalorder %s328, %s329
      %p338 = scmp.eq.s32.totalorder %s28, 0
      %p339 = por %p337, %p338
      %p340 = scmp.ne.s32.totalorder %s328, %s329
      %p341 = scmp.eq.s32.totalorder %s29, 1
      %p342 = por %p340, %p341
      %p344 = scmp.ne.s32.totalorder %s329, %s343
      %p345 = scmp.eq.s32.totalorder %s29, 0
      %p346 = por %p344, %p345
      %s347 = ssub.s32 %s30, %s42
      %s348 = ssub.s32 %s31, %s38
      %s349 = sor.u32 %s347, %s348
      %p350 = scmp.eq.s32.totalorder %s349, 0
      %s352 = sadd.s32 %s351, 1
      %s353 = scalar_select %p350, %s351, %s352
      %p356 = pneg %p350
      %p357 = scmp.eq.s32.totalorder %s23, 1
      %p358 = por %p356, %p357
      %p359 = scmp.ne.s32.totalorder %s351, %s354
      %p360 = scmp.eq.s32.totalorder %s23, 0
      %p361 = por %p359, %p360
      %p362 = scmp.ne.s32.totalorder %s351, %s354
      %p363 = scmp.eq.s32.totalorder %s28, 1
      %p364 = por %p362, %p363
      %p365 = scmp.ne.s32.totalorder %s354, %s355
      %p366 = scmp.eq.s32.totalorder %s28, 0
      %p367 = por %p365, %p366
      %p368 = scmp.ne.s32.totalorder %s354, %s355
      %p369 = scmp.eq.s32.totalorder %s29, 1
      %p370 = por %p368, %p369
      %p372 = scmp.ne.s32.totalorder %s355, %s371
      %p373 = scmp.eq.s32.totalorder %s29, 0
      %p374 = por %p372, %p373
      %p375 = scmp.le.s32.totalorder 1, %s23
      %p376 = scmp.lt.s32.totalorder %s23, 3
      %p377 = pnand %p375, %p376
      %p378 = pneg %p377
      // Predicated region
      $region9: #{transformer_encoder_stack.3} parent=5 // pred_check
        _
      $region10: #{transformer_encoder_stack.3} parent=5 // pred_check_branch
        %380 = sbr.rel (%p377) target = $region12
      $region11: #{transformer_encoder_stack.3} parent=5 // pred_region
        %s381 = ssub.s32 %s23, 1
        // Predicated region
        $region13: #{transformer_encoder_stack.3} parent=11 // pred_check
          %p382 = pneg %p108
        $region14: #{transformer_encoder_stack.3} parent=11 // pred_check_branch
          %384 = sbr.rel (%p382) target = $region16
        $region15: #{transformer_encoder_stack.3} parent=11 // pred_region
          _
        $region16: #{transformer_encoder_stack.3} parent=11 // pred_fallthru
          _
        // Predicated region
        $region17: #{transformer_encoder_stack.3} parent=11 // pred_check
          %p385 = pneg %p129
        $region18: #{transformer_encoder_stack.3} parent=11 // pred_check_branch
          %387 = sbr.rel (%p385) target = $region20
        $region19: #{transformer_encoder_stack.3} parent=11 // pred_region
          _
        $region20: #{transformer_encoder_stack.3} parent=11 // pred_fallthru
          _
        // Predicated region
        $region21: #{transformer_encoder_stack.3} parent=11 // pred_check
          %p388 = pneg %p150
        $region22: #{transformer_encoder_stack.3} parent=11 // pred_check_branch
          %390 = sbr.rel (%p388) target = $region24
        $region23: #{transformer_encoder_stack.3} parent=11 // pred_region
          _
        $region24: #{transformer_encoder_stack.3} parent=11 // pred_fallthru
          _
        // Predicated region
        $region25: #{transformer_encoder_stack.3} parent=11 // pred_check
          %p391 = pneg %p171
        $region26: #{transformer_encoder_stack.3} parent=11 // pred_check_branch
          %393 = sbr.rel (%p391) target = $region28
        $region27: #{transformer_encoder_stack.3} parent=11 // pred_region
          _
        $region28: #{transformer_encoder_stack.3} parent=11 // pred_fallthru
          _
        // Predicated region
        $region29: #{transformer_encoder_stack.3} parent=11 // pred_check
          %p394 = pneg %p192
        $region30: #{transformer_encoder_stack.3} parent=11 // pred_check_branch
          %396 = sbr.rel (%p394) target = $region32
        $region31: #{transformer_encoder_stack.3} parent=11 // pred_region
          _
        $region32: #{transformer_encoder_stack.3} parent=11 // pred_fallthru
          _
        // Predicated region
        $region33: #{transformer_encoder_stack.3} parent=11 // pred_check
          %p397 = pneg %p213
        $region34: #{transformer_encoder_stack.3} parent=11 // pred_check_branch
          %399 = sbr.rel (%p397) target = $region36
        $region35: #{transformer_encoder_stack.3} parent=11 // pred_region
          _
        $region36: #{transformer_encoder_stack.3} parent=11 // pred_fallthru
          _
        // Predicated region
        $region37: #{transformer_encoder_stack.3} parent=11 // pred_check
          %p400 = pneg %p234
        $region38: #{transformer_encoder_stack.3} parent=11 // pred_check_branch
          %402 = sbr.rel (%p400) target = $region40
        $region39: #{transformer_encoder_stack.3} parent=11 // pred_region
          _
        $region40: #{transformer_encoder_stack.3} parent=11 // pred_fallthru
          _
        // Predicated region
        $region41: #{transformer_encoder_stack.3} parent=11 // pred_check
          %p403 = pneg %p255
        $region42: #{transformer_encoder_stack.3} parent=11 // pred_check_branch
          %405 = sbr.rel (%p403) target = $region44
        $region43: #{transformer_encoder_stack.3} parent=11 // pred_region
          _
        $region44: #{transformer_encoder_stack.3} parent=11 // pred_fallthru
          _
        // Predicated region
        $region45: #{transformer_encoder_stack.3} parent=11 // pred_check
          %p406 = pneg %p276
        $region46: #{transformer_encoder_stack.3} parent=11 // pred_check_branch
          %408 = sbr.rel (%p406) target = $region48
        $region47: #{transformer_encoder_stack.3} parent=11 // pred_region
          _
        $region48: #{transformer_encoder_stack.3} parent=11 // pred_fallthru
          _
        // Predicated region
        $region49: #{transformer_encoder_stack.3} parent=11 // pred_check
          %p409 = pneg %p297
        $region50: #{transformer_encoder_stack.3} parent=11 // pred_check_branch
          %411 = sbr.rel (%p409) target = $region52
        $region51: #{transformer_encoder_stack.3} parent=11 // pred_region
          _
        $region52: #{transformer_encoder_stack.3} parent=11 // pred_fallthru
          _
        // Predicated region
        $region53: #{transformer_encoder_stack.3} parent=11 // pred_check
          %p412 = pneg %p318
        $region54: #{transformer_encoder_stack.3} parent=11 // pred_check_branch
          %414 = sbr.rel (%p412) target = $region56
        $region55: #{transformer_encoder_stack.3} parent=11 // pred_region
          _
        $region56: #{transformer_encoder_stack.3} parent=11 // pred_fallthru
          _
        // Predicated region
        $region57: #{transformer_encoder_stack.3} parent=11 // pred_check
          %p415 = pneg %p339
        $region58: #{transformer_encoder_stack.3} parent=11 // pred_check_branch
          %417 = sbr.rel (%p415) target = $region60
        $region59: #{transformer_encoder_stack.3} parent=11 // pred_region
          _
        $region60: #{transformer_encoder_stack.3} parent=11 // pred_fallthru
          _
      $region12: #{transformer_encoder_stack.3} parent=5 // pred_fallthru
        _
      %p418 = scmp.lt.s32.totalorder %s23, 2
      // Predicated region
      $region61: #{transformer_encoder_stack.3} parent=5 // pred_check
        %p419 = pneg %p418
      $region62: #{transformer_encoder_stack.3} parent=5 // pred_check_branch
        %421 = sbr.rel (%p419) target = $region64
      $region63: #{transformer_encoder_stack.3} parent=5 // pred_region
        // Predicated region
        $region65: #{transformer_encoder_stack.3} parent=63 // pred_check
          %p422 = pneg %p55
        $region66: #{transformer_encoder_stack.3} parent=63 // pred_check_branch
          %424 = sbr.rel (%p422) target = $region68
        $region67: #{transformer_encoder_stack.3} parent=63 // pred_region
          %p425 = scmp.lt.s32.totalorder %s30, 1
          %s426 = scalar_select %p425, %s30, 1
          %s427 = smul.addr %s426, 8
          %s428 = scalar_lea.vmem %s0, %s427
        $region68: #{transformer_encoder_stack.3} parent=63 // pred_fallthru
          _
        // Predicated region
        $region69: #{transformer_encoder_stack.3} parent=63 // pred_check
          %p429 = pneg %p81
        $region70: #{transformer_encoder_stack.3} parent=63 // pred_check_branch
          %431 = sbr.rel (%p429) target = $region72
        $region71: #{transformer_encoder_stack.3} parent=63 // pred_region
          %p432 = scmp.lt.s32.totalorder %s30, 1
          %s433 = scalar_select %p432, %s30, 1
          %s434 = scalar_lea.vmem %s1, %s433
        $region72: #{transformer_encoder_stack.3} parent=63 // pred_fallthru
          _
      $region64: #{transformer_encoder_stack.3} parent=5 // pred_fallthru
        _
      %p435 = scmp.le.s32.totalorder 1, %s23
      %p436 = scmp.lt.s32.totalorder %s23, 3
      %p437 = pnand %p435, %p436
      %p438 = pneg %p437
      // Predicated region
      $region73: #{transformer_encoder_stack.3} parent=5 // pred_check
        _
      $region74: #{transformer_encoder_stack.3} parent=5 // pred_check_branch
        %440 = sbr.rel (%p437) target = $region76
      $region75: #{transformer_encoder_stack.3} parent=5 // pred_region
        %s441 = ssub.s32 %s23, 1
        %p442 = scmp.lt.s32.totalorder %s32, 1
        %s443 = scalar_select %p442, %s32, 1
        %s444 = smul.addr %s443, 8
        %s445 = scalar_lea.vmem %s0, %s444
        %p446 = pneg %p61
        %p447 = pneg %p58
        %p448 = scmp.lt.s32.totalorder %s32, 1
        %s449 = scalar_select %p448, %s32, 1
        %s450 = scalar_lea.vmem %s1, %s449
        %p451 = pneg %p87
        %p452 = pneg %p84
        %p453 = pneg %p108
        %p454 = pneg %p105
        %p455 = pneg %p129
        %p456 = pneg %p126
        %p457 = pneg %p150
        %p458 = pneg %p147
        %p459 = pneg %p171
        %p460 = pneg %p168
        %p461 = pneg %p192
        %p462 = pneg %p189
        %p463 = pneg %p213
        %p464 = pneg %p210
        %p465 = pneg %p234
        %p466 = pneg %p231
        %p467 = pneg %p255
        %p468 = pneg %p252
        %p469 = pneg %p276
        %p470 = pneg %p273
        %p471 = pneg %p297
        %p472 = pneg %p294
        %p473 = pneg %p318
        %p474 = pneg %p315
        %p475 = pneg %p339
        %p476 = pneg %p336
        %p477 = pneg %p367
        %p478 = pneg %p364
        %s479 = sand.u32 %s354, 1
        %s480 = scalar_lea.sflag [#allocation5], %s479
        %s481 = sand.u32 %s354, 1
        %s482 = smul.addr %s481, 8
        %s483 = scalar_lea.vmem [#allocation4], %s482
        %p484 = scmp.lt.s32.totalorder %s32, 1
        %s485 = scalar_select %p484, %s32, 1
        %s486 = smul.addr %s485, 8
        %s487 = scalar_lea.vmem %s0, %s486
        %p488 = scmp.lt.s32.totalorder %s32, 1
        %s489 = scalar_select %p488, %s32, 1
        %s490 = scalar_lea.vmem %s1, %s489
        %s492 = smul.u32 %s33, 8
        %p493 = scmp.eq.s32.totalorder %s33, 0
        // Predicated region
        $region77: #{transformer_encoder_stack.3} parent=75 // pred_check
          %p494 = pneg %p493
        $region78: #{transformer_encoder_stack.3} parent=75 // pred_check_branch
          %496 = sbr.rel (%p494) target = $region80
        $region79: #{transformer_encoder_stack.3} parent=75 // pred_region
          %v497 = vld [vmem:[%s487] sm:$0xff]
          %v498 = vpack.c.bf16 %v497, %v497
          %v499 = vld [vmem:[%s2] sm:$0xf]
          %v500 = vld [vmem:[%s2 + $0x4] sm:$0xf]
          %v501 = vld [vmem:[%s2 + $0x8] sm:$0xf]
          %v502 = vld [vmem:[%s2 + $0xc] sm:$0xf]
          %v503 = vld [vmem:[%s3] sm:$0x1]
          %v505 = vlaneseq
          %v506 = vshrl.u32 %v505, 7
          %v507 = vsub.s32 0, %v506
          %v508 = vrot.slane %v503, %v507
          %v514 = vunpack.c.l.b16 %v499
          %v515 = vunpack.c.l.b16 %v500
          %v516 = vunpack.c.l.b16 %v501
          %v517 = vunpack.c.l.b16 %v502
          %v518 = vpack.c.b16 %v515, %v514
          %v519 = vpack.c.b16 %v517, %v516
          %vm522 = vcmask 261120
          %v524 = vsel %vm522, %v498, 0
          %526 = vmatprep.subr.bf16.mxu0 0
          %527 = vmatpush1.bf16.msra.mxu0 0
          %528 = vmatprep.subr.bf16.mxu0 0
          %529 = vmatpush1.bf16.msra.mxu0 0
          %530 = vmatprep.subr.bf16.mxu0 0
          %531 = vmatpush1.bf16.msra.mxu0 0
          %532 = vmatprep.subr.bf16.mxu0 0
          %533 = vmatpush1.bf16.msra.mxu0 0
          %534 = vmatprep.subr.bf16.mxu0 0
          %535 = vmatpush1.bf16.msra.mxu0 0
          %536 = vmatprep.subr.bf16.mxu0 0
          %537 = vmatpush1.bf16.msra.mxu0 0
          %538 = vmatprep.subr.bf16.mxu0 0
          %539 = vmatpush1.bf16.msra.mxu0 %v519
          %540 = vmatprep.subr.bf16.mxu0 0
          %541 = vmatpush1.bf16.msra.mxu0 %v518
          %542 = vmatprep.subr.bf16.mxu0 0
          %543 = vmatpush2.bf16.msra.mxu0 0
          %544 = vmatprep.subr.bf16.mxu0 0
          %545 = vmatpush2.bf16.msra.mxu0 0
          %546 = vmatprep.subr.bf16.mxu0 0
          %547 = vmatpush2.bf16.msra.mxu0 0
          %548 = vmatprep.subr.bf16.mxu0 0
          %549 = vmatpush2.bf16.msra.mxu0 0
          %550 = vmatprep.subr.bf16.mxu0 0
          %551 = vmatpush2.bf16.msra.mxu0 0
          %552 = vmatprep.subr.bf16.mxu0 0
          %553 = vmatpush2.bf16.msra.mxu0 0
          %554 = vmatprep.subr.bf16.mxu0 0
          %555 = vmatpush2.bf16.msra.mxu0 0
          %556 = vmatprep.subr.bf16.mxu0 0
          %557 = vmatpush2.bf16.msra.mxu0 0
          %558 = vmatprep.mubr.bf16.mxu0 0
          %559 = vmatmul.mubr.bf16.gmra.mxu0 %v524
          %v560 = vpop.f32.mrf.mxu0
          %v561 = vadd.f32 %v508, %v560
          %v562 = vpop.f32.mrf.mxu0
          %v563 = vpop.f32.mrf.mxu0
          %v564 = vpop.f32.mrf.mxu0
          %565 = vdwg.mxu0
          %vm566 = vcmask 785408
          %567 = vst.msk [vmem:[#allocation2] sm:$0xff] %vm566, %v561
        $region80: #{transformer_encoder_stack.3} parent=75 // pred_fallthru
          _
        %v568 = vld [vmem:[%s490] sm:$0x1]
        %s569 = scalar_lea.vmem [#allocation2], %s492
        %v570 = vld [vmem:[%s569] sm:$0xff]
        %v571 = vmul.f32 %v570, 0.35355338
        %v572 = vld [vmem:[#allocation2] sm:$0xff]
        %v573 = vpack.c.bf16 %v571, %v571
        %v574 = vpack.c.bf16 %v572, %v572
        %v576 = vlaneseq
        %v577 = vshrl.u32 %v576, 7
        %v578 = vsub.s32 0, %v577
        %v579 = vrot.slane %v568, %v578
        %582 = vrot.lane.b32.xlu0 %v574, 96
        %v583 = vpop.permute.xlu0 %582
        %vm584 = vcmask 64512
        %v586 = vsel %vm584, %v573, 0
        %v589 = vsel %vm584, %v583, 0
        %591 = vmatprep.subr.bf16.mxu0 0
        %592 = vmatpush1.bf16.xpose.msra.mxu0 0
        %593 = vmatprep.subr.bf16.mxu0 0
        %594 = vmatpush1.bf16.xpose.msra.mxu0 0
        %595 = vmatprep.subr.bf16.mxu0 0
        %596 = vmatpush1.bf16.xpose.msra.mxu0 0
        %597 = vmatprep.subr.bf16.mxu0 0
        %598 = vmatpush1.bf16.xpose.msra.mxu0 0
        %599 = vmatprep.subr.bf16.mxu0 0
        %600 = vmatpush1.bf16.xpose.msra.mxu0 0
        %601 = vmatprep.subr.bf16.mxu0 0
        %602 = vmatpush1.bf16.xpose.msra.mxu0 0
        %603 = vmatprep.subr.bf16.mxu0 0
        %604 = vmatpush1.bf16.xpose.msra.mxu0 0
        %605 = vmatprep.subr.bf16.mxu0 0
        %606 = vmatpush1.bf16.xpose.msra.mxu0 %v589
        %607 = vmatprep.subr.bf16.mxu0 0
        %608 = vmatpush2.bf16.xpose.msra.mxu0 0
        %609 = vmatprep.subr.bf16.mxu0 0
        %610 = vmatpush2.bf16.xpose.msra.mxu0 0
        %611 = vmatprep.subr.bf16.mxu0 0
        %612 = vmatpush2.bf16.xpose.msra.mxu0 0
        %613 = vmatprep.subr.bf16.mxu0 0
        %614 = vmatpush2.bf16.xpose.msra.mxu0 0
        %615 = vmatprep.subr.bf16.mxu0 0
        %616 = vmatpush2.bf16.xpose.msra.mxu0 0
        %617 = vmatprep.subr.bf16.mxu0 0
        %618 = vmatpush2.bf16.xpose.msra.mxu0 0
        %619 = vmatprep.subr.bf16.mxu0 0
        %620 = vmatpush2.bf16.xpose.msra.mxu0 0
        %621 = vmatprep.subr.bf16.mxu0 0
        %622 = vmatpush2.bf16.xpose.msra.mxu0 0
        %623 = vmatprep.mubr.bf16.mxu0 0
        %624 = vmatmul.mubr.bf16.gmra.mxu0 %v586
        %v625 = vpop.f32.mrf.mxu0
        %v626 = vadd.f32 %v579, %v625
        %v627 = vpop.f32.mrf.mxu0
        %v628 = vpop.f32.mrf.mxu0
        %v629 = vpop.f32.mrf.mxu0
        %630 = vdwg.mxu0
        %v631 = vsel %vm584, %v626, -inf
        %632 = vmax.xlane.f32.xlu0 %v631
        %v633 = vpop.xlane.xlu0 %632
        %v634 = vsub.f32 %v626, %v633
        %v635 = vmul.f32 %v634, 1.442695
        %v636 = vpow.pop %v635
        %v637 = vsel %vm584, %v636, 0.0
        %638 = vadd.xlane.f32.xlu0 %v637
        %v639 = vpop.xlane.xlu0 %638
        %v640 = vrcp.pop %v639
        %v641 = vmul.f32 %v636, %v640
        %v642 = vpack.c.bf16 %v641, %v641
        %643 = vrot.lane.b32.xlu0 %v574, 64
        %v644 = vpop.permute.xlu0 %643
        %v646 = vsel %vm584, %v642, 0
        %vm648 = vcmask 1043456
        %v650 = vsel %vm648, %v644, 0
        %652 = vmatprep.subr.bf16.mxu0 0
        %653 = vmatpush1.bf16.msra.mxu0 0
        %654 = vmatprep.subr.bf16.mxu0 0
        %655 = vmatpush1.bf16.msra.mxu0 0
        %656 = vmatprep.subr.bf16.mxu0 0
        %657 = vmatpush1.bf16.msra.mxu0 0
        %658 = vmatprep.subr.bf16.mxu0 0
        %659 = vmatpush1.bf16.msra.mxu0 0
        %660 = vmatprep.subr.bf16.mxu0 0
        %661 = vmatpush1.bf16.msra.mxu0 0
        %662 = vmatprep.subr.bf16.mxu0 0
        %663 = vmatpush1.bf16.msra.mxu0 0
        %664 = vmatprep.subr.bf16.mxu0 0
        %665 = vmatpush1.bf16.msra.mxu0 0
        %666 = vmatprep.subr.bf16.mxu0 0
        %667 = vmatpush1.bf16.msra.mxu0 %v650
        %668 = vmatprep.subr.bf16.mxu0 0
        %669 = vmatpush2.bf16.msra.mxu0 0
        %670 = vmatprep.subr.bf16.mxu0 0
        %671 = vmatpush2.bf16.msra.mxu0 0
        %672 = vmatprep.subr.bf16.mxu0 0
        %673 = vmatpush2.bf16.msra.mxu0 0
        %674 = vmatprep.subr.bf16.mxu0 0
        %675 = vmatpush2.bf16.msra.mxu0 0
        %676 = vmatprep.subr.bf16.mxu0 0
        %677 = vmatpush2.bf16.msra.mxu0 0
        %678 = vmatprep.subr.bf16.mxu0 0
        %679 = vmatpush2.bf16.msra.mxu0 0
        %680 = vmatprep.subr.bf16.mxu0 0
        %681 = vmatpush2.bf16.msra.mxu0 0
        %682 = vmatprep.subr.bf16.mxu0 0
        %683 = vmatpush2.bf16.msra.mxu0 0
        %684 = vmatprep.mubr.bf16.mxu0 0
        %685 = vmatmul.mubr.bf16.gmra.mxu0 %v646
        %v686 = vpop.f32.mrf.mxu0
        %v687 = vadd.f32 0.0, %v686
        %v688 = vpop.f32.mrf.mxu0
        %v689 = vpop.f32.mrf.mxu0
        %v690 = vpop.f32.mrf.mxu0
        %691 = vdwg.mxu0
        %692 = vst.msk [vmem:[#allocation3] sm:$0xff] %vm584, %v687
        %v693 = vld [vmem:[%s569] sm:$0xff]
        %v694 = vmul.f32 %v693, 0.35355338
        %v695 = vld [vmem:[#allocation2] sm:$0xff]
        %v696 = vpack.c.bf16 %v694, %v694
        %v697 = vpack.c.bf16 %v695, %v695
        %699 = vrot.lane.b32.xlu0 %v696, 120
        %v700 = vpop.permute.xlu0 %699
        %702 = vrot.lane.b32.xlu0 %v697, 88
        %v703 = vpop.permute.xlu0 %702
        %v705 = vsel %vm584, %v700, 0
        %v708 = vsel %vm584, %v703, 0
        %710 = vmatprep.subr.bf16.mxu0 0
        %711 = vmatpush1.bf16.xpose.msra.mxu0 0
        %712 = vmatprep.subr.bf16.mxu0 0
        %713 = vmatpush1.bf16.xpose.msra.mxu0 0
        %714 = vmatprep.subr.bf16.mxu0 0
        %715 = vmatpush1.bf16.xpose.msra.mxu0 0
        %716 = vmatprep.subr.bf16.mxu0 0
        %717 = vmatpush1.bf16.xpose.msra.mxu0 0
        %718 = vmatprep.subr.bf16.mxu0 0
        %719 = vmatpush1.bf16.xpose.msra.mxu0 0
        %720 = vmatprep.subr.bf16.mxu0 0
        %721 = vmatpush1.bf16.xpose.msra.mxu0 0
        %722 = vmatprep.subr.bf16.mxu0 0
        %723 = vmatpush1.bf16.xpose.msra.mxu0 0
        %724 = vmatprep.subr.bf16.mxu0 0
        %725 = vmatpush1.bf16.xpose.msra.mxu0 %v708
        %726 = vmatprep.subr.bf16.mxu0 0
        %727 = vmatpush2.bf16.xpose.msra.mxu0 0
        %728 = vmatprep.subr.bf16.mxu0 0
        %729 = vmatpush2.bf16.xpose.msra.mxu0 0
        %730 = vmatprep.subr.bf16.mxu0 0
        %731 = vmatpush2.bf16.xpose.msra.mxu0 0
        %732 = vmatprep.subr.bf16.mxu0 0
        %733 = vmatpush2.bf16.xpose.msra.mxu0 0
        %734 = vmatprep.subr.bf16.mxu0 0
        %735 = vmatpush2.bf16.xpose.msra.mxu0 0
        %736 = vmatprep.subr.bf16.mxu0 0
        %737 = vmatpush2.bf16.xpose.msra.mxu0 0
        %738 = vmatprep.subr.bf16.mxu0 0
        %739 = vmatpush2.bf16.xpose.msra.mxu0 0
        %740 = vmatprep.subr.bf16.mxu0 0
        %741 = vmatpush2.bf16.xpose.msra.mxu0 0
        %742 = vmatprep.mubr.bf16.mxu0 0
        %743 = vmatmul.mubr.bf16.gmra.mxu0 %v705
        %v744 = vpop.f32.mrf.mxu0
        %v745 = vadd.f32 %v579, %v744
        %v746 = vpop.f32.mrf.mxu0
        %v747 = vpop.f32.mrf.mxu0
        %v748 = vpop.f32.mrf.mxu0
        %749 = vdwg.mxu0
        %v750 = vsel %vm584, %v745, -inf
        %751 = vmax.xlane.f32.xlu0 %v750
        %v752 = vpop.xlane.xlu0 %751
        %v753 = vsub.f32 %v745, %v752
        %v754 = vmul.f32 %v753, 1.442695
        %v755 = vpow.pop %v754
        %v756 = vsel %vm584, %v755, 0.0
        %757 = vadd.xlane.f32.xlu0 %v756
        %v758 = vpop.xlane.xlu0 %757
        %v759 = vrcp.pop %v758
        %v760 = vmul.f32 %v755, %v759
        %v761 = vpack.c.bf16 %v760, %v760
        %762 = vrot.lane.b32.xlu0 %v697, 56
        %v763 = vpop.permute.xlu0 %762
        %v765 = vsel %vm584, %v761, 0
        %v768 = vsel %vm648, %v763, 0
        %770 = vmatprep.subr.bf16.mxu0 0
        %771 = vmatpush1.bf16.msra.mxu0 0
        %772 = vmatprep.subr.bf16.mxu0 0
        %773 = vmatpush1.bf16.msra.mxu0 0
        %774 = vmatprep.subr.bf16.mxu0 0
        %775 = vmatpush1.bf16.msra.mxu0 0
        %776 = vmatprep.subr.bf16.mxu0 0
        %777 = vmatpush1.bf16.msra.mxu0 0
        %778 = vmatprep.subr.bf16.mxu0 0
        %779 = vmatpush1.bf16.msra.mxu0 0
        %780 = vmatprep.subr.bf16.mxu0 0
        %781 = vmatpush1.bf16.msra.mxu0 0
        %782 = vmatprep.subr.bf16.mxu0 0
        %783 = vmatpush1.bf16.msra.mxu0 0
        %784 = vmatprep.subr.bf16.mxu0 0
        %785 = vmatpush1.bf16.msra.mxu0 %v768
        %786 = vmatprep.subr.bf16.mxu0 0
        %787 = vmatpush2.bf16.msra.mxu0 0
        %788 = vmatprep.subr.bf16.mxu0 0
        %789 = vmatpush2.bf16.msra.mxu0 0
        %790 = vmatprep.subr.bf16.mxu0 0
        %791 = vmatpush2.bf16.msra.mxu0 0
        %792 = vmatprep.subr.bf16.mxu0 0
        %793 = vmatpush2.bf16.msra.mxu0 0
        %794 = vmatprep.subr.bf16.mxu0 0
        %795 = vmatpush2.bf16.msra.mxu0 0
        %796 = vmatprep.subr.bf16.mxu0 0
        %797 = vmatpush2.bf16.msra.mxu0 0
        %798 = vmatprep.subr.bf16.mxu0 0
        %799 = vmatpush2.bf16.msra.mxu0 0
        %800 = vmatprep.subr.bf16.mxu0 0
        %801 = vmatpush2.bf16.msra.mxu0 0
        %802 = vmatprep.mubr.bf16.mxu0 0
        %803 = vmatmul.mubr.bf16.gmra.mxu0 %v765
        %v804 = vpop.f32.mrf.mxu0
        %v805 = vadd.f32 0.0, %v804
        %v806 = vpop.f32.mrf.mxu0
        %v807 = vpop.f32.mrf.mxu0
        %v808 = vpop.f32.mrf.mxu0
        %809 = vdwg.mxu0
        %811 = vrot.lane.b32.xlu0 %v805, 8
        %v812 = vpop.permute.xlu0 %811
        %vm814 = vcmask 130112
        %815 = vst.msk [vmem:[#allocation3] sm:$0xff] %vm814, %v812
        %v816 = vld [vmem:[%s569] sm:$0xff]
        %v817 = vmul.f32 %v816, 0.35355338
        %v818 = vld [vmem:[#allocation2] sm:$0xff]
        %v819 = vpack.c.bf16 %v817, %v817
        %v820 = vpack.c.bf16 %v818, %v818
        %822 = vrot.lane.b32.xlu0 %v819, 112
        %v823 = vpop.permute.xlu0 %822
        %825 = vrot.lane.b32.xlu0 %v820, 80
        %v826 = vpop.permute.xlu0 %825
        %v828 = vsel %vm584, %v823, 0
        %v831 = vsel %vm584, %v826, 0
        %833 = vmatprep.subr.bf16.mxu0 0
        %834 = vmatpush1.bf16.xpose.msra.mxu0 0
        %835 = vmatprep.subr.bf16.mxu0 0
        %836 = vmatpush1.bf16.xpose.msra.mxu0 0
        %837 = vmatprep.subr.bf16.mxu0 0
        %838 = vmatpush1.bf16.xpose.msra.mxu0 0
        %839 = vmatprep.subr.bf16.mxu0 0
        %840 = vmatpush1.bf16.xpose.msra.mxu0 0
        %841 = vmatprep.subr.bf16.mxu0 0
        %842 = vmatpush1.bf16.xpose.msra.mxu0 0
        %843 = vmatprep.subr.bf16.mxu0 0
        %844 = vmatpush1.bf16.xpose.msra.mxu0 0
        %845 = vmatprep.subr.bf16.mxu0 0
        %846 = vmatpush1.bf16.xpose.msra.mxu0 0
        %847 = vmatprep.subr.bf16.mxu0 0
        %848 = vmatpush1.bf16.xpose.msra.mxu0 %v831
        %849 = vmatprep.subr.bf16.mxu0 0
        %850 = vmatpush2.bf16.xpose.msra.mxu0 0
        %851 = vmatprep.subr.bf16.mxu0 0
        %852 = vmatpush2.bf16.xpose.msra.mxu0 0
        %853 = vmatprep.subr.bf16.mxu0 0
        %854 = vmatpush2.bf16.xpose.msra.mxu0 0
        %855 = vmatprep.subr.bf16.mxu0 0
        %856 = vmatpush2.bf16.xpose.msra.mxu0 0
        %857 = vmatprep.subr.bf16.mxu0 0
        %858 = vmatpush2.bf16.xpose.msra.mxu0 0
        %859 = vmatprep.subr.bf16.mxu0 0
        %860 = vmatpush2.bf16.xpose.msra.mxu0 0
        %861 = vmatprep.subr.bf16.mxu0 0
        %862 = vmatpush2.bf16.xpose.msra.mxu0 0
        %863 = vmatprep.subr.bf16.mxu0 0
        %864 = vmatpush2.bf16.xpose.msra.mxu0 0
        %865 = vmatprep.mubr.bf16.mxu0 0
        %866 = vmatmul.mubr.bf16.gmra.mxu0 %v828
        %v867 = vpop.f32.mrf.mxu0
        %v868 = vadd.f32 %v579, %v867
        %v869 = vpop.f32.mrf.mxu0
        %v870 = vpop.f32.mrf.mxu0
        %v871 = vpop.f32.mrf.mxu0
        %872 = vdwg.mxu0
        %v873 = vsel %vm584, %v868, -inf
        %874 = vmax.xlane.f32.xlu0 %v873
        %v875 = vpop.xlane.xlu0 %874
        %v876 = vsub.f32 %v868, %v875
        %v877 = vmul.f32 %v876, 1.442695
        %v878 = vpow.pop %v877
        %v879 = vsel %vm584, %v878, 0.0
        %880 = vadd.xlane.f32.xlu0 %v879
        %v881 = vpop.xlane.xlu0 %880
        %v882 = vrcp.pop %v881
        %v883 = vmul.f32 %v878, %v882
        %v884 = vpack.c.bf16 %v883, %v883
        %885 = vrot.lane.b32.xlu0 %v820, 48
        %v886 = vpop.permute.xlu0 %885
        %v888 = vsel %vm584, %v884, 0
        %v891 = vsel %vm648, %v886, 0
        %893 = vmatprep.subr.bf16.mxu0 0
        %894 = vmatpush1.bf16.msra.mxu0 0
        %895 = vmatprep.subr.bf16.mxu0 0
        %896 = vmatpush1.bf16.msra.mxu0 0
        %897 = vmatprep.subr.bf16.mxu0 0
        %898 = vmatpush1.bf16.msra.mxu0 0
        %899 = vmatprep.subr.bf16.mxu0 0
        %900 = vmatpush1.bf16.msra.mxu0 0
        %901 = vmatprep.subr.bf16.mxu0 0
        %902 = vmatpush1.bf16.msra.mxu0 0
        %903 = vmatprep.subr.bf16.mxu0 0
        %904 = vmatpush1.bf16.msra.mxu0 0
        %905 = vmatprep.subr.bf16.mxu0 0
        %906 = vmatpush1.bf16.msra.mxu0 0
        %907 = vmatprep.subr.bf16.mxu0 0
        %908 = vmatpush1.bf16.msra.mxu0 %v891
        %909 = vmatprep.subr.bf16.mxu0 0
        %910 = vmatpush2.bf16.msra.mxu0 0
        %911 = vmatprep.subr.bf16.mxu0 0
        %912 = vmatpush2.bf16.msra.mxu0 0
        %913 = vmatprep.subr.bf16.mxu0 0
        %914 = vmatpush2.bf16.msra.mxu0 0
        %915 = vmatprep.subr.bf16.mxu0 0
        %916 = vmatpush2.bf16.msra.mxu0 0
        %917 = vmatprep.subr.bf16.mxu0 0
        %918 = vmatpush2.bf16.msra.mxu0 0
        %919 = vmatprep.subr.bf16.mxu0 0
        %920 = vmatpush2.bf16.msra.mxu0 0
        %921 = vmatprep.subr.bf16.mxu0 0
        %922 = vmatpush2.bf16.msra.mxu0 0
        %923 = vmatprep.subr.bf16.mxu0 0
        %924 = vmatpush2.bf16.msra.mxu0 0
        %925 = vmatprep.mubr.bf16.mxu0 0
        %926 = vmatmul.mubr.bf16.gmra.mxu0 %v888
        %v927 = vpop.f32.mrf.mxu0
        %v928 = vadd.f32 0.0, %v927
        %v929 = vpop.f32.mrf.mxu0
        %v930 = vpop.f32.mrf.mxu0
        %v931 = vpop.f32.mrf.mxu0
        %932 = vdwg.mxu0
        %934 = vrot.lane.b32.xlu0 %v928, 16
        %v935 = vpop.permute.xlu0 %934
        %vm937 = vcmask 195712
        %938 = vst.msk [vmem:[#allocation3] sm:$0xff] %vm937, %v935
        %v939 = vld [vmem:[%s569] sm:$0xff]
        %v940 = vmul.f32 %v939, 0.35355338
        %v941 = vld [vmem:[#allocation2] sm:$0xff]
        %v942 = vpack.c.bf16 %v940, %v940
        %v943 = vpack.c.bf16 %v941, %v941
        %945 = vrot.lane.b32.xlu0 %v942, 104
        %v946 = vpop.permute.xlu0 %945
        %948 = vrot.lane.b32.xlu0 %v943, 72
        %v949 = vpop.permute.xlu0 %948
        %v951 = vsel %vm584, %v946, 0
        %v954 = vsel %vm584, %v949, 0
        %956 = vmatprep.subr.bf16.mxu0 0
        %957 = vmatpush1.bf16.xpose.msra.mxu0 0
        %958 = vmatprep.subr.bf16.mxu0 0
        %959 = vmatpush1.bf16.xpose.msra.mxu0 0
        %960 = vmatprep.subr.bf16.mxu0 0
        %961 = vmatpush1.bf16.xpose.msra.mxu0 0
        %962 = vmatprep.subr.bf16.mxu0 0
        %963 = vmatpush1.bf16.xpose.msra.mxu0 0
        %964 = vmatprep.subr.bf16.mxu0 0
        %965 = vmatpush1.bf16.xpose.msra.mxu0 0
        %966 = vmatprep.subr.bf16.mxu0 0
        %967 = vmatpush1.bf16.xpose.msra.mxu0 0
        %968 = vmatprep.subr.bf16.mxu0 0
        %969 = vmatpush1.bf16.xpose.msra.mxu0 0
        %970 = vmatprep.subr.bf16.mxu0 0
        %971 = vmatpush1.bf16.xpose.msra.mxu0 %v954
        %972 = vmatprep.subr.bf16.mxu0 0
        %973 = vmatpush2.bf16.xpose.msra.mxu0 0
        %974 = vmatprep.subr.bf16.mxu0 0
        %975 = vmatpush2.bf16.xpose.msra.mxu0 0
        %976 = vmatprep.subr.bf16.mxu0 0
        %977 = vmatpush2.bf16.xpose.msra.mxu0 0
        %978 = vmatprep.subr.bf16.mxu0 0
        %979 = vmatpush2.bf16.xpose.msra.mxu0 0
        %980 = vmatprep.subr.bf16.mxu0 0
        %981 = vmatpush2.bf16.xpose.msra.mxu0 0
        %982 = vmatprep.subr.bf16.mxu0 0
        %983 = vmatpush2.bf16.xpose.msra.mxu0 0
        %984 = vmatprep.subr.bf16.mxu0 0
        %985 = vmatpush2.bf16.xpose.msra.mxu0 0
        %986 = vmatprep.subr.bf16.mxu0 0
        %987 = vmatpush2.bf16.xpose.msra.mxu0 0
        %988 = vmatprep.mubr.bf16.mxu0 0
        %989 = vmatmul.mubr.bf16.gmra.mxu0 %v951
        %v990 = vpop.f32.mrf.mxu0
        %v991 = vadd.f32 %v579, %v990
        %v992 = vpop.f32.mrf.mxu0
        %v993 = vpop.f32.mrf.mxu0
        %v994 = vpop.f32.mrf.mxu0
        %995 = vdwg.mxu0
        %v996 = vsel %vm584, %v991, -inf
        %997 = vmax.xlane.f32.xlu0 %v996
        %v998 = vpop.xlane.xlu0 %997
        %v999 = vsub.f32 %v991, %v998
        %v1000 = vmul.f32 %v999, 1.442695
        %v1001 = vpow.pop %v1000
        %v1002 = vsel %vm584, %v1001, 0.0
        %1003 = vadd.xlane.f32.xlu0 %v1002
        %v1004 = vpop.xlane.xlu0 %1003
        %v1005 = vrcp.pop %v1004
        %v1006 = vmul.f32 %v1001, %v1005
        %v1007 = vpack.c.bf16 %v1006, %v1006
        %1008 = vrot.lane.b32.xlu0 %v943, 40
        %v1009 = vpop.permute.xlu0 %1008
        %v1011 = vsel %vm584, %v1007, 0
        %v1014 = vsel %vm648, %v1009, 0
        %1016 = vmatprep.subr.bf16.mxu0 0
        %1017 = vmatpush1.bf16.msra.mxu0 0
        %1018 = vmatprep.subr.bf16.mxu0 0
        %1019 = vmatpush1.bf16.msra.mxu0 0
        %1020 = vmatprep.subr.bf16.mxu0 0
        %1021 = vmatpush1.bf16.msra.mxu0 0
        %1022 = vmatprep.subr.bf16.mxu0 0
        %1023 = vmatpush1.bf16.msra.mxu0 0
        %1024 = vmatprep.subr.bf16.mxu0 0
        %1025 = vmatpush1.bf16.msra.mxu0 0
        %1026 = vmatprep.subr.bf16.mxu0 0
        %1027 = vmatpush1.bf16.msra.mxu0 0
        %1028 = vmatprep.subr.bf16.mxu0 0
        %1029 = vmatpush1.bf16.msra.mxu0 0
        %1030 = vmatprep.subr.bf16.mxu0 0
        %1031 = vmatpush1.bf16.msra.mxu0 %v1014
        %1032 = vmatprep.subr.bf16.mxu0 0
        %1033 = vmatpush2.bf16.msra.mxu0 0
        %1034 = vmatprep.subr.bf16.mxu0 0
        %1035 = vmatpush2.bf16.msra.mxu0 0
        %1036 = vmatprep.subr.bf16.mxu0 0
        %1037 = vmatpush2.bf16.msra.mxu0 0
        %1038 = vmatprep.subr.bf16.mxu0 0
        %1039 = vmatpush2.bf16.msra.mxu0 0
        %1040 = vmatprep.subr.bf16.mxu0 0
        %1041 = vmatpush2.bf16.msra.mxu0 0
        %1042 = vmatprep.subr.bf16.mxu0 0
        %1043 = vmatpush2.bf16.msra.mxu0 0
        %1044 = vmatprep.subr.bf16.mxu0 0
        %1045 = vmatpush2.bf16.msra.mxu0 0
        %1046 = vmatprep.subr.bf16.mxu0 0
        %1047 = vmatpush2.bf16.msra.mxu0 0
        %1048 = vmatprep.mubr.bf16.mxu0 0
        %1049 = vmatmul.mubr.bf16.gmra.mxu0 %v1011
        %v1050 = vpop.f32.mrf.mxu0
        %v1051 = vadd.f32 0.0, %v1050
        %v1052 = vpop.f32.mrf.mxu0
        %v1053 = vpop.f32.mrf.mxu0
        %v1054 = vpop.f32.mrf.mxu0
        %1055 = vdwg.mxu0
        %1057 = vrot.lane.b32.xlu0 %v1051, 24
        %v1058 = vpop.permute.xlu0 %1057
        %vm1060 = vcmask 261312
        %1061 = vst.msk [vmem:[#allocation3] sm:$0xff] %vm1060, %v1058
        %v1062 = vld [vmem:[#allocation3] sm:$0xff]
        %v1063 = vpack.c.bf16 %v1062, %v1062
        %v1064 = vld [vmem:[%s4] sm:$0xf]
        %v1065 = vld [vmem:[%s4 + $0x4] sm:$0xf]
        %v1066 = vld [vmem:[%s4 + $0x8] sm:$0xf]
        %v1067 = vld [vmem:[%s4 + $0xc] sm:$0xf]
        %v1068 = vld [vmem:[%s5] sm:$0x1]
        %v1070 = vlaneseq
        %v1071 = vshrl.u32 %v1070, 7
        %v1072 = vsub.s32 0, %v1071
        %v1073 = vrot.slane %v1068, %v1072
        %v1079 = vunpack.c.l.b16 %v1064
        %v1080 = vunpack.c.l.b16 %v1065
        %v1081 = vunpack.c.l.b16 %v1066
        %v1082 = vunpack.c.l.b16 %v1067
        %v1083 = vpack.c.b16 %v1080, %v1079
        %v1084 = vpack.c.b16 %v1082, %v1081
        %vm1087 = vcmask 261120
        %v1089 = vsel %vm1087, %v1063, 0
        %1091 = vmatprep.subr.bf16.mxu0 0
        %1092 = vmatpush1.bf16.msra.mxu0 0
        %1093 = vmatprep.subr.bf16.mxu0 0
        %1094 = vmatpush1.bf16.msra.mxu0 0
        %1095 = vmatprep.subr.bf16.mxu0 0
        %1096 = vmatpush1.bf16.msra.mxu0 0
        %1097 = vmatprep.subr.bf16.mxu0 0
        %1098 = vmatpush1.bf16.msra.mxu0 0
        %1099 = vmatprep.subr.bf16.mxu0 0
        %1100 = vmatpush1.bf16.msra.mxu0 0
        %1101 = vmatprep.subr.bf16.mxu0 0
        %1102 = vmatpush1.bf16.msra.mxu0 0
        %1103 = vmatprep.subr.bf16.mxu0 0
        %1104 = vmatpush1.bf16.msra.mxu0 %v1084
        %1105 = vmatprep.subr.bf16.mxu0 0
        %1106 = vmatpush1.bf16.msra.mxu0 %v1083
        %1107 = vmatprep.subr.bf16.mxu0 0
        %1108 = vmatpush2.bf16.msra.mxu0 0
        %1109 = vmatprep.subr.bf16.mxu0 0
        %1110 = vmatpush2.bf16.msra.mxu0 0
        %1111 = vmatprep.subr.bf16.mxu0 0
        %1112 = vmatpush2.bf16.msra.mxu0 0
        %1113 = vmatprep.subr.bf16.mxu0 0
        %1114 = vmatpush2.bf16.msra.mxu0 0
        %1115 = vmatprep.subr.bf16.mxu0 0
        %1116 = vmatpush2.bf16.msra.mxu0 0
        %1117 = vmatprep.subr.bf16.mxu0 0
        %1118 = vmatpush2.bf16.msra.mxu0 0
        %1119 = vmatprep.subr.bf16.mxu0 0
        %1120 = vmatpush2.bf16.msra.mxu0 0
        %1121 = vmatprep.subr.bf16.mxu0 0
        %1122 = vmatpush2.bf16.msra.mxu0 0
        %1123 = vmatprep.mubr.bf16.mxu0 0
        %1124 = vmatmul.mubr.bf16.gmra.mxu0 %v1089
        %v1125 = vpop.f32.mrf.mxu0
        %v1126 = vadd.f32 %v1073, %v1125
        %v1127 = vpop.f32.mrf.mxu0
        %v1128 = vpop.f32.mrf.mxu0
        %v1129 = vpop.f32.mrf.mxu0
        %1130 = vdwg.mxu0
        %s1131 = scalar_lea.vmem %s487, %s492
        %v1132 = vld [vmem:[%s1131] sm:$0xff]
        %v1133 = vadd.f32 %v1126, %v1132
        %v1134 = vsel %vm1087, %v1133, 0.0
        %1135 = vadd.xlane.f32.xlu0 %v1134
        %v1136 = vpop.xlane.xlu0 %1135
        %v1137 = vrcp.pop 32.0
        %v1138 = vmul.f32 %v1136, %v1137
        %v1139 = vsub.f32 %v1133, %v1138
        %v1140 = vmul.f32 %v1139, %v1139
        %v1141 = vsel %vm1087, %v1140, 0.0
        %1142 = vadd.xlane.f32.xlu0 %v1141
        %v1143 = vpop.xlane.xlu0 %1142
        %v1144 = vmul.f32 %v1143, %v1137
        %v1145 = vadd.f32 %v1144, 1e-05
        %v1146 = vrsqrt.pop %v1145
        %v1147 = vmul.f32 %v1139, %v1146
        %v1148 = vld [vmem:[%s6] sm:$0x1]
        %v1150 = vlaneseq
        %v1151 = vshrl.u32 %v1150, 7
        %v1152 = vsub.s32 0, %v1151
        %v1153 = vrot.slane %v1148, %v1152
        %v1155 = vmul.f32 %v1147, %v1153
        %v1156 = vld [vmem:[%s7] sm:$0x1]
        %v1158 = vlaneseq
        %v1159 = vshrl.u32 %v1158, 7
        %v1160 = vsub.s32 0, %v1159
        %v1161 = vrot.slane %v1156, %v1160
        %v1163 = vadd.f32 %v1155, %v1161
        %v1164 = vpack.c.bf16 %v1163, %v1163
        %v1165 = vld [vmem:[%s8] sm:$0xf]
        %v1166 = vld [vmem:[%s8 + $0x4] sm:$0xf]
        %v1167 = vld [vmem:[%s8 + $0x8] sm:$0xf]
        %v1168 = vld [vmem:[%s8 + $0xc] sm:$0xf]
        %v1169 = vld [vmem:[%s9] sm:$0x1]
        %v1171 = vlaneseq
        %v1172 = vshrl.u32 %v1171, 7
        %v1173 = vsub.s32 0, %v1172
        %v1174 = vrot.slane %v1169, %v1173
        %v1180 = vunpack.c.l.b16 %v1165
        %v1181 = vunpack.c.l.b16 %v1166
        %v1182 = vunpack.c.l.b16 %v1167
        %v1183 = vunpack.c.l.b16 %v1168
        %v1184 = vpack.c.b16 %v1181, %v1180
        %v1185 = vpack.c.b16 %v1183, %v1182
        %v1189 = vsel %vm1087, %v1164, 0
        %1191 = vmatprep.subr.bf16.mxu0 0
        %1192 = vmatpush1.bf16.msra.mxu0 0
        %1193 = vmatprep.subr.bf16.mxu0 0
        %1194 = vmatpush1.bf16.msra.mxu0 0
        %1195 = vmatprep.subr.bf16.mxu0 0
        %1196 = vmatpush1.bf16.msra.mxu0 0
        %1197 = vmatprep.subr.bf16.mxu0 0
        %1198 = vmatpush1.bf16.msra.mxu0 0
        %1199 = vmatprep.subr.bf16.mxu0 0
        %1200 = vmatpush1.bf16.msra.mxu0 0
        %1201 = vmatprep.subr.bf16.mxu0 0
        %1202 = vmatpush1.bf16.msra.mxu0 0
        %1203 = vmatprep.subr.bf16.mxu0 0
        %1204 = vmatpush1.bf16.msra.mxu0 %v1185
        %1205 = vmatprep.subr.bf16.mxu0 0
        %1206 = vmatpush1.bf16.msra.mxu0 %v1184
        %1207 = vmatprep.subr.bf16.mxu0 0
        %1208 = vmatpush2.bf16.msra.mxu0 0
        %1209 = vmatprep.subr.bf16.mxu0 0
        %1210 = vmatpush2.bf16.msra.mxu0 0
        %1211 = vmatprep.subr.bf16.mxu0 0
        %1212 = vmatpush2.bf16.msra.mxu0 0
        %1213 = vmatprep.subr.bf16.mxu0 0
        %1214 = vmatpush2.bf16.msra.mxu0 0
        %1215 = vmatprep.subr.bf16.mxu0 0
        %1216 = vmatpush2.bf16.msra.mxu0 0
        %1217 = vmatprep.subr.bf16.mxu0 0
        %1218 = vmatpush2.bf16.msra.mxu0 0
        %1219 = vmatprep.subr.bf16.mxu0 0
        %1220 = vmatpush2.bf16.msra.mxu0 0
        %1221 = vmatprep.subr.bf16.mxu0 0
        %1222 = vmatpush2.bf16.msra.mxu0 0
        %1223 = vmatprep.mubr.bf16.mxu0 0
        %1224 = vmatmul.mubr.bf16.gmra.mxu0 %v1189
        %v1225 = vpop.f32.mrf.mxu0
        %v1226 = vadd.f32 %v1174, %v1225
        %v1227 = vpop.f32.mrf.mxu0
        %v1228 = vpop.f32.mrf.mxu0
        %v1229 = vpop.f32.mrf.mxu0
        %1230 = vdwg.mxu0
        %v1231 = vmax.f32 %v1226, 0.0
        %v1232 = vpack.c.bf16 %v1231, %v1231
        %v1233 = vld [vmem:[%s10] sm:$0xf]
        %v1234 = vld [vmem:[%s10 + $0x4] sm:$0xf]
        %v1235 = vld [vmem:[%s10 + $0x8] sm:$0xf]
        %v1236 = vld [vmem:[%s10 + $0xc] sm:$0xf]
        %v1237 = vld [vmem:[%s10 + $0x10] sm:$0xf]
        %v1238 = vld [vmem:[%s10 + $0x14] sm:$0xf]
        %v1239 = vld [vmem:[%s10 + $0x18] sm:$0xf]
        %v1240 = vld [vmem:[%s10 + $0x1c] sm:$0xf]
        %v1241 = vld [vmem:[%s11] sm:$0x1]
        %v1243 = vlaneseq
        %v1244 = vshrl.u32 %v1243, 7
        %v1245 = vsub.s32 0, %v1244
        %v1246 = vrot.slane %v1241, %v1245
        %v1256 = vunpack.c.l.b16 %v1233
        %v1257 = vunpack.c.l.b16 %v1234
        %v1258 = vunpack.c.l.b16 %v1235
        %v1259 = vunpack.c.l.b16 %v1236
        %v1260 = vunpack.c.l.b16 %v1237
        %v1261 = vunpack.c.l.b16 %v1238
        %v1262 = vunpack.c.l.b16 %v1239
        %v1263 = vunpack.c.l.b16 %v1240
        %v1264 = vpack.c.b16 %v1257, %v1256
        %v1265 = vpack.c.b16 %v1259, %v1258
        %v1266 = vpack.c.b16 %v1261, %v1260
        %v1267 = vpack.c.b16 %v1263, %v1262
        %vm1272 = vcmask 523264
        %v1274 = vsel %vm1272, %v1232, 0
        %1276 = vmatprep.subr.bf16.mxu0 0
        %1277 = vmatpush1.bf16.msra.mxu0 0
        %1278 = vmatprep.subr.bf16.mxu0 0
        %1279 = vmatpush1.bf16.msra.mxu0 0
        %1280 = vmatprep.subr.bf16.mxu0 0
        %1281 = vmatpush1.bf16.msra.mxu0 0
        %1282 = vmatprep.subr.bf16.mxu0 0
        %1283 = vmatpush1.bf16.msra.mxu0 0
        %1284 = vmatprep.subr.bf16.mxu0 0
        %1285 = vmatpush1.bf16.msra.mxu0 %v1267
        %1286 = vmatprep.subr.bf16.mxu0 0
        %1287 = vmatpush1.bf16.msra.mxu0 %v1266
        %1288 = vmatprep.subr.bf16.mxu0 0
        %1289 = vmatpush1.bf16.msra.mxu0 %v1265
        %1290 = vmatprep.subr.bf16.mxu0 0
        %1291 = vmatpush1.bf16.msra.mxu0 %v1264
        %1292 = vmatprep.subr.bf16.mxu0 0
        %1293 = vmatpush2.bf16.msra.mxu0 0
        %1294 = vmatprep.subr.bf16.mxu0 0
        %1295 = vmatpush2.bf16.msra.mxu0 0
        %1296 = vmatprep.subr.bf16.mxu0 0
        %1297 = vmatpush2.bf16.msra.mxu0 0
        %1298 = vmatprep.subr.bf16.mxu0 0
        %1299 = vmatpush2.bf16.msra.mxu0 0
        %1300 = vmatprep.subr.bf16.mxu0 0
        %1301 = vmatpush2.bf16.msra.mxu0 0
        %1302 = vmatprep.subr.bf16.mxu0 0
        %1303 = vmatpush2.bf16.msra.mxu0 0
        %1304 = vmatprep.subr.bf16.mxu0 0
        %1305 = vmatpush2.bf16.msra.mxu0 0
        %1306 = vmatprep.subr.bf16.mxu0 0
        %1307 = vmatpush2.bf16.msra.mxu0 0
        %1308 = vmatprep.mubr.bf16.mxu0 0
        %1309 = vmatmul.mubr.bf16.gmra.mxu0 %v1274
        %v1310 = vpop.f32.mrf.mxu0
        %v1311 = vadd.f32 %v1246, %v1310
        %v1312 = vpop.f32.mrf.mxu0
        %v1313 = vpop.f32.mrf.mxu0
        %v1314 = vpop.f32.mrf.mxu0
        %1315 = vdwg.mxu0
        %v1316 = vadd.f32 %v1311, %v1163
        %v1317 = vsel %vm1087, %v1316, 0.0
        %1318 = vadd.xlane.f32.xlu0 %v1317
        %v1319 = vpop.xlane.xlu0 %1318
        %v1320 = vmul.f32 %v1319, %v1137
        %v1321 = vsub.f32 %v1316, %v1320
        %v1322 = vmul.f32 %v1321, %v1321
        %v1323 = vsel %vm1087, %v1322, 0.0
        %1324 = vadd.xlane.f32.xlu0 %v1323
        %v1325 = vpop.xlane.xlu0 %1324
        %v1326 = vmul.f32 %v1325, %v1137
        %v1327 = vadd.f32 %v1326, 1e-05
        %v1328 = vrsqrt.pop %v1327
        %v1329 = vmul.f32 %v1321, %v1328
        %v1330 = vld [vmem:[%s12] sm:$0x1]
        %v1332 = vlaneseq
        %v1333 = vshrl.u32 %v1332, 7
        %v1334 = vsub.s32 0, %v1333
        %v1335 = vrot.slane %v1330, %v1334
        %v1337 = vmul.f32 %v1329, %v1335
        %v1338 = vld [vmem:[%s13] sm:$0x1]
        %v1340 = vlaneseq
        %v1341 = vshrl.u32 %v1340, 7
        %v1342 = vsub.s32 0, %v1341
        %v1343 = vrot.slane %v1338, %v1342
        %v1345 = vadd.f32 %v1337, %v1343
        %1346 = vst.msk [vmem:[%s483] sm:$0xff] %vm1087, %v1345
        %s1347 = sand.u32 %s354, 1
        %s1348 = scalar_lea.sflag [#allocation5], %s1347
        %s1349 = sand.u32 %s354, 1
        %s1350 = smul.addr %s1349, 8
        %s1351 = scalar_lea.vmem [#allocation4], %s1350
        // Predicated region
        $region81: #{transformer_encoder_stack.3} parent=75 // pred_check
          %p1352 = pneg %p364
        $region82: #{transformer_encoder_stack.3} parent=75 // pred_check_branch
          %1354 = sbr.rel (%p1352) target = $region84
        $region83: #{transformer_encoder_stack.3} parent=75 // pred_region
          %s1356 = ssub.s32 128, 128
          %1357 = vsyncadd %s1348, %s1356
          %s1358 = sadd.s32 %s33, %s32
          %s1359 = smul.addr %s1358, 128
          %s1360 = scalar_lea.hbm %s14, %s1359
          %s1362 = sshll.u32 %s1351, 4
          %s1363 = int_to_ptr.vmem [resolvable:$true] %s1362
          %1365 = dma.vmem_to_hbm [thread:$0]  %s1363, 128, %s1360, %s1348
        $region84: #{transformer_encoder_stack.3} parent=75 // pred_fallthru
          _
      $region76: #{transformer_encoder_stack.3} parent=5 // pred_fallthru
        _
      %p1366 = scmp.le.s32.totalorder 2, %s23
      // Predicated region
      $region85: #{transformer_encoder_stack.3} parent=5 // pred_check
        %p1367 = pneg %p1366
      $region86: #{transformer_encoder_stack.3} parent=5 // pred_check_branch
        %1369 = sbr.rel (%p1367) target = $region88
      $region87: #{transformer_encoder_stack.3} parent=5 // pred_region
        %s1370 = ssub.s32 %s23, 2
        // Predicated region
        $region89: #{transformer_encoder_stack.3} parent=87 // pred_check
          %p1371 = pneg %p370
        $region90: #{transformer_encoder_stack.3} parent=87 // pred_check_branch
          %1373 = sbr.rel (%p1371) target = $region92
        $region91: #{transformer_encoder_stack.3} parent=87 // pred_region
          %s1374 = sand.u32 %s355, 1
          %s1375 = scalar_lea.sflag [#allocation5], %s1374
          %s1376 = sand.u32 %s355, 1
          %s1377 = smul.addr %s1376, 8
          %s1378 = scalar_lea.vmem [#allocation4], %s1377
          %1379 = dma.done %s1375, 128
        $region92: #{transformer_encoder_stack.3} parent=87 // pred_fallthru
          _
      $region88: #{transformer_encoder_stack.3} parent=5 // pred_fallthru
        _
    $region6: #{transformer_encoder_stack.3} parent=1 // loop_footer
      %s27 = sadd.s32 1, %s23
    $region7: #{transformer_encoder_stack.3} parent=1 // loop_footer_branch
      %22 = sbr.rel target = $region3
    $region8: #{transformer_encoder_stack.3} parent=1 // loop_exit
      _
    %1380 = vsyncpa [#allocation5], 1
    %s1381 = scalar_lea.sflag [#allocation5], 1
    %1382 = vsyncpa %s1381, 1

</llo_original>
